<compile_context>
chip_gen: v7x
topology: tpu7x:2x2x1
jax: 0.10.0
libtpu: 0.0.40
codegen_flags: <defaults>
</compile_context>

<pallas_src>
import functools

import jax
import jax.numpy as jnp
from jax.experimental import pallas as pl
from jax.experimental.pallas import tpu as pltpu

# ----------------------------- model hyper-params -----------------------------
VOCAB_SIZE = 50
EMBEDDING_SIZE = 32
HIDDEN_SIZE = 32
NUM_LAYERS = 2
NUM_CLASS = 5
NUM_CLASS_PAD = 128      # FC output padded to a full lane group; sliced outside
BATCH = 2
SEQ = 8


# --------------------------- fused bidirectional core --------------------------
def _bilstm_core(x_ref, h0_ref, c0_ref, w_ih_ref, w_hh_ref, b_ref, *, T, B, H):
    """Whole-sequence bidirectional LSTM recurrence. Returns values (no stores).

    x_ref   : (T*B, F_in)  time-major rows (row = t*B + b), shared by both dirs
    h0_ref  : (2B, H)      rows [0:B] = forward init, [B:2B] = backward init
    c0_ref  : (2B, H)
    w_ih_ref: (F_in, 8H)   [W_ih_fwd^T | W_ih_bwd^T]
    w_hh_ref: (2H, 4H)     [W_hh_fwd^T ; W_hh_bwd^T]   (block-stacked)
    b_ref   : (1, 8H)      [(b_ih+b_hh)_fwd | (b_ih+b_hh)_bwd]
    Returns : y (T*B, 2H) f32, h_final (2B, H) f32, c_final (2B, H) f32
    """
    TWO_B = 2 * B

    # Hoisted input->gates matmul for both directions: one MXU push for the
    # whole sequence instead of 2*T tiny ones on the sequential critical path.
    g_in = (jnp.dot(x_ref[...], w_ih_ref[...],
                    preferred_element_type=jnp.float32)
            + b_ref[...])                                   # (T*B, 8H)

    w_hh = w_hh_ref[...]                                    # (2H, 4H)
    h = h0_ref[...].astype(jnp.float32)                     # (2B, H)
    c = c0_ref[...].astype(jnp.float32)

    # Rows [0:B] are the forward stream, rows [B:2B] the backward stream.
    is_fwd = jax.lax.broadcasted_iota(jnp.int32, (TWO_B, 1), 0) < B

    def widen(h_):
        # (2B, H) -> (2B, 2H) matching the [fwd ; bwd] block-stacked W_hh so the
        # recurrence of both directions is a single matmul per step.
        return jnp.concatenate(
            [jnp.where(is_fwd, h_, 0.0), jnp.where(is_fwd, 0.0, h_)], axis=-1)

    y_fwd, y_bwd = [], []
    # T is small & static -> fully unrolled with static indices (no dyn slicing).
    for t in range(T):
        tr = T - 1 - t                                       # reversed time
        gi = jnp.concatenate(
            [g_in[t * B:(t + 1) * B, 0:4 * H],               # fwd gates @ t
             g_in[tr * B:(tr + 1) * B, 4 * H:8 * H]],        # bwd gates @ tr
            axis=0)                                          # (2B, 4H)
        gates = gi + jnp.dot(widen(h), w_hh,
                             preferred_element_type=jnp.float32)

        # PyTorch LSTM gate order: i, f, g, o
        i_g = jax.nn.sigmoid(gates[:, 0 * H:1 * H])
        f_g = jax.nn.sigmoid(gates[:, 1 * H:2 * H])
        g_g = jnp.tanh(gates[:, 2 * H:3 * H])
        o_g = jax.nn.sigmoid(gates[:, 3 * H:4 * H])

        c = f_g * c + i_g * g_g
        h = o_g * jnp.tanh(c)

        y_fwd.append(h[:B])      # output for time t
        y_bwd.append(h[B:])      # output for time tr

    # Re-align backward outputs to forward time order and build one lane-dense
    # (T*B, 2H) slab that the caller stores exactly once.
    rows = [jnp.concatenate([y_fwd[t], y_bwd[T - 1 - t]], axis=-1)  # (B, 2H)
            for t in range(T)]
    y = jnp.concatenate(rows, axis=0)                               # (T*B, 2H)
    return y, h, c


def _bilstm_layer_kernel(x_ref, h0_ref, c0_ref, w_ih_ref, w_hh_ref, b_ref,
                         y_ref, hT_ref, cT_ref, *, T, B, H):
    y, h, c = _bilstm_core(x_ref, h0_ref, c0_ref, w_ih_ref, w_hh_ref, b_ref,
                           T=T, B=B, H=H)
    y_ref[...] = y.astype(y_ref.dtype)
    hT_ref[...] = h.astype(hT_ref.dtype)
    cT_ref[...] = c.astype(cT_ref.dtype)


def _bilstm_fc_layer_kernel(x_ref, h0_ref, c0_ref, w_ih_ref, w_hh_ref, b_ref,
                            fc_w_ref, fc_b_ref,
                            score_ref, hT_ref, cT_ref, *, T, B, H):
    y, h, c = _bilstm_core(x_ref, h0_ref, c0_ref, w_ih_ref, w_hh_ref, b_ref,
                           T=T, B=B, H=H)
    # FC head fused into the epilogue; output lanes padded to NUM_CLASS_PAD so
    # the store is lane-dense (no 5-wide masked partial stores).
    score_ref[...] = (jnp.dot(y, fc_w_ref[...],
                              preferred_element_type=jnp.float32)
                      + fc_b_ref[...]).astype(score_ref.dtype)
    hT_ref[...] = h.astype(hT_ref.dtype)
    cT_ref[...] = c.astype(cT_ref.dtype)


# ------------------------------ pallas_call wrappers ---------------------------
def _vmem_specs(n):
    return [pl.BlockSpec(memory_space=pltpu.MemorySpace.VMEM) for _ in range(n)]


def bilstm_layer(x, h0, c0, w_ih, w_hh, b):
    """x: (T*B, F_in) -> (y (T*B, 2H), hT (2B, H), cT (2B, H))."""
    TB = x.shape[0]
    B = h0.shape[0] // 2
    T = TB // B
    H = HIDDEN_SIZE
    kernel = functools.partial(_bilstm_layer_kernel, T=T, B=B, H=H)
    return pl.pallas_call(
        kernel,
        out_shape=(jax.ShapeDtypeStruct((T * B, 2 * H), jnp.float32),
                   jax.ShapeDtypeStruct((2 * B, H), jnp.float32),
                   jax.ShapeDtypeStruct((2 * B, H), jnp.float32)),
        in_specs=_vmem_specs(6),
        out_specs=tuple(_vmem_specs(3)),
    )(x, h0, c0, w_ih, w_hh, b)


def bilstm_fc_layer(x, h0, c0, w_ih, w_hh, b, fc_w, fc_b):
    """Last layer: also applies the lane-padded FC head in the epilogue."""
    TB = x.shape[0]
    B = h0.shape[0] // 2
    T = TB // B
    H = HIDDEN_SIZE
    C = fc_w.shape[1]
    kernel = functools.partial(_bilstm_fc_layer_kernel, T=T, B=B, H=H)
    return pl.pallas_call(
        kernel,
        out_shape=(jax.ShapeDtypeStruct((T * B, C), jnp.float32),
                   jax.ShapeDtypeStruct((2 * B, H), jnp.float32),
                   jax.ShapeDtypeStruct((2 * B, H), jnp.float32)),
        in_specs=_vmem_specs(8),
        out_specs=tuple(_vmem_specs(3)),
    )(x, h0, c0, w_ih, w_hh, b, fc_w, fc_b)


# ------------------------------ parameter setup --------------------------------
def init_params(key):
    """Mimic BiLSTMPR.init_weights: matrices ~ U(-0.1, 0.1), vectors (biases) = 0.

    LSTM weights are stored in the fused layout the kernel consumes:
      w_ih[l]: (F_in, 8H) = [W_ih_fwd^T | W_ih_bwd^T]
      w_hh[l]: (2H, 4H)   = [W_hh_fwd^T ; W_hh_bwd^T]
      bias[l]: (1, 8H)    = [(b_ih+b_hh)_fwd | (b_ih+b_hh)_bwd]   (zeros)
    The FC weight/bias are padded to NUM_CLASS_PAD output lanes.
    """
    params = {}
    k_emb, k_fc, k_lstm = jax.random.split(key, 3)

    params["embedding"] = jax.random.uniform(
        k_emb, (VOCAB_SIZE, EMBEDDING_SIZE), jnp.float32, -0.1, 0.1)

    fc_w = jax.random.uniform(
        k_fc, (2 * HIDDEN_SIZE, NUM_CLASS), jnp.float32, -0.1, 0.1)
    params["fc_w"] = jnp.zeros((2 * HIDDEN_SIZE, NUM_CLASS_PAD),
                               jnp.float32).at[:, :NUM_CLASS].set(fc_w)
    params["fc_b"] = jnp.zeros((1, NUM_CLASS_PAD), jnp.float32)

    w_ih, w_hh, bias = [], [], []
    keys = jax.random.split(k_lstm, NUM_LAYERS * 2 * 2)
    ki = 0
    for layer in range(NUM_LAYERS):
        in_size = EMBEDDING_SIZE if layer == 0 else 2 * HIDDEN_SIZE
        w_ih_dirs, w_hh_dirs = [], []
        for _direction in range(2):
            # PyTorch shapes: weight_ih (4H, in), weight_hh (4H, H); stored transposed.
            w_ih_dirs.append(jax.random.uniform(
                keys[ki], (in_size, 4 * HIDDEN_SIZE), jnp.float32, -0.1, 0.1))
            ki += 1
            w_hh_dirs.append(jax.random.uniform(
                keys[ki], (HIDDEN_SIZE, 4 * HIDDEN_SIZE), jnp.float32, -0.1, 0.1))
            ki += 1
        w_ih.append(jnp.concatenate(w_ih_dirs, axis=1))     # (F_in, 8H)
        w_hh.append(jnp.concatenate(w_hh_dirs, axis=0))     # (2H, 4H)
        bias.append(jnp.zeros((1, 8 * HIDDEN_SIZE), jnp.float32))
    params["w_ih"] = w_ih
    params["w_hh"] = w_hh
    params["bias"] = bias
    return params


def init_hidden(batch_size):
    h = jnp.zeros((NUM_LAYERS * 2, batch_size, HIDDEN_SIZE), jnp.float32)
    c = jnp.zeros((NUM_LAYERS * 2, batch_size, HIDDEN_SIZE), jnp.float32)
    return (h, c)


# ------------------------------- forward pass ----------------------------------
def bilstm_pr_forward(params, inputs, hidden):
    """inputs: (B, T) int32 token ids; hidden: (h0, c0) each (num_layers*2, B, H).

    Returns (score (B, T, num_class), (h_n, c_n)) matching BiLSTMPR.forward.
    """
    h0_all, c0_all = hidden
    B, T = inputs.shape
    H = HIDDEN_SIZE

    # Embedding lookup (gather) -- plain-JAX glue.
    # TODO(synk): the embedding gather stays in XLA (jnp.take); a manual DMA
    # gather kernel is not worth it at this size.
    emb = jnp.take(params["embedding"], inputs, axis=0)            # (B, T, E)
    # Single transpose to time-major rows (row = t*B + b); all Pallas work is 2D.
    x = jnp.transpose(emb, (1, 0, 2)).reshape(T * B, EMBEDDING_SIZE)

    h_finals, c_finals = [], []
    score_tm = None
    for layer in range(NUM_LAYERS):
        h0 = h0_all[2 * layer:2 * layer + 2].reshape(2 * B, H)
        c0 = c0_all[2 * layer:2 * layer + 2].reshape(2 * B, H)
        if layer < NUM_LAYERS - 1:
            x, hT, cT = bilstm_layer(
                x, h0, c0, params["w_ih"][layer], params["w_hh"][layer],
                params["bias"][layer])
        else:
            score_tm, hT, cT = bilstm_fc_layer(
                x, h0, c0, params["w_ih"][layer], params["w_hh"][layer],
                params["bias"][layer], params["fc_w"], params["fc_b"])
        h_finals.append(hT.reshape(2, B, H))
        c_finals.append(cT.reshape(2, B, H))

    # (T*B, C_pad) time-major -> (B, T, num_class) batch-first, unpadded.
    score = jnp.transpose(
        score_tm.reshape(T, B, NUM_CLASS_PAD)[:, :, :NUM_CLASS], (1, 0, 2))

    h_n = jnp.concatenate(h_finals, axis=0)     # (num_layers*2, B, H)
    c_n = jnp.concatenate(c_finals, axis=0)
    return score, (h_n, c_n)


# ----------------------------------- main ---------------------------------------
if __name__ == "__main__":
    key = jax.random.PRNGKey(0)
    k_params, k_inputs = jax.random.split(key)

    params = init_params(k_params)
    inputs = jax.random.randint(k_inputs, (BATCH, SEQ), 0, VOCAB_SIZE, jnp.int32)
    hidden = init_hidden(BATCH)

    fwd = jax.jit(functools.partial(bilstm_pr_forward, params))
    score, (h_n, c_n) = fwd(inputs, hidden)
    jax.block_until_ready((score, h_n, c_n))

    assert score.shape == (BATCH, SEQ, NUM_CLASS)
    assert h_n.shape == (NUM_LAYERS * 2, BATCH, HIDDEN_SIZE)
    assert c_n.shape == (NUM_LAYERS * 2, BATCH, HIDDEN_SIZE)
    assert bool(jnp.all(jnp.isfinite(score)))
    print("KERNEL_OK")
</pallas_src>

<mosaic_0001>
module attributes {stable_mosaic.version = 11 : i64} {
  func.func @_bilstm_fc_layer_kernel(%arg0: memref<16x64xf32, #tpu.memory_space<vmem>>, %arg1: memref<4x32xf32, #tpu.memory_space<vmem>>, %arg2: memref<4x32xf32, #tpu.memory_space<vmem>>, %arg3: memref<64x256xf32, #tpu.memory_space<vmem>>, %arg4: memref<64x128xf32, #tpu.memory_space<vmem>>, %arg5: memref<1x256xf32, #tpu.memory_space<vmem>>, %arg6: memref<64x128xf32, #tpu.memory_space<vmem>>, %arg7: memref<1x128xf32, #tpu.memory_space<vmem>>, %arg8: memref<16x128xf32, #tpu.memory_space<vmem>>, %arg9: memref<4x32xf32, #tpu.memory_space<vmem>>, %arg10: memref<4x32xf32, #tpu.memory_space<vmem>>) attributes {dimension_semantics = [], scalar_prefetch = 0 : i64, scratch_operands = 0 : i64, tpu.core_type = #tpu.core_type<tc>} {
    %c0 = arith.constant 0 : index
    %c0_0 = arith.constant 0 : index
    %0 = vector.load %arg0[%c0, %c0_0] : memref<16x64xf32, #tpu.memory_space<vmem>>, vector<16x64xf32>
    %c0_1 = arith.constant 0 : index
    %c0_2 = arith.constant 0 : index
    %1 = vector.load %arg3[%c0_1, %c0_2] : memref<64x256xf32, #tpu.memory_space<vmem>>, vector<64x256xf32>
    %cst = arith.constant dense<0.000000e+00> : vector<16x256xf32>
    %2 = tpu.matmul %0, %1, %cst {dimension_numbers = #tpu.dot_dimension_numbers<[1], [0], [0], [1], [0, 0, 1, 1], [], []>} : vector<16x64xf32>, vector<64x256xf32>, vector<16x256xf32> -> vector<16x256xf32>
    %c0_3 = arith.constant 0 : index
    %c0_4 = arith.constant 0 : index
    %3 = vector.load %arg5[%c0_3, %c0_4] : memref<1x256xf32, #tpu.memory_space<vmem>>, vector<1x256xf32>
    %4 = vector.broadcast %3 : vector<1x256xf32> to vector<16x256xf32>
    %5 = arith.addf %2, %4 : vector<16x256xf32>
    %c0_5 = arith.constant 0 : index
    %c0_6 = arith.constant 0 : index
    %6 = vector.load %arg4[%c0_5, %c0_6] : memref<64x128xf32, #tpu.memory_space<vmem>>, vector<64x128xf32>
    %c0_7 = arith.constant 0 : index
    %c0_8 = arith.constant 0 : index
    %7 = vector.load %arg1[%c0_7, %c0_8] : memref<4x32xf32, #tpu.memory_space<vmem>>, vector<4x32xf32>
    %c0_9 = arith.constant 0 : index
    %c0_10 = arith.constant 0 : index
    %8 = vector.load %arg2[%c0_9, %c0_10] : memref<4x32xf32, #tpu.memory_space<vmem>>, vector<4x32xf32>
    %9 = tpu.iota {dimensions = array<i32: 0>} : vector<4x1xi32>
    %c2_i32 = arith.constant 2 : i32
    %10 = vector.broadcast %c2_i32 : i32 to vector<4x1xi32>
    %11 = arith.cmpi slt, %9, %10 : vector<4x1xi32>
    %12 = vector.extract_strided_slice %5 {offsets = [0, 0], sizes = [2, 128], strides = [1, 1]} : vector<16x256xf32> to vector<2x128xf32>
    %13 = vector.extract_strided_slice %5 {offsets = [14, 128], sizes = [2, 128], strides = [1, 1]} : vector<16x256xf32> to vector<2x128xf32>
    %14 = tpu.concatenate %12, %13 in 0 : vector<2x128xf32>, vector<2x128xf32> -> vector<4x128xf32>
    %cst_11 = arith.constant 0.000000e+00 : f32
    %15 = vector.shape_cast %11 : vector<4x1xi1> to vector<4x1xi1>
    %16 = vector.broadcast %15 : vector<4x1xi1> to vector<4x32xi1>
    %17 = vector.broadcast %cst_11 : f32 to vector<4x32xf32>
    %18 = arith.select %16, %7, %17 : vector<4x32xi1>, vector<4x32xf32>
    %cst_12 = arith.constant 0.000000e+00 : f32
    %19 = vector.shape_cast %11 : vector<4x1xi1> to vector<4x1xi1>
    %20 = vector.broadcast %19 : vector<4x1xi1> to vector<4x32xi1>
    %21 = vector.broadcast %cst_12 : f32 to vector<4x32xf32>
    %22 = arith.select %20, %21, %7 : vector<4x32xi1>, vector<4x32xf32>
    %23 = tpu.concatenate %18, %22 in 1 : vector<4x32xf32>, vector<4x32xf32> -> vector<4x64xf32>
    %cst_13 = arith.constant dense<0.000000e+00> : vector<4x128xf32>
    %24 = tpu.matmul %23, %6, %cst_13 {dimension_numbers = #tpu.dot_dimension_numbers<[1], [0], [0], [1], [0, 0, 1, 1], [], []>} : vector<4x64xf32>, vector<64x128xf32>, vector<4x128xf32> -> vector<4x128xf32>
    %25 = arith.addf %14, %24 : vector<4x128xf32>
    %26 = vector.extract_strided_slice %25 {offsets = [0, 0], sizes = [4, 32], strides = [1, 1]} : vector<4x128xf32> to vector<4x32xf32>
    %27 = arith.negf %26 : vector<4x32xf32>
    %28 = math.exp %27 : vector<4x32xf32>
    %cst_14 = arith.constant 1.000000e+00 : f32
    %29 = vector.broadcast %cst_14 : f32 to vector<4x32xf32>
    %30 = arith.addf %29, %28 : vector<4x32xf32>
    %31 = arith.divf %29, %30 : vector<4x32xf32>
    %32 = vector.extract_strided_slice %25 {offsets = [0, 32], sizes = [4, 32], strides = [1, 1]} : vector<4x128xf32> to vector<4x32xf32>
    %33 = arith.negf %32 : vector<4x32xf32>
    %34 = math.exp %33 : vector<4x32xf32>
    %cst_15 = arith.constant 1.000000e+00 : f32
    %35 = vector.broadcast %cst_15 : f32 to vector<4x32xf32>
    %36 = arith.addf %35, %34 : vector<4x32xf32>
    %37 = arith.divf %35, %36 : vector<4x32xf32>
    %38 = vector.extract_strided_slice %25 {offsets = [0, 64], sizes = [4, 32], strides = [1, 1]} : vector<4x128xf32> to vector<4x32xf32>
    %39 = math.tanh %38 : vector<4x32xf32>
    %40 = vector.extract_strided_slice %25 {offsets = [0, 96], sizes = [4, 32], strides = [1, 1]} : vector<4x128xf32> to vector<4x32xf32>
    %41 = arith.negf %40 : vector<4x32xf32>
    %42 = math.exp %41 : vector<4x32xf32>
    %cst_16 = arith.constant 1.000000e+00 : f32
    %43 = vector.broadcast %cst_16 : f32 to vector<4x32xf32>
    %44 = arith.addf %43, %42 : vector<4x32xf32>
    %45 = arith.divf %43, %44 : vector<4x32xf32>
    %46 = arith.mulf %37, %8 : vector<4x32xf32>
    %47 = arith.mulf %31, %39 : vector<4x32xf32>
    %48 = arith.addf %46, %47 : vector<4x32xf32>
    %49 = math.tanh %48 : vector<4x32xf32>
    %50 = arith.mulf %45, %49 : vector<4x32xf32>
    %51 = vector.extract_strided_slice %50 {offsets = [0, 0], sizes = [2, 32], strides = [1, 1]} : vector<4x32xf32> to vector<2x32xf32>
    %52 = vector.extract_strided_slice %50 {offsets = [2, 0], sizes = [2, 32], strides = [1, 1]} : vector<4x32xf32> to vector<2x32xf32>
    %53 = vector.extract_strided_slice %5 {offsets = [2, 0], sizes = [2, 128], strides = [1, 1]} : vector<16x256xf32> to vector<2x128xf32>
    %54 = vector.extract_strided_slice %5 {offsets = [12, 128], sizes = [2, 128], strides = [1, 1]} : vector<16x256xf32> to vector<2x128xf32>
    %55 = tpu.concatenate %53, %54 in 0 : vector<2x128xf32>, vector<2x128xf32> -> vector<4x128xf32>
    %cst_17 = arith.constant 0.000000e+00 : f32
    %56 = vector.shape_cast %11 : vector<4x1xi1> to vector<4x1xi1>
    %57 = vector.broadcast %56 : vector<4x1xi1> to vector<4x32xi1>
    %58 = vector.broadcast %cst_17 : f32 to vector<4x32xf32>
    %59 = arith.select %57, %50, %58 : vector<4x32xi1>, vector<4x32xf32>
    %cst_18 = arith.constant 0.000000e+00 : f32
    %60 = vector.shape_cast %11 : vector<4x1xi1> to vector<4x1xi1>
    %61 = vector.broadcast %60 : vector<4x1xi1> to vector<4x32xi1>
    %62 = vector.broadcast %cst_18 : f32 to vector<4x32xf32>
    %63 = arith.select %61, %62, %50 : vector<4x32xi1>, vector<4x32xf32>
    %64 = tpu.concatenate %59, %63 in 1 : vector<4x32xf32>, vector<4x32xf32> -> vector<4x64xf32>
    %cst_19 = arith.constant dense<0.000000e+00> : vector<4x128xf32>
    %65 = tpu.matmul %64, %6, %cst_19 {dimension_numbers = #tpu.dot_dimension_numbers<[1], [0], [0], [1], [0, 0, 1, 1], [], []>} : vector<4x64xf32>, vector<64x128xf32>, vector<4x128xf32> -> vector<4x128xf32>
    %66 = arith.addf %55, %65 : vector<4x128xf32>
    %67 = vector.extract_strided_slice %66 {offsets = [0, 0], sizes = [4, 32], strides = [1, 1]} : vector<4x128xf32> to vector<4x32xf32>
    %68 = arith.negf %67 : vector<4x32xf32>
    %69 = math.exp %68 : vector<4x32xf32>
    %cst_20 = arith.constant 1.000000e+00 : f32
    %70 = vector.broadcast %cst_20 : f32 to vector<4x32xf32>
    %71 = arith.addf %70, %69 : vector<4x32xf32>
    %72 = arith.divf %70, %71 : vector<4x32xf32>
    %73 = vector.extract_strided_slice %66 {offsets = [0, 32], sizes = [4, 32], strides = [1, 1]} : vector<4x128xf32> to vector<4x32xf32>
    %74 = arith.negf %73 : vector<4x32xf32>
    %75 = math.exp %74 : vector<4x32xf32>
    %cst_21 = arith.constant 1.000000e+00 : f32
    %76 = vector.broadcast %cst_21 : f32 to vector<4x32xf32>
    %77 = arith.addf %76, %75 : vector<4x32xf32>
    %78 = arith.divf %76, %77 : vector<4x32xf32>
    %79 = vector.extract_strided_slice %66 {offsets = [0, 64], sizes = [4, 32], strides = [1, 1]} : vector<4x128xf32> to vector<4x32xf32>
    %80 = math.tanh %79 : vector<4x32xf32>
    %81 = vector.extract_strided_slice %66 {offsets = [0, 96], sizes = [4, 32], strides = [1, 1]} : vector<4x128xf32> to vector<4x32xf32>
    %82 = arith.negf %81 : vector<4x32xf32>
    %83 = math.exp %82 : vector<4x32xf32>
    %cst_22 = arith.constant 1.000000e+00 : f32
    %84 = vector.broadcast %cst_22 : f32 to vector<4x32xf32>
    %85 = arith.addf %84, %83 : vector<4x32xf32>
    %86 = arith.divf %84, %85 : vector<4x32xf32>
    %87 = arith.mulf %78, %48 : vector<4x32xf32>
    %88 = arith.mulf %72, %80 : vector<4x32xf32>
    %89 = arith.addf %87, %88 : vector<4x32xf32>
    %90 = math.tanh %89 : vector<4x32xf32>
    %91 = arith.mulf %86, %90 : vector<4x32xf32>
    %92 = vector.extract_strided_slice %91 {offsets = [0, 0], sizes = [2, 32], strides = [1, 1]} : vector<4x32xf32> to vector<2x32xf32>
    %93 = vector.extract_strided_slice %91 {offsets = [2, 0], sizes = [2, 32], strides = [1, 1]} : vector<4x32xf32> to vector<2x32xf32>
    %94 = vector.extract_strided_slice %5 {offsets = [4, 0], sizes = [2, 128], strides = [1, 1]} : vector<16x256xf32> to vector<2x128xf32>
    %95 = vector.extract_strided_slice %5 {offsets = [10, 128], sizes = [2, 128], strides = [1, 1]} : vector<16x256xf32> to vector<2x128xf32>
    %96 = tpu.concatenate %94, %95 in 0 : vector<2x128xf32>, vector<2x128xf32> -> vector<4x128xf32>
    %cst_23 = arith.constant 0.000000e+00 : f32
    %97 = vector.shape_cast %11 : vector<4x1xi1> to vector<4x1xi1>
    %98 = vector.broadcast %97 : vector<4x1xi1> to vector<4x32xi1>
    %99 = vector.broadcast %cst_23 : f32 to vector<4x32xf32>
    %100 = arith.select %98, %91, %99 : vector<4x32xi1>, vector<4x32xf32>
    %cst_24 = arith.constant 0.000000e+00 : f32
    %101 = vector.shape_cast %11 : vector<4x1xi1> to vector<4x1xi1>
    %102 = vector.broadcast %101 : vector<4x1xi1> to vector<4x32xi1>
    %103 = vector.broadcast %cst_24 : f32 to vector<4x32xf32>
    %104 = arith.select %102, %103, %91 : vector<4x32xi1>, vector<4x32xf32>
    %105 = tpu.concatenate %100, %104 in 1 : vector<4x32xf32>, vector<4x32xf32> -> vector<4x64xf32>
    %cst_25 = arith.constant dense<0.000000e+00> : vector<4x128xf32>
    %106 = tpu.matmul %105, %6, %cst_25 {dimension_numbers = #tpu.dot_dimension_numbers<[1], [0], [0], [1], [0, 0, 1, 1], [], []>} : vector<4x64xf32>, vector<64x128xf32>, vector<4x128xf32> -> vector<4x128xf32>
    %107 = arith.addf %96, %106 : vector<4x128xf32>
    %108 = vector.extract_strided_slice %107 {offsets = [0, 0], sizes = [4, 32], strides = [1, 1]} : vector<4x128xf32> to vector<4x32xf32>
    %109 = arith.negf %108 : vector<4x32xf32>
    %110 = math.exp %109 : vector<4x32xf32>
    %cst_26 = arith.constant 1.000000e+00 : f32
    %111 = vector.broadcast %cst_26 : f32 to vector<4x32xf32>
    %112 = arith.addf %111, %110 : vector<4x32xf32>
    %113 = arith.divf %111, %112 : vector<4x32xf32>
    %114 = vector.extract_strided_slice %107 {offsets = [0, 32], sizes = [4, 32], strides = [1, 1]} : vector<4x128xf32> to vector<4x32xf32>
    %115 = arith.negf %114 : vector<4x32xf32>
    %116 = math.exp %115 : vector<4x32xf32>
    %cst_27 = arith.constant 1.000000e+00 : f32
    %117 = vector.broadcast %cst_27 : f32 to vector<4x32xf32>
    %118 = arith.addf %117, %116 : vector<4x32xf32>
    %119 = arith.divf %117, %118 : vector<4x32xf32>
    %120 = vector.extract_strided_slice %107 {offsets = [0, 64], sizes = [4, 32], strides = [1, 1]} : vector<4x128xf32> to vector<4x32xf32>
    %121 = math.tanh %120 : vector<4x32xf32>
    %122 = vector.extract_strided_slice %107 {offsets = [0, 96], sizes = [4, 32], strides = [1, 1]} : vector<4x128xf32> to vector<4x32xf32>
    %123 = arith.negf %122 : vector<4x32xf32>
    %124 = math.exp %123 : vector<4x32xf32>
    %cst_28 = arith.constant 1.000000e+00 : f32
    %125 = vector.broadcast %cst_28 : f32 to vector<4x32xf32>
    %126 = arith.addf %125, %124 : vector<4x32xf32>
    %127 = arith.divf %125, %126 : vector<4x32xf32>
    %128 = arith.mulf %119, %89 : vector<4x32xf32>
    %129 = arith.mulf %113, %121 : vector<4x32xf32>
    %130 = arith.addf %128, %129 : vector<4x32xf32>
    %131 = math.tanh %130 : vector<4x32xf32>
    %132 = arith.mulf %127, %131 : vector<4x32xf32>
    %133 = vector.extract_strided_slice %132 {offsets = [0, 0], sizes = [2, 32], strides = [1, 1]} : vector<4x32xf32> to vector<2x32xf32>
    %134 = vector.extract_strided_slice %132 {offsets = [2, 0], sizes = [2, 32], strides = [1, 1]} : vector<4x32xf32> to vector<2x32xf32>
    %135 = vector.extract_strided_slice %5 {offsets = [6, 0], sizes = [2, 128], strides = [1, 1]} : vector<16x256xf32> to vector<2x128xf32>
    %136 = vector.extract_strided_slice %5 {offsets = [8, 128], sizes = [2, 128], strides = [1, 1]} : vector<16x256xf32> to vector<2x128xf32>
    %137 = tpu.concatenate %135, %136 in 0 : vector<2x128xf32>, vector<2x128xf32> -> vector<4x128xf32>
    %cst_29 = arith.constant 0.000000e+00 : f32
    %138 = vector.shape_cast %11 : vector<4x1xi1> to vector<4x1xi1>
    %139 = vector.broadcast %138 : vector<4x1xi1> to vector<4x32xi1>
    %140 = vector.broadcast %cst_29 : f32 to vector<4x32xf32>
    %141 = arith.select %139, %132, %140 : vector<4x32xi1>, vector<4x32xf32>
    %cst_30 = arith.constant 0.000000e+00 : f32
    %142 = vector.shape_cast %11 : vector<4x1xi1> to vector<4x1xi1>
    %143 = vector.broadcast %142 : vector<4x1xi1> to vector<4x32xi1>
    %144 = vector.broadcast %cst_30 : f32 to vector<4x32xf32>
    %145 = arith.select %143, %144, %132 : vector<4x32xi1>, vector<4x32xf32>
    %146 = tpu.concatenate %141, %145 in 1 : vector<4x32xf32>, vector<4x32xf32> -> vector<4x64xf32>
    %cst_31 = arith.constant dense<0.000000e+00> : vector<4x128xf32>
    %147 = tpu.matmul %146, %6, %cst_31 {dimension_numbers = #tpu.dot_dimension_numbers<[1], [0], [0], [1], [0, 0, 1, 1], [], []>} : vector<4x64xf32>, vector<64x128xf32>, vector<4x128xf32> -> vector<4x128xf32>
    %148 = arith.addf %137, %147 : vector<4x128xf32>
    %149 = vector.extract_strided_slice %148 {offsets = [0, 0], sizes = [4, 32], strides = [1, 1]} : vector<4x128xf32> to vector<4x32xf32>
    %150 = arith.negf %149 : vector<4x32xf32>
    %151 = math.exp %150 : vector<4x32xf32>
    %cst_32 = arith.constant 1.000000e+00 : f32
    %152 = vector.broadcast %cst_32 : f32 to vector<4x32xf32>
    %153 = arith.addf %152, %151 : vector<4x32xf32>
    %154 = arith.divf %152, %153 : vector<4x32xf32>
    %155 = vector.extract_strided_slice %148 {offsets = [0, 32], sizes = [4, 32], strides = [1, 1]} : vector<4x128xf32> to vector<4x32xf32>
    %156 = arith.negf %155 : vector<4x32xf32>
    %157 = math.exp %156 : vector<4x32xf32>
    %cst_33 = arith.constant 1.000000e+00 : f32
    %158 = vector.broadcast %cst_33 : f32 to vector<4x32xf32>
    %159 = arith.addf %158, %157 : vector<4x32xf32>
    %160 = arith.divf %158, %159 : vector<4x32xf32>
    %161 = vector.extract_strided_slice %148 {offsets = [0, 64], sizes = [4, 32], strides = [1, 1]} : vector<4x128xf32> to vector<4x32xf32>
    %162 = math.tanh %161 : vector<4x32xf32>
    %163 = vector.extract_strided_slice %148 {offsets = [0, 96], sizes = [4, 32], strides = [1, 1]} : vector<4x128xf32> to vector<4x32xf32>
    %164 = arith.negf %163 : vector<4x32xf32>
    %165 = math.exp %164 : vector<4x32xf32>
    %cst_34 = arith.constant 1.000000e+00 : f32
    %166 = vector.broadcast %cst_34 : f32 to vector<4x32xf32>
    %167 = arith.addf %166, %165 : vector<4x32xf32>
    %168 = arith.divf %166, %167 : vector<4x32xf32>
    %169 = arith.mulf %160, %130 : vector<4x32xf32>
    %170 = arith.mulf %154, %162 : vector<4x32xf32>
    %171 = arith.addf %169, %170 : vector<4x32xf32>
    %172 = math.tanh %171 : vector<4x32xf32>
    %173 = arith.mulf %168, %172 : vector<4x32xf32>
    %174 = vector.extract_strided_slice %173 {offsets = [0, 0], sizes = [2, 32], strides = [1, 1]} : vector<4x32xf32> to vector<2x32xf32>
    %175 = vector.extract_strided_slice %173 {offsets = [2, 0], sizes = [2, 32], strides = [1, 1]} : vector<4x32xf32> to vector<2x32xf32>
    %176 = vector.extract_strided_slice %5 {offsets = [8, 0], sizes = [2, 128], strides = [1, 1]} : vector<16x256xf32> to vector<2x128xf32>
    %177 = vector.extract_strided_slice %5 {offsets = [6, 128], sizes = [2, 128], strides = [1, 1]} : vector<16x256xf32> to vector<2x128xf32>
    %178 = tpu.concatenate %176, %177 in 0 : vector<2x128xf32>, vector<2x128xf32> -> vector<4x128xf32>
    %cst_35 = arith.constant 0.000000e+00 : f32
    %179 = vector.shape_cast %11 : vector<4x1xi1> to vector<4x1xi1>
    %180 = vector.broadcast %179 : vector<4x1xi1> to vector<4x32xi1>
    %181 = vector.broadcast %cst_35 : f32 to vector<4x32xf32>
    %182 = arith.select %180, %173, %181 : vector<4x32xi1>, vector<4x32xf32>
    %cst_36 = arith.constant 0.000000e+00 : f32
    %183 = vector.shape_cast %11 : vector<4x1xi1> to vector<4x1xi1>
    %184 = vector.broadcast %183 : vector<4x1xi1> to vector<4x32xi1>
    %185 = vector.broadcast %cst_36 : f32 to vector<4x32xf32>
    %186 = arith.select %184, %185, %173 : vector<4x32xi1>, vector<4x32xf32>
    %187 = tpu.concatenate %182, %186 in 1 : vector<4x32xf32>, vector<4x32xf32> -> vector<4x64xf32>
    %cst_37 = arith.constant dense<0.000000e+00> : vector<4x128xf32>
    %188 = tpu.matmul %187, %6, %cst_37 {dimension_numbers = #tpu.dot_dimension_numbers<[1], [0], [0], [1], [0, 0, 1, 1], [], []>} : vector<4x64xf32>, vector<64x128xf32>, vector<4x128xf32> -> vector<4x128xf32>
    %189 = arith.addf %178, %188 : vector<4x128xf32>
    %190 = vector.extract_strided_slice %189 {offsets = [0, 0], sizes = [4, 32], strides = [1, 1]} : vector<4x128xf32> to vector<4x32xf32>
    %191 = arith.negf %190 : vector<4x32xf32>
    %192 = math.exp %191 : vector<4x32xf32>
    %cst_38 = arith.constant 1.000000e+00 : f32
    %193 = vector.broadcast %cst_38 : f32 to vector<4x32xf32>
    %194 = arith.addf %193, %192 : vector<4x32xf32>
    %195 = arith.divf %193, %194 : vector<4x32xf32>
    %196 = vector.extract_strided_slice %189 {offsets = [0, 32], sizes = [4, 32], strides = [1, 1]} : vector<4x128xf32> to vector<4x32xf32>
    %197 = arith.negf %196 : vector<4x32xf32>
    %198 = math.exp %197 : vector<4x32xf32>
    %cst_39 = arith.constant 1.000000e+00 : f32
    %199 = vector.broadcast %cst_39 : f32 to vector<4x32xf32>
    %200 = arith.addf %199, %198 : vector<4x32xf32>
    %201 = arith.divf %199, %200 : vector<4x32xf32>
    %202 = vector.extract_strided_slice %189 {offsets = [0, 64], sizes = [4, 32], strides = [1, 1]} : vector<4x128xf32> to vector<4x32xf32>
    %203 = math.tanh %202 : vector<4x32xf32>
    %204 = vector.extract_strided_slice %189 {offsets = [0, 96], sizes = [4, 32], strides = [1, 1]} : vector<4x128xf32> to vector<4x32xf32>
    %205 = arith.negf %204 : vector<4x32xf32>
    %206 = math.exp %205 : vector<4x32xf32>
    %cst_40 = arith.constant 1.000000e+00 : f32
    %207 = vector.broadcast %cst_40 : f32 to vector<4x32xf32>
    %208 = arith.addf %207, %206 : vector<4x32xf32>
    %209 = arith.divf %207, %208 : vector<4x32xf32>
    %210 = arith.mulf %201, %171 : vector<4x32xf32>
    %211 = arith.mulf %195, %203 : vector<4x32xf32>
    %212 = arith.addf %210, %211 : vector<4x32xf32>
    %213 = math.tanh %212 : vector<4x32xf32>
    %214 = arith.mulf %209, %213 : vector<4x32xf32>
    %215 = vector.extract_strided_slice %214 {offsets = [0, 0], sizes = [2, 32], strides = [1, 1]} : vector<4x32xf32> to vector<2x32xf32>
    %216 = vector.extract_strided_slice %214 {offsets = [2, 0], sizes = [2, 32], strides = [1, 1]} : vector<4x32xf32> to vector<2x32xf32>
    %217 = vector.extract_strided_slice %5 {offsets = [10, 0], sizes = [2, 128], strides = [1, 1]} : vector<16x256xf32> to vector<2x128xf32>
    %218 = vector.extract_strided_slice %5 {offsets = [4, 128], sizes = [2, 128], strides = [1, 1]} : vector<16x256xf32> to vector<2x128xf32>
    %219 = tpu.concatenate %217, %218 in 0 : vector<2x128xf32>, vector<2x128xf32> -> vector<4x128xf32>
    %cst_41 = arith.constant 0.000000e+00 : f32
    %220 = vector.shape_cast %11 : vector<4x1xi1> to vector<4x1xi1>
    %221 = vector.broadcast %220 : vector<4x1xi1> to vector<4x32xi1>
    %222 = vector.broadcast %cst_41 : f32 to vector<4x32xf32>
    %223 = arith.select %221, %214, %222 : vector<4x32xi1>, vector<4x32xf32>
    %cst_42 = arith.constant 0.000000e+00 : f32
    %224 = vector.shape_cast %11 : vector<4x1xi1> to vector<4x1xi1>
    %225 = vector.broadcast %224 : vector<4x1xi1> to vector<4x32xi1>
    %226 = vector.broadcast %cst_42 : f32 to vector<4x32xf32>
    %227 = arith.select %225, %226, %214 : vector<4x32xi1>, vector<4x32xf32>
    %228 = tpu.concatenate %223, %227 in 1 : vector<4x32xf32>, vector<4x32xf32> -> vector<4x64xf32>
    %cst_43 = arith.constant dense<0.000000e+00> : vector<4x128xf32>
    %229 = tpu.matmul %228, %6, %cst_43 {dimension_numbers = #tpu.dot_dimension_numbers<[1], [0], [0], [1], [0, 0, 1, 1], [], []>} : vector<4x64xf32>, vector<64x128xf32>, vector<4x128xf32> -> vector<4x128xf32>
    %230 = arith.addf %219, %229 : vector<4x128xf32>
    %231 = vector.extract_strided_slice %230 {offsets = [0, 0], sizes = [4, 32], strides = [1, 1]} : vector<4x128xf32> to vector<4x32xf32>
    %232 = arith.negf %231 : vector<4x32xf32>
    %233 = math.exp %232 : vector<4x32xf32>
    %cst_44 = arith.constant 1.000000e+00 : f32
    %234 = vector.broadcast %cst_44 : f32 to vector<4x32xf32>
    %235 = arith.addf %234, %233 : vector<4x32xf32>
    %236 = arith.divf %234, %235 : vector<4x32xf32>
    %237 = vector.extract_strided_slice %230 {offsets = [0, 32], sizes = [4, 32], strides = [1, 1]} : vector<4x128xf32> to vector<4x32xf32>
    %238 = arith.negf %237 : vector<4x32xf32>
    %239 = math.exp %238 : vector<4x32xf32>
    %cst_45 = arith.constant 1.000000e+00 : f32
    %240 = vector.broadcast %cst_45 : f32 to vector<4x32xf32>
    %241 = arith.addf %240, %239 : vector<4x32xf32>
    %242 = arith.divf %240, %241 : vector<4x32xf32>
    %243 = vector.extract_strided_slice %230 {offsets = [0, 64], sizes = [4, 32], strides = [1, 1]} : vector<4x128xf32> to vector<4x32xf32>
    %244 = math.tanh %243 : vector<4x32xf32>
    %245 = vector.extract_strided_slice %230 {offsets = [0, 96], sizes = [4, 32], strides = [1, 1]} : vector<4x128xf32> to vector<4x32xf32>
    %246 = arith.negf %245 : vector<4x32xf32>
    %247 = math.exp %246 : vector<4x32xf32>
    %cst_46 = arith.constant 1.000000e+00 : f32
    %248 = vector.broadcast %cst_46 : f32 to vector<4x32xf32>
    %249 = arith.addf %248, %247 : vector<4x32xf32>
    %250 = arith.divf %248, %249 : vector<4x32xf32>
    %251 = arith.mulf %242, %212 : vector<4x32xf32>
    %252 = arith.mulf %236, %244 : vector<4x32xf32>
    %253 = arith.addf %251, %252 : vector<4x32xf32>
    %254 = math.tanh %253 : vector<4x32xf32>
    %255 = arith.mulf %250, %254 : vector<4x32xf32>
    %256 = vector.extract_strided_slice %255 {offsets = [0, 0], sizes = [2, 32], strides = [1, 1]} : vector<4x32xf32> to vector<2x32xf32>
    %257 = vector.extract_strided_slice %255 {offsets = [2, 0], sizes = [2, 32], strides = [1, 1]} : vector<4x32xf32> to vector<2x32xf32>
    %258 = vector.extract_strided_slice %5 {offsets = [12, 0], sizes = [2, 128], strides = [1, 1]} : vector<16x256xf32> to vector<2x128xf32>
    %259 = vector.extract_strided_slice %5 {offsets = [2, 128], sizes = [2, 128], strides = [1, 1]} : vector<16x256xf32> to vector<2x128xf32>
    %260 = tpu.concatenate %258, %259 in 0 : vector<2x128xf32>, vector<2x128xf32> -> vector<4x128xf32>
    %cst_47 = arith.constant 0.000000e+00 : f32
    %261 = vector.shape_cast %11 : vector<4x1xi1> to vector<4x1xi1>
    %262 = vector.broadcast %261 : vector<4x1xi1> to vector<4x32xi1>
    %263 = vector.broadcast %cst_47 : f32 to vector<4x32xf32>
    %264 = arith.select %262, %255, %263 : vector<4x32xi1>, vector<4x32xf32>
    %cst_48 = arith.constant 0.000000e+00 : f32
    %265 = vector.shape_cast %11 : vector<4x1xi1> to vector<4x1xi1>
    %266 = vector.broadcast %265 : vector<4x1xi1> to vector<4x32xi1>
    %267 = vector.broadcast %cst_48 : f32 to vector<4x32xf32>
    %268 = arith.select %266, %267, %255 : vector<4x32xi1>, vector<4x32xf32>
    %269 = tpu.concatenate %264, %268 in 1 : vector<4x32xf32>, vector<4x32xf32> -> vector<4x64xf32>
    %cst_49 = arith.constant dense<0.000000e+00> : vector<4x128xf32>
    %270 = tpu.matmul %269, %6, %cst_49 {dimension_numbers = #tpu.dot_dimension_numbers<[1], [0], [0], [1], [0, 0, 1, 1], [], []>} : vector<4x64xf32>, vector<64x128xf32>, vector<4x128xf32> -> vector<4x128xf32>
    %271 = arith.addf %260, %270 : vector<4x128xf32>
    %272 = vector.extract_strided_slice %271 {offsets = [0, 0], sizes = [4, 32], strides = [1, 1]} : vector<4x128xf32> to vector<4x32xf32>
    %273 = arith.negf %272 : vector<4x32xf32>
    %274 = math.exp %273 : vector<4x32xf32>
    %cst_50 = arith.constant 1.000000e+00 : f32
    %275 = vector.broadcast %cst_50 : f32 to vector<4x32xf32>
    %276 = arith.addf %275, %274 : vector<4x32xf32>
    %277 = arith.divf %275, %276 : vector<4x32xf32>
    %278 = vector.extract_strided_slice %271 {offsets = [0, 32], sizes = [4, 32], strides = [1, 1]} : vector<4x128xf32> to vector<4x32xf32>
    %279 = arith.negf %278 : vector<4x32xf32>
    %280 = math.exp %279 : vector<4x32xf32>
    %cst_51 = arith.constant 1.000000e+00 : f32
    %281 = vector.broadcast %cst_51 : f32 to vector<4x32xf32>
    %282 = arith.addf %281, %280 : vector<4x32xf32>
    %283 = arith.divf %281, %282 : vector<4x32xf32>
    %284 = vector.extract_strided_slice %271 {offsets = [0, 64], sizes = [4, 32], strides = [1, 1]} : vector<4x128xf32> to vector<4x32xf32>
    %285 = math.tanh %284 : vector<4x32xf32>
    %286 = vector.extract_strided_slice %271 {offsets = [0, 96], sizes = [4, 32], strides = [1, 1]} : vector<4x128xf32> to vector<4x32xf32>
    %287 = arith.negf %286 : vector<4x32xf32>
    %288 = math.exp %287 : vector<4x32xf32>
    %cst_52 = arith.constant 1.000000e+00 : f32
    %289 = vector.broadcast %cst_52 : f32 to vector<4x32xf32>
    %290 = arith.addf %289, %288 : vector<4x32xf32>
    %291 = arith.divf %289, %290 : vector<4x32xf32>
    %292 = arith.mulf %283, %253 : vector<4x32xf32>
    %293 = arith.mulf %277, %285 : vector<4x32xf32>
    %294 = arith.addf %292, %293 : vector<4x32xf32>
    %295 = math.tanh %294 : vector<4x32xf32>
    %296 = arith.mulf %291, %295 : vector<4x32xf32>
    %297 = vector.extract_strided_slice %296 {offsets = [0, 0], sizes = [2, 32], strides = [1, 1]} : vector<4x32xf32> to vector<2x32xf32>
    %298 = vector.extract_strided_slice %296 {offsets = [2, 0], sizes = [2, 32], strides = [1, 1]} : vector<4x32xf32> to vector<2x32xf32>
    %299 = vector.extract_strided_slice %5 {offsets = [14, 0], sizes = [2, 128], strides = [1, 1]} : vector<16x256xf32> to vector<2x128xf32>
    %300 = vector.extract_strided_slice %5 {offsets = [0, 128], sizes = [2, 128], strides = [1, 1]} : vector<16x256xf32> to vector<2x128xf32>
    %301 = tpu.concatenate %299, %300 in 0 : vector<2x128xf32>, vector<2x128xf32> -> vector<4x128xf32>
    %cst_53 = arith.constant 0.000000e+00 : f32
    %302 = vector.shape_cast %11 : vector<4x1xi1> to vector<4x1xi1>
    %303 = vector.broadcast %302 : vector<4x1xi1> to vector<4x32xi1>
    %304 = vector.broadcast %cst_53 : f32 to vector<4x32xf32>
    %305 = arith.select %303, %296, %304 : vector<4x32xi1>, vector<4x32xf32>
    %cst_54 = arith.constant 0.000000e+00 : f32
    %306 = vector.shape_cast %11 : vector<4x1xi1> to vector<4x1xi1>
    %307 = vector.broadcast %306 : vector<4x1xi1> to vector<4x32xi1>
    %308 = vector.broadcast %cst_54 : f32 to vector<4x32xf32>
    %309 = arith.select %307, %308, %296 : vector<4x32xi1>, vector<4x32xf32>
    %310 = tpu.concatenate %305, %309 in 1 : vector<4x32xf32>, vector<4x32xf32> -> vector<4x64xf32>
    %cst_55 = arith.constant dense<0.000000e+00> : vector<4x128xf32>
    %311 = tpu.matmul %310, %6, %cst_55 {dimension_numbers = #tpu.dot_dimension_numbers<[1], [0], [0], [1], [0, 0, 1, 1], [], []>} : vector<4x64xf32>, vector<64x128xf32>, vector<4x128xf32> -> vector<4x128xf32>
    %312 = arith.addf %301, %311 : vector<4x128xf32>
    %313 = vector.extract_strided_slice %312 {offsets = [0, 0], sizes = [4, 32], strides = [1, 1]} : vector<4x128xf32> to vector<4x32xf32>
    %314 = arith.negf %313 : vector<4x32xf32>
    %315 = math.exp %314 : vector<4x32xf32>
    %cst_56 = arith.constant 1.000000e+00 : f32
    %316 = vector.broadcast %cst_56 : f32 to vector<4x32xf32>
    %317 = arith.addf %316, %315 : vector<4x32xf32>
    %318 = arith.divf %316, %317 : vector<4x32xf32>
    %319 = vector.extract_strided_slice %312 {offsets = [0, 32], sizes = [4, 32], strides = [1, 1]} : vector<4x128xf32> to vector<4x32xf32>
    %320 = arith.negf %319 : vector<4x32xf32>
    %321 = math.exp %320 : vector<4x32xf32>
    %cst_57 = arith.constant 1.000000e+00 : f32
    %322 = vector.broadcast %cst_57 : f32 to vector<4x32xf32>
    %323 = arith.addf %322, %321 : vector<4x32xf32>
    %324 = arith.divf %322, %323 : vector<4x32xf32>
    %325 = vector.extract_strided_slice %312 {offsets = [0, 64], sizes = [4, 32], strides = [1, 1]} : vector<4x128xf32> to vector<4x32xf32>
    %326 = math.tanh %325 : vector<4x32xf32>
    %327 = vector.extract_strided_slice %312 {offsets = [0, 96], sizes = [4, 32], strides = [1, 1]} : vector<4x128xf32> to vector<4x32xf32>
    %328 = arith.negf %327 : vector<4x32xf32>
    %329 = math.exp %328 : vector<4x32xf32>
    %cst_58 = arith.constant 1.000000e+00 : f32
    %330 = vector.broadcast %cst_58 : f32 to vector<4x32xf32>
    %331 = arith.addf %330, %329 : vector<4x32xf32>
    %332 = arith.divf %330, %331 : vector<4x32xf32>
    %333 = arith.mulf %324, %294 : vector<4x32xf32>
    %334 = arith.mulf %318, %326 : vector<4x32xf32>
    %335 = arith.addf %333, %334 : vector<4x32xf32>
    %336 = math.tanh %335 : vector<4x32xf32>
    %337 = arith.mulf %332, %336 : vector<4x32xf32>
    %338 = vector.extract_strided_slice %337 {offsets = [0, 0], sizes = [2, 32], strides = [1, 1]} : vector<4x32xf32> to vector<2x32xf32>
    %339 = vector.extract_strided_slice %337 {offsets = [2, 0], sizes = [2, 32], strides = [1, 1]} : vector<4x32xf32> to vector<2x32xf32>
    %340 = tpu.concatenate %51, %339 in 1 : vector<2x32xf32>, vector<2x32xf32> -> vector<2x64xf32>
    %341 = tpu.concatenate %92, %298 in 1 : vector<2x32xf32>, vector<2x32xf32> -> vector<2x64xf32>
    %342 = tpu.concatenate %133, %257 in 1 : vector<2x32xf32>, vector<2x32xf32> -> vector<2x64xf32>
    %343 = tpu.concatenate %174, %216 in 1 : vector<2x32xf32>, vector<2x32xf32> -> vector<2x64xf32>
    %344 = tpu.concatenate %215, %175 in 1 : vector<2x32xf32>, vector<2x32xf32> -> vector<2x64xf32>
    %345 = tpu.concatenate %256, %134 in 1 : vector<2x32xf32>, vector<2x32xf32> -> vector<2x64xf32>
    %346 = tpu.concatenate %297, %93 in 1 : vector<2x32xf32>, vector<2x32xf32> -> vector<2x64xf32>
    %347 = tpu.concatenate %338, %52 in 1 : vector<2x32xf32>, vector<2x32xf32> -> vector<2x64xf32>
    %348 = tpu.concatenate %340, %341, %342, %343, %344, %345, %346, %347 in 0 : vector<2x64xf32>, vector<2x64xf32>, vector<2x64xf32>, vector<2x64xf32>, vector<2x64xf32>, vector<2x64xf32>, vector<2x64xf32>, vector<2x64xf32> -> vector<16x64xf32>
    %c0_59 = arith.constant 0 : index
    %c0_60 = arith.constant 0 : index
    %349 = vector.load %arg6[%c0_59, %c0_60] : memref<64x128xf32, #tpu.memory_space<vmem>>, vector<64x128xf32>
    %cst_61 = arith.constant dense<0.000000e+00> : vector<16x128xf32>
    %350 = tpu.matmul %348, %349, %cst_61 {dimension_numbers = #tpu.dot_dimension_numbers<[1], [0], [0], [1], [0, 0, 1, 1], [], []>} : vector<16x64xf32>, vector<64x128xf32>, vector<16x128xf32> -> vector<16x128xf32>
    %c0_62 = arith.constant 0 : index
    %c0_63 = arith.constant 0 : index
    %351 = vector.load %arg7[%c0_62, %c0_63] : memref<1x128xf32, #tpu.memory_space<vmem>>, vector<1x128xf32>
    %352 = vector.broadcast %351 : vector<1x128xf32> to vector<16x128xf32>
    %353 = arith.addf %350, %352 : vector<16x128xf32>
    %c0_64 = arith.constant 0 : index
    %c0_65 = arith.constant 0 : index
    %354 = vector.load %arg8[%c0_64, %c0_65] : memref<16x128xf32, #tpu.memory_space<vmem>>, vector<16x128xf32>
    tpu.vector_store %arg8[%c0_64, %c0_65], %353 {strides = array<i32>} : memref<16x128xf32, #tpu.memory_space<vmem>>, vector<16x128xf32>,
    %c0_66 = arith.constant 0 : index
    %c0_67 = arith.constant 0 : index
    %355 = vector.load %arg9[%c0_66, %c0_67] : memref<4x32xf32, #tpu.memory_space<vmem>>, vector<4x32xf32>
    tpu.vector_store %arg9[%c0_66, %c0_67], %337 {strides = array<i32>} : memref<4x32xf32, #tpu.memory_space<vmem>>, vector<4x32xf32>,
    %c0_68 = arith.constant 0 : index
    %c0_69 = arith.constant 0 : index
    %356 = vector.load %arg10[%c0_68, %c0_69] : memref<4x32xf32, #tpu.memory_space<vmem>>, vector<4x32xf32>
    tpu.vector_store %arg10[%c0_68, %c0_69], %335 {strides = array<i32>} : memref<4x32xf32, #tpu.memory_space<vmem>>, vector<4x32xf32>,
    return
  }
}

module attributes {stable_mosaic.version = 11 : i64} {
  func.func @_bilstm_layer_kernel(%arg0: memref<16x32xf32, #tpu.memory_space<vmem>>, %arg1: memref<4x32xf32, #tpu.memory_space<vmem>>, %arg2: memref<4x32xf32, #tpu.memory_space<vmem>>, %arg3: memref<32x256xf32, #tpu.memory_space<vmem>>, %arg4: memref<64x128xf32, #tpu.memory_space<vmem>>, %arg5: memref<1x256xf32, #tpu.memory_space<vmem>>, %arg6: memref<16x64xf32, #tpu.memory_space<vmem>>, %arg7: memref<4x32xf32, #tpu.memory_space<vmem>>, %arg8: memref<4x32xf32, #tpu.memory_space<vmem>>) attributes {dimension_semantics = [], scalar_prefetch = 0 : i64, scratch_operands = 0 : i64, tpu.core_type = #tpu.core_type<tc>} {
    %c0 = arith.constant 0 : index
    %c0_0 = arith.constant 0 : index
    %0 = vector.load %arg0[%c0, %c0_0] : memref<16x32xf32, #tpu.memory_space<vmem>>, vector<16x32xf32>
    %c0_1 = arith.constant 0 : index
    %c0_2 = arith.constant 0 : index
    %1 = vector.load %arg3[%c0_1, %c0_2] : memref<32x256xf32, #tpu.memory_space<vmem>>, vector<32x256xf32>
    %cst = arith.constant dense<0.000000e+00> : vector<16x256xf32>
    %2 = tpu.matmul %0, %1, %cst {dimension_numbers = #tpu.dot_dimension_numbers<[1], [0], [0], [1], [0, 0, 1, 1], [], []>} : vector<16x32xf32>, vector<32x256xf32>, vector<16x256xf32> -> vector<16x256xf32>
    %c0_3 = arith.constant 0 : index
    %c0_4 = arith.constant 0 : index
    %3 = vector.load %arg5[%c0_3, %c0_4] : memref<1x256xf32, #tpu.memory_space<vmem>>, vector<1x256xf32>
    %4 = vector.broadcast %3 : vector<1x256xf32> to vector<16x256xf32>
    %5 = arith.addf %2, %4 : vector<16x256xf32>
    %c0_5 = arith.constant 0 : index
    %c0_6 = arith.constant 0 : index
    %6 = vector.load %arg4[%c0_5, %c0_6] : memref<64x128xf32, #tpu.memory_space<vmem>>, vector<64x128xf32>
    %c0_7 = arith.constant 0 : index
    %c0_8 = arith.constant 0 : index
    %7 = vector.load %arg1[%c0_7, %c0_8] : memref<4x32xf32, #tpu.memory_space<vmem>>, vector<4x32xf32>
    %c0_9 = arith.constant 0 : index
    %c0_10 = arith.constant 0 : index
    %8 = vector.load %arg2[%c0_9, %c0_10] : memref<4x32xf32, #tpu.memory_space<vmem>>, vector<4x32xf32>
    %9 = tpu.iota {dimensions = array<i32: 0>} : vector<4x1xi32>
    %c2_i32 = arith.constant 2 : i32
    %10 = vector.broadcast %c2_i32 : i32 to vector<4x1xi32>
    %11 = arith.cmpi slt, %9, %10 : vector<4x1xi32>
    %12 = vector.extract_strided_slice %5 {offsets = [0, 0], sizes = [2, 128], strides = [1, 1]} : vector<16x256xf32> to vector<2x128xf32>
    %13 = vector.extract_strided_slice %5 {offsets = [14, 128], sizes = [2, 128], strides = [1, 1]} : vector<16x256xf32> to vector<2x128xf32>
    %14 = tpu.concatenate %12, %13 in 0 : vector<2x128xf32>, vector<2x128xf32> -> vector<4x128xf32>
    %cst_11 = arith.constant 0.000000e+00 : f32
    %15 = vector.shape_cast %11 : vector<4x1xi1> to vector<4x1xi1>
    %16 = vector.broadcast %15 : vector<4x1xi1> to vector<4x32xi1>
    %17 = vector.broadcast %cst_11 : f32 to vector<4x32xf32>
    %18 = arith.select %16, %7, %17 : vector<4x32xi1>, vector<4x32xf32>
    %cst_12 = arith.constant 0.000000e+00 : f32
    %19 = vector.shape_cast %11 : vector<4x1xi1> to vector<4x1xi1>
    %20 = vector.broadcast %19 : vector<4x1xi1> to vector<4x32xi1>
    %21 = vector.broadcast %cst_12 : f32 to vector<4x32xf32>
    %22 = arith.select %20, %21, %7 : vector<4x32xi1>, vector<4x32xf32>
    %23 = tpu.concatenate %18, %22 in 1 : vector<4x32xf32>, vector<4x32xf32> -> vector<4x64xf32>
    %cst_13 = arith.constant dense<0.000000e+00> : vector<4x128xf32>
    %24 = tpu.matmul %23, %6, %cst_13 {dimension_numbers = #tpu.dot_dimension_numbers<[1], [0], [0], [1], [0, 0, 1, 1], [], []>} : vector<4x64xf32>, vector<64x128xf32>, vector<4x128xf32> -> vector<4x128xf32>
    %25 = arith.addf %14, %24 : vector<4x128xf32>
    %26 = vector.extract_strided_slice %25 {offsets = [0, 0], sizes = [4, 32], strides = [1, 1]} : vector<4x128xf32> to vector<4x32xf32>
    %27 = arith.negf %26 : vector<4x32xf32>
    %28 = math.exp %27 : vector<4x32xf32>
    %cst_14 = arith.constant 1.000000e+00 : f32
    %29 = vector.broadcast %cst_14 : f32 to vector<4x32xf32>
    %30 = arith.addf %29, %28 : vector<4x32xf32>
    %31 = arith.divf %29, %30 : vector<4x32xf32>
    %32 = vector.extract_strided_slice %25 {offsets = [0, 32], sizes = [4, 32], strides = [1, 1]} : vector<4x128xf32> to vector<4x32xf32>
    %33 = arith.negf %32 : vector<4x32xf32>
    %34 = math.exp %33 : vector<4x32xf32>
    %cst_15 = arith.constant 1.000000e+00 : f32
    %35 = vector.broadcast %cst_15 : f32 to vector<4x32xf32>
    %36 = arith.addf %35, %34 : vector<4x32xf32>
    %37 = arith.divf %35, %36 : vector<4x32xf32>
    %38 = vector.extract_strided_slice %25 {offsets = [0, 64], sizes = [4, 32], strides = [1, 1]} : vector<4x128xf32> to vector<4x32xf32>
    %39 = math.tanh %38 : vector<4x32xf32>
    %40 = vector.extract_strided_slice %25 {offsets = [0, 96], sizes = [4, 32], strides = [1, 1]} : vector<4x128xf32> to vector<4x32xf32>
    %41 = arith.negf %40 : vector<4x32xf32>
    %42 = math.exp %41 : vector<4x32xf32>
    %cst_16 = arith.constant 1.000000e+00 : f32
    %43 = vector.broadcast %cst_16 : f32 to vector<4x32xf32>
    %44 = arith.addf %43, %42 : vector<4x32xf32>
    %45 = arith.divf %43, %44 : vector<4x32xf32>
    %46 = arith.mulf %37, %8 : vector<4x32xf32>
    %47 = arith.mulf %31, %39 : vector<4x32xf32>
    %48 = arith.addf %46, %47 : vector<4x32xf32>
    %49 = math.tanh %48 : vector<4x32xf32>
    %50 = arith.mulf %45, %49 : vector<4x32xf32>
    %51 = vector.extract_strided_slice %50 {offsets = [0, 0], sizes = [2, 32], strides = [1, 1]} : vector<4x32xf32> to vector<2x32xf32>
    %52 = vector.extract_strided_slice %50 {offsets = [2, 0], sizes = [2, 32], strides = [1, 1]} : vector<4x32xf32> to vector<2x32xf32>
    %53 = vector.extract_strided_slice %5 {offsets = [2, 0], sizes = [2, 128], strides = [1, 1]} : vector<16x256xf32> to vector<2x128xf32>
    %54 = vector.extract_strided_slice %5 {offsets = [12, 128], sizes = [2, 128], strides = [1, 1]} : vector<16x256xf32> to vector<2x128xf32>
    %55 = tpu.concatenate %53, %54 in 0 : vector<2x128xf32>, vector<2x128xf32> -> vector<4x128xf32>
    %cst_17 = arith.constant 0.000000e+00 : f32
    %56 = vector.shape_cast %11 : vector<4x1xi1> to vector<4x1xi1>
    %57 = vector.broadcast %56 : vector<4x1xi1> to vector<4x32xi1>
    %58 = vector.broadcast %cst_17 : f32 to vector<4x32xf32>
    %59 = arith.select %57, %50, %58 : vector<4x32xi1>, vector<4x32xf32>
    %cst_18 = arith.constant 0.000000e+00 : f32
    %60 = vector.shape_cast %11 : vector<4x1xi1> to vector<4x1xi1>
    %61 = vector.broadcast %60 : vector<4x1xi1> to vector<4x32xi1>
    %62 = vector.broadcast %cst_18 : f32 to vector<4x32xf32>
    %63 = arith.select %61, %62, %50 : vector<4x32xi1>, vector<4x32xf32>
    %64 = tpu.concatenate %59, %63 in 1 : vector<4x32xf32>, vector<4x32xf32> -> vector<4x64xf32>
    %cst_19 = arith.constant dense<0.000000e+00> : vector<4x128xf32>
    %65 = tpu.matmul %64, %6, %cst_19 {dimension_numbers = #tpu.dot_dimension_numbers<[1], [0], [0], [1], [0, 0, 1, 1], [], []>} : vector<4x64xf32>, vector<64x128xf32>, vector<4x128xf32> -> vector<4x128xf32>
    %66 = arith.addf %55, %65 : vector<4x128xf32>
    %67 = vector.extract_strided_slice %66 {offsets = [0, 0], sizes = [4, 32], strides = [1, 1]} : vector<4x128xf32> to vector<4x32xf32>
    %68 = arith.negf %67 : vector<4x32xf32>
    %69 = math.exp %68 : vector<4x32xf32>
    %cst_20 = arith.constant 1.000000e+00 : f32
    %70 = vector.broadcast %cst_20 : f32 to vector<4x32xf32>
    %71 = arith.addf %70, %69 : vector<4x32xf32>
    %72 = arith.divf %70, %71 : vector<4x32xf32>
    %73 = vector.extract_strided_slice %66 {offsets = [0, 32], sizes = [4, 32], strides = [1, 1]} : vector<4x128xf32> to vector<4x32xf32>
    %74 = arith.negf %73 : vector<4x32xf32>
    %75 = math.exp %74 : vector<4x32xf32>
    %cst_21 = arith.constant 1.000000e+00 : f32
    %76 = vector.broadcast %cst_21 : f32 to vector<4x32xf32>
    %77 = arith.addf %76, %75 : vector<4x32xf32>
    %78 = arith.divf %76, %77 : vector<4x32xf32>
    %79 = vector.extract_strided_slice %66 {offsets = [0, 64], sizes = [4, 32], strides = [1, 1]} : vector<4x128xf32> to vector<4x32xf32>
    %80 = math.tanh %79 : vector<4x32xf32>
    %81 = vector.extract_strided_slice %66 {offsets = [0, 96], sizes = [4, 32], strides = [1, 1]} : vector<4x128xf32> to vector<4x32xf32>
    %82 = arith.negf %81 : vector<4x32xf32>
    %83 = math.exp %82 : vector<4x32xf32>
    %cst_22 = arith.constant 1.000000e+00 : f32
    %84 = vector.broadcast %cst_22 : f32 to vector<4x32xf32>
    %85 = arith.addf %84, %83 : vector<4x32xf32>
    %86 = arith.divf %84, %85 : vector<4x32xf32>
    %87 = arith.mulf %78, %48 : vector<4x32xf32>
    %88 = arith.mulf %72, %80 : vector<4x32xf32>
    %89 = arith.addf %87, %88 : vector<4x32xf32>
    %90 = math.tanh %89 : vector<4x32xf32>
    %91 = arith.mulf %86, %90 : vector<4x32xf32>
    %92 = vector.extract_strided_slice %91 {offsets = [0, 0], sizes = [2, 32], strides = [1, 1]} : vector<4x32xf32> to vector<2x32xf32>
    %93 = vector.extract_strided_slice %91 {offsets = [2, 0], sizes = [2, 32], strides = [1, 1]} : vector<4x32xf32> to vector<2x32xf32>
    %94 = vector.extract_strided_slice %5 {offsets = [4, 0], sizes = [2, 128], strides = [1, 1]} : vector<16x256xf32> to vector<2x128xf32>
    %95 = vector.extract_strided_slice %5 {offsets = [10, 128], sizes = [2, 128], strides = [1, 1]} : vector<16x256xf32> to vector<2x128xf32>
    %96 = tpu.concatenate %94, %95 in 0 : vector<2x128xf32>, vector<2x128xf32> -> vector<4x128xf32>
    %cst_23 = arith.constant 0.000000e+00 : f32
    %97 = vector.shape_cast %11 : vector<4x1xi1> to vector<4x1xi1>
    %98 = vector.broadcast %97 : vector<4x1xi1> to vector<4x32xi1>
    %99 = vector.broadcast %cst_23 : f32 to vector<4x32xf32>
    %100 = arith.select %98, %91, %99 : vector<4x32xi1>, vector<4x32xf32>
    %cst_24 = arith.constant 0.000000e+00 : f32
    %101 = vector.shape_cast %11 : vector<4x1xi1> to vector<4x1xi1>
    %102 = vector.broadcast %101 : vector<4x1xi1> to vector<4x32xi1>
    %103 = vector.broadcast %cst_24 : f32 to vector<4x32xf32>
    %104 = arith.select %102, %103, %91 : vector<4x32xi1>, vector<4x32xf32>
    %105 = tpu.concatenate %100, %104 in 1 : vector<4x32xf32>, vector<4x32xf32> -> vector<4x64xf32>
    %cst_25 = arith.constant dense<0.000000e+00> : vector<4x128xf32>
    %106 = tpu.matmul %105, %6, %cst_25 {dimension_numbers = #tpu.dot_dimension_numbers<[1], [0], [0], [1], [0, 0, 1, 1], [], []>} : vector<4x64xf32>, vector<64x128xf32>, vector<4x128xf32> -> vector<4x128xf32>
    %107 = arith.addf %96, %106 : vector<4x128xf32>
    %108 = vector.extract_strided_slice %107 {offsets = [0, 0], sizes = [4, 32], strides = [1, 1]} : vector<4x128xf32> to vector<4x32xf32>
    %109 = arith.negf %108 : vector<4x32xf32>
    %110 = math.exp %109 : vector<4x32xf32>
    %cst_26 = arith.constant 1.000000e+00 : f32
    %111 = vector.broadcast %cst_26 : f32 to vector<4x32xf32>
    %112 = arith.addf %111, %110 : vector<4x32xf32>
    %113 = arith.divf %111, %112 : vector<4x32xf32>
    %114 = vector.extract_strided_slice %107 {offsets = [0, 32], sizes = [4, 32], strides = [1, 1]} : vector<4x128xf32> to vector<4x32xf32>
    %115 = arith.negf %114 : vector<4x32xf32>
    %116 = math.exp %115 : vector<4x32xf32>
    %cst_27 = arith.constant 1.000000e+00 : f32
    %117 = vector.broadcast %cst_27 : f32 to vector<4x32xf32>
    %118 = arith.addf %117, %116 : vector<4x32xf32>
    %119 = arith.divf %117, %118 : vector<4x32xf32>
    %120 = vector.extract_strided_slice %107 {offsets = [0, 64], sizes = [4, 32], strides = [1, 1]} : vector<4x128xf32> to vector<4x32xf32>
    %121 = math.tanh %120 : vector<4x32xf32>
    %122 = vector.extract_strided_slice %107 {offsets = [0, 96], sizes = [4, 32], strides = [1, 1]} : vector<4x128xf32> to vector<4x32xf32>
    %123 = arith.negf %122 : vector<4x32xf32>
    %124 = math.exp %123 : vector<4x32xf32>
    %cst_28 = arith.constant 1.000000e+00 : f32
    %125 = vector.broadcast %cst_28 : f32 to vector<4x32xf32>
    %126 = arith.addf %125, %124 : vector<4x32xf32>
    %127 = arith.divf %125, %126 : vector<4x32xf32>
    %128 = arith.mulf %119, %89 : vector<4x32xf32>
    %129 = arith.mulf %113, %121 : vector<4x32xf32>
    %130 = arith.addf %128, %129 : vector<4x32xf32>
    %131 = math.tanh %130 : vector<4x32xf32>
    %132 = arith.mulf %127, %131 : vector<4x32xf32>
    %133 = vector.extract_strided_slice %132 {offsets = [0, 0], sizes = [2, 32], strides = [1, 1]} : vector<4x32xf32> to vector<2x32xf32>
    %134 = vector.extract_strided_slice %132 {offsets = [2, 0], sizes = [2, 32], strides = [1, 1]} : vector<4x32xf32> to vector<2x32xf32>
    %135 = vector.extract_strided_slice %5 {offsets = [6, 0], sizes = [2, 128], strides = [1, 1]} : vector<16x256xf32> to vector<2x128xf32>
    %136 = vector.extract_strided_slice %5 {offsets = [8, 128], sizes = [2, 128], strides = [1, 1]} : vector<16x256xf32> to vector<2x128xf32>
    %137 = tpu.concatenate %135, %136 in 0 : vector<2x128xf32>, vector<2x128xf32> -> vector<4x128xf32>
    %cst_29 = arith.constant 0.000000e+00 : f32
    %138 = vector.shape_cast %11 : vector<4x1xi1> to vector<4x1xi1>
    %139 = vector.broadcast %138 : vector<4x1xi1> to vector<4x32xi1>
    %140 = vector.broadcast %cst_29 : f32 to vector<4x32xf32>
    %141 = arith.select %139, %132, %140 : vector<4x32xi1>, vector<4x32xf32>
    %cst_30 = arith.constant 0.000000e+00 : f32
    %142 = vector.shape_cast %11 : vector<4x1xi1> to vector<4x1xi1>
    %143 = vector.broadcast %142 : vector<4x1xi1> to vector<4x32xi1>
    %144 = vector.broadcast %cst_30 : f32 to vector<4x32xf32>
    %145 = arith.select %143, %144, %132 : vector<4x32xi1>, vector<4x32xf32>
    %146 = tpu.concatenate %141, %145 in 1 : vector<4x32xf32>, vector<4x32xf32> -> vector<4x64xf32>
    %cst_31 = arith.constant dense<0.000000e+00> : vector<4x128xf32>
    %147 = tpu.matmul %146, %6, %cst_31 {dimension_numbers = #tpu.dot_dimension_numbers<[1], [0], [0], [1], [0, 0, 1, 1], [], []>} : vector<4x64xf32>, vector<64x128xf32>, vector<4x128xf32> -> vector<4x128xf32>
    %148 = arith.addf %137, %147 : vector<4x128xf32>
    %149 = vector.extract_strided_slice %148 {offsets = [0, 0], sizes = [4, 32], strides = [1, 1]} : vector<4x128xf32> to vector<4x32xf32>
    %150 = arith.negf %149 : vector<4x32xf32>
    %151 = math.exp %150 : vector<4x32xf32>
    %cst_32 = arith.constant 1.000000e+00 : f32
    %152 = vector.broadcast %cst_32 : f32 to vector<4x32xf32>
    %153 = arith.addf %152, %151 : vector<4x32xf32>
    %154 = arith.divf %152, %153 : vector<4x32xf32>
    %155 = vector.extract_strided_slice %148 {offsets = [0, 32], sizes = [4, 32], strides = [1, 1]} : vector<4x128xf32> to vector<4x32xf32>
    %156 = arith.negf %155 : vector<4x32xf32>
    %157 = math.exp %156 : vector<4x32xf32>
    %cst_33 = arith.constant 1.000000e+00 : f32
    %158 = vector.broadcast %cst_33 : f32 to vector<4x32xf32>
    %159 = arith.addf %158, %157 : vector<4x32xf32>
    %160 = arith.divf %158, %159 : vector<4x32xf32>
    %161 = vector.extract_strided_slice %148 {offsets = [0, 64], sizes = [4, 32], strides = [1, 1]} : vector<4x128xf32> to vector<4x32xf32>
    %162 = math.tanh %161 : vector<4x32xf32>
    %163 = vector.extract_strided_slice %148 {offsets = [0, 96], sizes = [4, 32], strides = [1, 1]} : vector<4x128xf32> to vector<4x32xf32>
    %164 = arith.negf %163 : vector<4x32xf32>
    %165 = math.exp %164 : vector<4x32xf32>
    %cst_34 = arith.constant 1.000000e+00 : f32
    %166 = vector.broadcast %cst_34 : f32 to vector<4x32xf32>
    %167 = arith.addf %166, %165 : vector<4x32xf32>
    %168 = arith.divf %166, %167 : vector<4x32xf32>
    %169 = arith.mulf %160, %130 : vector<4x32xf32>
    %170 = arith.mulf %154, %162 : vector<4x32xf32>
    %171 = arith.addf %169, %170 : vector<4x32xf32>
    %172 = math.tanh %171 : vector<4x32xf32>
    %173 = arith.mulf %168, %172 : vector<4x32xf32>
    %174 = vector.extract_strided_slice %173 {offsets = [0, 0], sizes = [2, 32], strides = [1, 1]} : vector<4x32xf32> to vector<2x32xf32>
    %175 = vector.extract_strided_slice %173 {offsets = [2, 0], sizes = [2, 32], strides = [1, 1]} : vector<4x32xf32> to vector<2x32xf32>
    %176 = vector.extract_strided_slice %5 {offsets = [8, 0], sizes = [2, 128], strides = [1, 1]} : vector<16x256xf32> to vector<2x128xf32>
    %177 = vector.extract_strided_slice %5 {offsets = [6, 128], sizes = [2, 128], strides = [1, 1]} : vector<16x256xf32> to vector<2x128xf32>
    %178 = tpu.concatenate %176, %177 in 0 : vector<2x128xf32>, vector<2x128xf32> -> vector<4x128xf32>
    %cst_35 = arith.constant 0.000000e+00 : f32
    %179 = vector.shape_cast %11 : vector<4x1xi1> to vector<4x1xi1>
    %180 = vector.broadcast %179 : vector<4x1xi1> to vector<4x32xi1>
    %181 = vector.broadcast %cst_35 : f32 to vector<4x32xf32>
    %182 = arith.select %180, %173, %181 : vector<4x32xi1>, vector<4x32xf32>
    %cst_36 = arith.constant 0.000000e+00 : f32
    %183 = vector.shape_cast %11 : vector<4x1xi1> to vector<4x1xi1>
    %184 = vector.broadcast %183 : vector<4x1xi1> to vector<4x32xi1>
    %185 = vector.broadcast %cst_36 : f32 to vector<4x32xf32>
    %186 = arith.select %184, %185, %173 : vector<4x32xi1>, vector<4x32xf32>
    %187 = tpu.concatenate %182, %186 in 1 : vector<4x32xf32>, vector<4x32xf32> -> vector<4x64xf32>
    %cst_37 = arith.constant dense<0.000000e+00> : vector<4x128xf32>
    %188 = tpu.matmul %187, %6, %cst_37 {dimension_numbers = #tpu.dot_dimension_numbers<[1], [0], [0], [1], [0, 0, 1, 1], [], []>} : vector<4x64xf32>, vector<64x128xf32>, vector<4x128xf32> -> vector<4x128xf32>
    %189 = arith.addf %178, %188 : vector<4x128xf32>
    %190 = vector.extract_strided_slice %189 {offsets = [0, 0], sizes = [4, 32], strides = [1, 1]} : vector<4x128xf32> to vector<4x32xf32>
    %191 = arith.negf %190 : vector<4x32xf32>
    %192 = math.exp %191 : vector<4x32xf32>
    %cst_38 = arith.constant 1.000000e+00 : f32
    %193 = vector.broadcast %cst_38 : f32 to vector<4x32xf32>
    %194 = arith.addf %193, %192 : vector<4x32xf32>
    %195 = arith.divf %193, %194 : vector<4x32xf32>
    %196 = vector.extract_strided_slice %189 {offsets = [0, 32], sizes = [4, 32], strides = [1, 1]} : vector<4x128xf32> to vector<4x32xf32>
    %197 = arith.negf %196 : vector<4x32xf32>
    %198 = math.exp %197 : vector<4x32xf32>
    %cst_39 = arith.constant 1.000000e+00 : f32
    %199 = vector.broadcast %cst_39 : f32 to vector<4x32xf32>
    %200 = arith.addf %199, %198 : vector<4x32xf32>
    %201 = arith.divf %199, %200 : vector<4x32xf32>
    %202 = vector.extract_strided_slice %189 {offsets = [0, 64], sizes = [4, 32], strides = [1, 1]} : vector<4x128xf32> to vector<4x32xf32>
    %203 = math.tanh %202 : vector<4x32xf32>
    %204 = vector.extract_strided_slice %189 {offsets = [0, 96], sizes = [4, 32], strides = [1, 1]} : vector<4x128xf32> to vector<4x32xf32>
    %205 = arith.negf %204 : vector<4x32xf32>
    %206 = math.exp %205 : vector<4x32xf32>
    %cst_40 = arith.constant 1.000000e+00 : f32
    %207 = vector.broadcast %cst_40 : f32 to vector<4x32xf32>
    %208 = arith.addf %207, %206 : vector<4x32xf32>
    %209 = arith.divf %207, %208 : vector<4x32xf32>
    %210 = arith.mulf %201, %171 : vector<4x32xf32>
    %211 = arith.mulf %195, %203 : vector<4x32xf32>
    %212 = arith.addf %210, %211 : vector<4x32xf32>
    %213 = math.tanh %212 : vector<4x32xf32>
    %214 = arith.mulf %209, %213 : vector<4x32xf32>
    %215 = vector.extract_strided_slice %214 {offsets = [0, 0], sizes = [2, 32], strides = [1, 1]} : vector<4x32xf32> to vector<2x32xf32>
    %216 = vector.extract_strided_slice %214 {offsets = [2, 0], sizes = [2, 32], strides = [1, 1]} : vector<4x32xf32> to vector<2x32xf32>
    %217 = vector.extract_strided_slice %5 {offsets = [10, 0], sizes = [2, 128], strides = [1, 1]} : vector<16x256xf32> to vector<2x128xf32>
    %218 = vector.extract_strided_slice %5 {offsets = [4, 128], sizes = [2, 128], strides = [1, 1]} : vector<16x256xf32> to vector<2x128xf32>
    %219 = tpu.concatenate %217, %218 in 0 : vector<2x128xf32>, vector<2x128xf32> -> vector<4x128xf32>
    %cst_41 = arith.constant 0.000000e+00 : f32
    %220 = vector.shape_cast %11 : vector<4x1xi1> to vector<4x1xi1>
    %221 = vector.broadcast %220 : vector<4x1xi1> to vector<4x32xi1>
    %222 = vector.broadcast %cst_41 : f32 to vector<4x32xf32>
    %223 = arith.select %221, %214, %222 : vector<4x32xi1>, vector<4x32xf32>
    %cst_42 = arith.constant 0.000000e+00 : f32
    %224 = vector.shape_cast %11 : vector<4x1xi1> to vector<4x1xi1>
    %225 = vector.broadcast %224 : vector<4x1xi1> to vector<4x32xi1>
    %226 = vector.broadcast %cst_42 : f32 to vector<4x32xf32>
    %227 = arith.select %225, %226, %214 : vector<4x32xi1>, vector<4x32xf32>
    %228 = tpu.concatenate %223, %227 in 1 : vector<4x32xf32>, vector<4x32xf32> -> vector<4x64xf32>
    %cst_43 = arith.constant dense<0.000000e+00> : vector<4x128xf32>
    %229 = tpu.matmul %228, %6, %cst_43 {dimension_numbers = #tpu.dot_dimension_numbers<[1], [0], [0], [1], [0, 0, 1, 1], [], []>} : vector<4x64xf32>, vector<64x128xf32>, vector<4x128xf32> -> vector<4x128xf32>
    %230 = arith.addf %219, %229 : vector<4x128xf32>
    %231 = vector.extract_strided_slice %230 {offsets = [0, 0], sizes = [4, 32], strides = [1, 1]} : vector<4x128xf32> to vector<4x32xf32>
    %232 = arith.negf %231 : vector<4x32xf32>
    %233 = math.exp %232 : vector<4x32xf32>
    %cst_44 = arith.constant 1.000000e+00 : f32
    %234 = vector.broadcast %cst_44 : f32 to vector<4x32xf32>
    %235 = arith.addf %234, %233 : vector<4x32xf32>
    %236 = arith.divf %234, %235 : vector<4x32xf32>
    %237 = vector.extract_strided_slice %230 {offsets = [0, 32], sizes = [4, 32], strides = [1, 1]} : vector<4x128xf32> to vector<4x32xf32>
    %238 = arith.negf %237 : vector<4x32xf32>
    %239 = math.exp %238 : vector<4x32xf32>
    %cst_45 = arith.constant 1.000000e+00 : f32
    %240 = vector.broadcast %cst_45 : f32 to vector<4x32xf32>
    %241 = arith.addf %240, %239 : vector<4x32xf32>
    %242 = arith.divf %240, %241 : vector<4x32xf32>
    %243 = vector.extract_strided_slice %230 {offsets = [0, 64], sizes = [4, 32], strides = [1, 1]} : vector<4x128xf32> to vector<4x32xf32>
    %244 = math.tanh %243 : vector<4x32xf32>
    %245 = vector.extract_strided_slice %230 {offsets = [0, 96], sizes = [4, 32], strides = [1, 1]} : vector<4x128xf32> to vector<4x32xf32>
    %246 = arith.negf %245 : vector<4x32xf32>
    %247 = math.exp %246 : vector<4x32xf32>
    %cst_46 = arith.constant 1.000000e+00 : f32
    %248 = vector.broadcast %cst_46 : f32 to vector<4x32xf32>
    %249 = arith.addf %248, %247 : vector<4x32xf32>
    %250 = arith.divf %248, %249 : vector<4x32xf32>
    %251 = arith.mulf %242, %212 : vector<4x32xf32>
    %252 = arith.mulf %236, %244 : vector<4x32xf32>
    %253 = arith.addf %251, %252 : vector<4x32xf32>
    %254 = math.tanh %253 : vector<4x32xf32>
    %255 = arith.mulf %250, %254 : vector<4x32xf32>
    %256 = vector.extract_strided_slice %255 {offsets = [0, 0], sizes = [2, 32], strides = [1, 1]} : vector<4x32xf32> to vector<2x32xf32>
    %257 = vector.extract_strided_slice %255 {offsets = [2, 0], sizes = [2, 32], strides = [1, 1]} : vector<4x32xf32> to vector<2x32xf32>
    %258 = vector.extract_strided_slice %5 {offsets = [12, 0], sizes = [2, 128], strides = [1, 1]} : vector<16x256xf32> to vector<2x128xf32>
    %259 = vector.extract_strided_slice %5 {offsets = [2, 128], sizes = [2, 128], strides = [1, 1]} : vector<16x256xf32> to vector<2x128xf32>
    %260 = tpu.concatenate %258, %259 in 0 : vector<2x128xf32>, vector<2x128xf32> -> vector<4x128xf32>
    %cst_47 = arith.constant 0.000000e+00 : f32
    %261 = vector.shape_cast %11 : vector<4x1xi1> to vector<4x1xi1>
    %262 = vector.broadcast %261 : vector<4x1xi1> to vector<4x32xi1>
    %263 = vector.broadcast %cst_47 : f32 to vector<4x32xf32>
    %264 = arith.select %262, %255, %263 : vector<4x32xi1>, vector<4x32xf32>
    %cst_48 = arith.constant 0.000000e+00 : f32
    %265 = vector.shape_cast %11 : vector<4x1xi1> to vector<4x1xi1>
    %266 = vector.broadcast %265 : vector<4x1xi1> to vector<4x32xi1>
    %267 = vector.broadcast %cst_48 : f32 to vector<4x32xf32>
    %268 = arith.select %266, %267, %255 : vector<4x32xi1>, vector<4x32xf32>
    %269 = tpu.concatenate %264, %268 in 1 : vector<4x32xf32>, vector<4x32xf32> -> vector<4x64xf32>
    %cst_49 = arith.constant dense<0.000000e+00> : vector<4x128xf32>
    %270 = tpu.matmul %269, %6, %cst_49 {dimension_numbers = #tpu.dot_dimension_numbers<[1], [0], [0], [1], [0, 0, 1, 1], [], []>} : vector<4x64xf32>, vector<64x128xf32>, vector<4x128xf32> -> vector<4x128xf32>
    %271 = arith.addf %260, %270 : vector<4x128xf32>
    %272 = vector.extract_strided_slice %271 {offsets = [0, 0], sizes = [4, 32], strides = [1, 1]} : vector<4x128xf32> to vector<4x32xf32>
    %273 = arith.negf %272 : vector<4x32xf32>
    %274 = math.exp %273 : vector<4x32xf32>
    %cst_50 = arith.constant 1.000000e+00 : f32
    %275 = vector.broadcast %cst_50 : f32 to vector<4x32xf32>
    %276 = arith.addf %275, %274 : vector<4x32xf32>
    %277 = arith.divf %275, %276 : vector<4x32xf32>
    %278 = vector.extract_strided_slice %271 {offsets = [0, 32], sizes = [4, 32], strides = [1, 1]} : vector<4x128xf32> to vector<4x32xf32>
    %279 = arith.negf %278 : vector<4x32xf32>
    %280 = math.exp %279 : vector<4x32xf32>
    %cst_51 = arith.constant 1.000000e+00 : f32
    %281 = vector.broadcast %cst_51 : f32 to vector<4x32xf32>
    %282 = arith.addf %281, %280 : vector<4x32xf32>
    %283 = arith.divf %281, %282 : vector<4x32xf32>
    %284 = vector.extract_strided_slice %271 {offsets = [0, 64], sizes = [4, 32], strides = [1, 1]} : vector<4x128xf32> to vector<4x32xf32>
    %285 = math.tanh %284 : vector<4x32xf32>
    %286 = vector.extract_strided_slice %271 {offsets = [0, 96], sizes = [4, 32], strides = [1, 1]} : vector<4x128xf32> to vector<4x32xf32>
    %287 = arith.negf %286 : vector<4x32xf32>
    %288 = math.exp %287 : vector<4x32xf32>
    %cst_52 = arith.constant 1.000000e+00 : f32
    %289 = vector.broadcast %cst_52 : f32 to vector<4x32xf32>
    %290 = arith.addf %289, %288 : vector<4x32xf32>
    %291 = arith.divf %289, %290 : vector<4x32xf32>
    %292 = arith.mulf %283, %253 : vector<4x32xf32>
    %293 = arith.mulf %277, %285 : vector<4x32xf32>
    %294 = arith.addf %292, %293 : vector<4x32xf32>
    %295 = math.tanh %294 : vector<4x32xf32>
    %296 = arith.mulf %291, %295 : vector<4x32xf32>
    %297 = vector.extract_strided_slice %296 {offsets = [0, 0], sizes = [2, 32], strides = [1, 1]} : vector<4x32xf32> to vector<2x32xf32>
    %298 = vector.extract_strided_slice %296 {offsets = [2, 0], sizes = [2, 32], strides = [1, 1]} : vector<4x32xf32> to vector<2x32xf32>
    %299 = vector.extract_strided_slice %5 {offsets = [14, 0], sizes = [2, 128], strides = [1, 1]} : vector<16x256xf32> to vector<2x128xf32>
    %300 = vector.extract_strided_slice %5 {offsets = [0, 128], sizes = [2, 128], strides = [1, 1]} : vector<16x256xf32> to vector<2x128xf32>
    %301 = tpu.concatenate %299, %300 in 0 : vector<2x128xf32>, vector<2x128xf32> -> vector<4x128xf32>
    %cst_53 = arith.constant 0.000000e+00 : f32
    %302 = vector.shape_cast %11 : vector<4x1xi1> to vector<4x1xi1>
    %303 = vector.broadcast %302 : vector<4x1xi1> to vector<4x32xi1>
    %304 = vector.broadcast %cst_53 : f32 to vector<4x32xf32>
    %305 = arith.select %303, %296, %304 : vector<4x32xi1>, vector<4x32xf32>
    %cst_54 = arith.constant 0.000000e+00 : f32
    %306 = vector.shape_cast %11 : vector<4x1xi1> to vector<4x1xi1>
    %307 = vector.broadcast %306 : vector<4x1xi1> to vector<4x32xi1>
    %308 = vector.broadcast %cst_54 : f32 to vector<4x32xf32>
    %309 = arith.select %307, %308, %296 : vector<4x32xi1>, vector<4x32xf32>
    %310 = tpu.concatenate %305, %309 in 1 : vector<4x32xf32>, vector<4x32xf32> -> vector<4x64xf32>
    %cst_55 = arith.constant dense<0.000000e+00> : vector<4x128xf32>
    %311 = tpu.matmul %310, %6, %cst_55 {dimension_numbers = #tpu.dot_dimension_numbers<[1], [0], [0], [1], [0, 0, 1, 1], [], []>} : vector<4x64xf32>, vector<64x128xf32>, vector<4x128xf32> -> vector<4x128xf32>
    %312 = arith.addf %301, %311 : vector<4x128xf32>
    %313 = vector.extract_strided_slice %312 {offsets = [0, 0], sizes = [4, 32], strides = [1, 1]} : vector<4x128xf32> to vector<4x32xf32>
    %314 = arith.negf %313 : vector<4x32xf32>
    %315 = math.exp %314 : vector<4x32xf32>
    %cst_56 = arith.constant 1.000000e+00 : f32
    %316 = vector.broadcast %cst_56 : f32 to vector<4x32xf32>
    %317 = arith.addf %316, %315 : vector<4x32xf32>
    %318 = arith.divf %316, %317 : vector<4x32xf32>
    %319 = vector.extract_strided_slice %312 {offsets = [0, 32], sizes = [4, 32], strides = [1, 1]} : vector<4x128xf32> to vector<4x32xf32>
    %320 = arith.negf %319 : vector<4x32xf32>
    %321 = math.exp %320 : vector<4x32xf32>
    %cst_57 = arith.constant 1.000000e+00 : f32
    %322 = vector.broadcast %cst_57 : f32 to vector<4x32xf32>
    %323 = arith.addf %322, %321 : vector<4x32xf32>
    %324 = arith.divf %322, %323 : vector<4x32xf32>
    %325 = vector.extract_strided_slice %312 {offsets = [0, 64], sizes = [4, 32], strides = [1, 1]} : vector<4x128xf32> to vector<4x32xf32>
    %326 = math.tanh %325 : vector<4x32xf32>
    %327 = vector.extract_strided_slice %312 {offsets = [0, 96], sizes = [4, 32], strides = [1, 1]} : vector<4x128xf32> to vector<4x32xf32>
    %328 = arith.negf %327 : vector<4x32xf32>
    %329 = math.exp %328 : vector<4x32xf32>
    %cst_58 = arith.constant 1.000000e+00 : f32
    %330 = vector.broadcast %cst_58 : f32 to vector<4x32xf32>
    %331 = arith.addf %330, %329 : vector<4x32xf32>
    %332 = arith.divf %330, %331 : vector<4x32xf32>
    %333 = arith.mulf %324, %294 : vector<4x32xf32>
    %334 = arith.mulf %318, %326 : vector<4x32xf32>
    %335 = arith.addf %333, %334 : vector<4x32xf32>
    %336 = math.tanh %335 : vector<4x32xf32>
    %337 = arith.mulf %332, %336 : vector<4x32xf32>
    %338 = vector.extract_strided_slice %337 {offsets = [0, 0], sizes = [2, 32], strides = [1, 1]} : vector<4x32xf32> to vector<2x32xf32>
    %339 = vector.extract_strided_slice %337 {offsets = [2, 0], sizes = [2, 32], strides = [1, 1]} : vector<4x32xf32> to vector<2x32xf32>
    %340 = tpu.concatenate %51, %339 in 1 : vector<2x32xf32>, vector<2x32xf32> -> vector<2x64xf32>
    %341 = tpu.concatenate %92, %298 in 1 : vector<2x32xf32>, vector<2x32xf32> -> vector<2x64xf32>
    %342 = tpu.concatenate %133, %257 in 1 : vector<2x32xf32>, vector<2x32xf32> -> vector<2x64xf32>
    %343 = tpu.concatenate %174, %216 in 1 : vector<2x32xf32>, vector<2x32xf32> -> vector<2x64xf32>
    %344 = tpu.concatenate %215, %175 in 1 : vector<2x32xf32>, vector<2x32xf32> -> vector<2x64xf32>
    %345 = tpu.concatenate %256, %134 in 1 : vector<2x32xf32>, vector<2x32xf32> -> vector<2x64xf32>
    %346 = tpu.concatenate %297, %93 in 1 : vector<2x32xf32>, vector<2x32xf32> -> vector<2x64xf32>
    %347 = tpu.concatenate %338, %52 in 1 : vector<2x32xf32>, vector<2x32xf32> -> vector<2x64xf32>
    %348 = tpu.concatenate %340, %341, %342, %343, %344, %345, %346, %347 in 0 : vector<2x64xf32>, vector<2x64xf32>, vector<2x64xf32>, vector<2x64xf32>, vector<2x64xf32>, vector<2x64xf32>, vector<2x64xf32>, vector<2x64xf32> -> vector<16x64xf32>
    %c0_59 = arith.constant 0 : index
    %c0_60 = arith.constant 0 : index
    %349 = vector.load %arg6[%c0_59, %c0_60] : memref<16x64xf32, #tpu.memory_space<vmem>>, vector<16x64xf32>
    tpu.vector_store %arg6[%c0_59, %c0_60], %348 {strides = array<i32>} : memref<16x64xf32, #tpu.memory_space<vmem>>, vector<16x64xf32>,
    %c0_61 = arith.constant 0 : index
    %c0_62 = arith.constant 0 : index
    %350 = vector.load %arg7[%c0_61, %c0_62] : memref<4x32xf32, #tpu.memory_space<vmem>>, vector<4x32xf32>
    tpu.vector_store %arg7[%c0_61, %c0_62], %337 {strides = array<i32>} : memref<4x32xf32, #tpu.memory_space<vmem>>, vector<4x32xf32>,
    %c0_63 = arith.constant 0 : index
    %c0_64 = arith.constant 0 : index
    %351 = vector.load %arg8[%c0_63, %c0_64] : memref<4x32xf32, #tpu.memory_space<vmem>>, vector<4x32xf32>
    tpu.vector_store %arg8[%c0_63, %c0_64], %335 {strides = array<i32>} : memref<4x32xf32, #tpu.memory_space<vmem>>, vector<4x32xf32>,
    return
  }
}

</mosaic_0001>

<llo_original>
// kernel: bilstm_pr_forward.2
$region0: #{bilstm_pr_forward.2}
  #allocation0 [shape = 'u32[]', space=smem, size = 0x4, offset = 0x4, fixed_abs, tag = 'smem constant byte address 0x4 - core index']
  #allocation1 [shape = 'u32[144,128]{1,0:T(1,128)}', space=vmem, size = 0x12000, scoped, tag = 'internal scratch']
  %s0 = inlined_call_operand.vmem [shape: f32[16,32], index: 0, kind: input, shape index: {}]
  %s1 = inlined_call_operand.vmem [shape: f32[4,32], index: 1, kind: input, shape index: {}]
  %s2 = inlined_call_operand.vmem [shape: f32[4,32], index: 2, kind: input, shape index: {}]
  %s3 = inlined_call_operand.vmem [shape: f32[32,256], index: 3, kind: input, shape index: {}]
  %s4 = inlined_call_operand.vmem [shape: f32[64,128], index: 4, kind: input, shape index: {}]
  %s5 = inlined_call_operand.vmem [shape: f32[1,256], index: 5, kind: input, shape index: {}]
  %s6 = inlined_call_operand.vmem [shape: f32[16,64], index: 6, kind: output, shape index: {0}]
  %s7 = inlined_call_operand.vmem [shape: f32[4,32], index: 7, kind: output, shape index: {1}]
  %s8 = inlined_call_operand.vmem [shape: f32[4,32], index: 8, kind: output, shape index: {2}]
  %9 = xla_tuple %s6, %s7, %s8
  %s10 = sld [smem:[#allocation0]]
  $region50: #{bilstm_pr_forward.2} parent=0
    _
  %s12 = ssub.s32 1, %s10
  %s13 = scalar_select 0, %s12, %s10
  // Predicated region
  $region2: #{bilstm_pr_forward.2} parent=0 // pred_check
    _
  $region3: #{bilstm_pr_forward.2} parent=0 // pred_check_branch
    %15 = sbr.rel (0) target = $region5
  $region4: #{bilstm_pr_forward.2} parent=0 // pred_region
    _
  $region5: #{bilstm_pr_forward.2} parent=0 // pred_fallthru
    _
  // Predicated region
  $region6: #{bilstm_pr_forward.2} parent=0 // pred_check
    _
  $region7: #{bilstm_pr_forward.2} parent=0 // pred_check_branch
    %17 = sbr.rel (0) target = $region9
  $region8: #{bilstm_pr_forward.2} parent=0 // pred_region
    _
  $region9: #{bilstm_pr_forward.2} parent=0 // pred_fallthru
    _
  // Predicated region
  $region10: #{bilstm_pr_forward.2} parent=0 // pred_check
    _
  $region11: #{bilstm_pr_forward.2} parent=0 // pred_check_branch
    %19 = sbr.rel (0) target = $region13
  $region12: #{bilstm_pr_forward.2} parent=0 // pred_region
    _
  $region13: #{bilstm_pr_forward.2} parent=0 // pred_fallthru
    _
  // Predicated region
  $region14: #{bilstm_pr_forward.2} parent=0 // pred_check
    _
  $region15: #{bilstm_pr_forward.2} parent=0 // pred_check_branch
    %21 = sbr.rel (0) target = $region17
  $region16: #{bilstm_pr_forward.2} parent=0 // pred_region
    _
  $region17: #{bilstm_pr_forward.2} parent=0 // pred_fallthru
    _
  // Predicated region
  $region18: #{bilstm_pr_forward.2} parent=0 // pred_check
    _
  $region19: #{bilstm_pr_forward.2} parent=0 // pred_check_branch
    %23 = sbr.rel (0) target = $region21
  $region20: #{bilstm_pr_forward.2} parent=0 // pred_region
    _
  $region21: #{bilstm_pr_forward.2} parent=0 // pred_fallthru
    _
  // Predicated region
  $region22: #{bilstm_pr_forward.2} parent=0 // pred_check
    _
  $region23: #{bilstm_pr_forward.2} parent=0 // pred_check_branch
    %25 = sbr.rel (0) target = $region25
  $region24: #{bilstm_pr_forward.2} parent=0 // pred_region
    _
  $region25: #{bilstm_pr_forward.2} parent=0 // pred_fallthru
    _
  %v26 = vld [vmem:[%s0] sm:$0xff]
  %v27 = vld [vmem:[%s0 + $0x8] sm:$0xff]
  %v28 = vld [vmem:[%s3] sm:$0xff]
  %v29 = vld [vmem:[%s3 + $0x8] sm:$0xff]
  %v30 = vld [vmem:[%s3 + $0x10] sm:$0xff]
  %v31 = vld [vmem:[%s3 + $0x18] sm:$0xff]
  %v32 = vld [vmem:[%s3 + $0x20] sm:$0xff]
  %v33 = vld [vmem:[%s3 + $0x28] sm:$0xff]
  %v34 = vld [vmem:[%s3 + $0x30] sm:$0xff]
  %v35 = vld [vmem:[%s3 + $0x38] sm:$0xff]
  %v36 = vld [vmem:[%s5] sm:$0x3]
  %v38 = vlaneseq
  %v39 = vshrl.u32 %v38, 7
  %v40 = vsub.s32 0, %v39
  %v41 = vrot.slane %v36, %v40
  %v42 = vlaneseq
  %v43 = vshrl.u32 %v42, 7
  %v44 = vsub.s32 1, %v43
  %v45 = vrot.slane %v36, %v44
  %vm48 = vcmask 261120
  %v50 = vsel %vm48, %v26, 0
  %v53 = vsel %vm48, %v27, 0
  %55 = vmatprep.subr.mxu0 %v29
  %56 = vmatpush1.msra.mxu0 %v28
  %57 = vmatprep.subr.mxu0 %v31
  %58 = vmatpush1.msra.mxu0 %v30
  %59 = vmatprep.subr.mxu0 %v33
  %60 = vmatpush1.msra.mxu0 %v32
  %61 = vmatprep.subr.mxu0 %v35
  %62 = vmatpush1.msra.mxu0 %v34
  %63 = vmatprep.subr.mxu0 0.0
  %64 = vmatpush1.msra.mxu0 0.0
  %65 = vmatprep.subr.mxu0 0.0
  %66 = vmatpush1.msra.mxu0 0.0
  %67 = vmatprep.subr.mxu0 0.0
  %68 = vmatpush1.msra.mxu0 0.0
  %69 = vmatprep.subr.mxu0 0.0
  %70 = vmatpush1.msra.mxu0 0.0
  %71 = vmatprep.subr.mxu0 0.0
  %72 = vmatpush1.msra.mxu0 0.0
  %73 = vmatprep.subr.mxu0 0.0
  %74 = vmatpush1.msra.mxu0 0.0
  %75 = vmatprep.subr.mxu0 0.0
  %76 = vmatpush1.msra.mxu0 0.0
  %77 = vmatprep.subr.mxu0 0.0
  %78 = vmatpush1.msra.mxu0 0.0
  %79 = vmatprep.subr.mxu0 0.0
  %80 = vmatpush1.msra.mxu0 0.0
  %81 = vmatprep.subr.mxu0 0.0
  %82 = vmatpush1.msra.mxu0 0.0
  %83 = vmatprep.subr.mxu0 0.0
  %84 = vmatpush1.msra.mxu0 0.0
  %85 = vmatprep.subr.mxu0 0.0
  %86 = vmatpush1.msra.mxu0 0.0
  %87 = vmatprep.subr.mxu0 0.0
  %88 = vmatpush1.msra.mxu0 0.0
  %89 = vmatprep.subr.mxu0 0.0
  %90 = vmatpush1.msra.mxu0 0.0
  %91 = vmatprep.subr.mxu0 0.0
  %92 = vmatpush1.msra.mxu0 0.0
  %93 = vmatprep.subr.mxu0 0.0
  %94 = vmatpush1.msra.mxu0 0.0
  %95 = vmatprep.subr.mxu0 0.0
  %96 = vmatpush1.msra.mxu0 0.0
  %97 = vmatprep.subr.mxu0 0.0
  %98 = vmatpush1.msra.mxu0 0.0
  %99 = vmatprep.subr.mxu0 0.0
  %100 = vmatpush1.msra.mxu0 0.0
  %101 = vmatprep.subr.mxu0 0.0
  %102 = vmatpush1.msra.mxu0 0.0
  %103 = vmatprep.subr.mxu0 0.0
  %104 = vmatpush1.msra.mxu0 0.0
  %105 = vmatprep.subr.mxu0 0.0
  %106 = vmatpush1.msra.mxu0 0.0
  %107 = vmatprep.subr.mxu0 0.0
  %108 = vmatpush1.msra.mxu0 0.0
  %109 = vmatprep.subr.mxu0 0.0
  %110 = vmatpush1.msra.mxu0 0.0
  %111 = vmatprep.subr.mxu0 0.0
  %112 = vmatpush1.msra.mxu0 0.0
  %113 = vmatprep.subr.mxu0 0.0
  %114 = vmatpush1.msra.mxu0 0.0
  %115 = vmatprep.subr.mxu0 0.0
  %116 = vmatpush1.msra.mxu0 0.0
  %117 = vmatprep.subr.mxu0 0.0
  %118 = vmatpush1.msra.mxu0 0.0
  %119 = vmatprep.mubr.f32.mxu0 0.0
  %120 = vmatmul.mubr.f32.gmra.mrb[0].mxu0 %v50
  %v121 = vpop.f32.mrb[0].mxu0
  %v122 = vadd.f32 %v41, %v121
  %v123 = vpop.f32.mrb[0].mxu0
  %v124 = vadd.f32 %v45, %v123
  %125 = vmatprep.mubr.f32.mxu0 0.0
  %126 = vmatmul.mubr.f32.gmra.mrb[0].mxu0 %v53
  %v127 = vpop.f32.mrb[0].mxu0
  %v128 = vadd.f32 %v41, %v127
  %v129 = vpop.f32.mrb[0].mxu0
  %v130 = vadd.f32 %v45, %v129
  %131 = vdwg.mxu0
  %v132 = vld [vmem:[%s4] sm:$0xff]
  %v133 = vld [vmem:[%s4 + $0x8] sm:$0xff]
  %v134 = vld [vmem:[%s4 + $0x10] sm:$0xff]
  %v135 = vld [vmem:[%s4 + $0x18] sm:$0xff]
  %v136 = vld [vmem:[%s4 + $0x20] sm:$0xff]
  %v137 = vld [vmem:[%s4 + $0x28] sm:$0xff]
  %v138 = vld [vmem:[%s4 + $0x30] sm:$0xff]
  %v139 = vld [vmem:[%s4 + $0x38] sm:$0xff]
  %v140 = vld [vmem:[%s1] sm:$0xf]
  %v141 = vld [vmem:[%s2] sm:$0xf]
  %v142 = vlaneseq
  %v143 = vshrl.u32 %v142, 7
  %vm144 = vcmp.lt.s32.totalorder %v143, 2
  %v146 = vrot.slane %v130, 4
  %vm148 = vcmask 1041408
  %v149 = vsel %vm148, %v122, %v146
  %v150 = vsel %vm144, 1, 0
  %vm151 = vcmp.eq.s32.totalorder %v150, 1
  %v152 = vsel %vm151, %v140, 0.0
  %v153 = vsel %vm151, 0.0, %v140
  %155 = vrot.lane.b32.xlu0 %v153, 32
  %v156 = vpop.permute.xlu0 %155
  %v158 = vsel %vm48, %v152, %v156
  %vm159 = vcmask 523264
  %v161 = vsel %vm159, %v158, 0
  %163 = vmatprep.subr.mxu0 0.0
  %164 = vmatpush1.msra.mxu0 %v132
  %165 = vmatprep.subr.mxu0 0.0
  %166 = vmatpush1.msra.mxu0 %v133
  %167 = vmatprep.subr.mxu0 0.0
  %168 = vmatpush1.msra.mxu0 %v134
  %169 = vmatprep.subr.mxu0 0.0
  %170 = vmatpush1.msra.mxu0 %v135
  %171 = vmatprep.subr.mxu0 0.0
  %172 = vmatpush1.msra.mxu0 %v136
  %173 = vmatprep.subr.mxu0 0.0
  %174 = vmatpush1.msra.mxu0 %v137
  %175 = vmatprep.subr.mxu0 0.0
  %176 = vmatpush1.msra.mxu0 %v138
  %177 = vmatprep.subr.mxu0 0.0
  %178 = vmatpush1.msra.mxu0 %v139
  %179 = vmatprep.subr.mxu0 0.0
  %180 = vmatpush1.msra.mxu0 0.0
  %181 = vmatprep.subr.mxu0 0.0
  %182 = vmatpush1.msra.mxu0 0.0
  %183 = vmatprep.subr.mxu0 0.0
  %184 = vmatpush1.msra.mxu0 0.0
  %185 = vmatprep.subr.mxu0 0.0
  %186 = vmatpush1.msra.mxu0 0.0
  %187 = vmatprep.subr.mxu0 0.0
  %188 = vmatpush1.msra.mxu0 0.0
  %189 = vmatprep.subr.mxu0 0.0
  %190 = vmatpush1.msra.mxu0 0.0
  %191 = vmatprep.subr.mxu0 0.0
  %192 = vmatpush1.msra.mxu0 0.0
  %193 = vmatprep.subr.mxu0 0.0
  %194 = vmatpush1.msra.mxu0 0.0
  %195 = vmatprep.subr.mxu0 0.0
  %196 = vmatpush1.msra.mxu0 0.0
  %197 = vmatprep.subr.mxu0 0.0
  %198 = vmatpush1.msra.mxu0 0.0
  %199 = vmatprep.subr.mxu0 0.0
  %200 = vmatpush1.msra.mxu0 0.0
  %201 = vmatprep.subr.mxu0 0.0
  %202 = vmatpush1.msra.mxu0 0.0
  %203 = vmatprep.subr.mxu0 0.0
  %204 = vmatpush1.msra.mxu0 0.0
  %205 = vmatprep.subr.mxu0 0.0
  %206 = vmatpush1.msra.mxu0 0.0
  %207 = vmatprep.subr.mxu0 0.0
  %208 = vmatpush1.msra.mxu0 0.0
  %209 = vmatprep.subr.mxu0 0.0
  %210 = vmatpush1.msra.mxu0 0.0
  %211 = vmatprep.subr.mxu0 0.0
  %212 = vmatpush1.msra.mxu0 0.0
  %213 = vmatprep.subr.mxu0 0.0
  %214 = vmatpush1.msra.mxu0 0.0
  %215 = vmatprep.subr.mxu0 0.0
  %216 = vmatpush1.msra.mxu0 0.0
  %217 = vmatprep.subr.mxu0 0.0
  %218 = vmatpush1.msra.mxu0 0.0
  %219 = vmatprep.subr.mxu0 0.0
  %220 = vmatpush1.msra.mxu0 0.0
  %221 = vmatprep.subr.mxu0 0.0
  %222 = vmatpush1.msra.mxu0 0.0
  %223 = vmatprep.subr.mxu0 0.0
  %224 = vmatpush1.msra.mxu0 0.0
  %225 = vmatprep.subr.mxu0 0.0
  %226 = vmatpush1.msra.mxu0 0.0
  %227 = vmatprep.mubr.f32.mxu0 0.0
  %228 = vmatmul.mubr.f32.gmra.mrb[0].mxu0 %v161
  %v229 = vpop.f32.mrb[0].mxu0
  %v230 = vadd.f32 0.0, %v229
  %v231 = vpop.f32.mrb[0].mxu0
  %232 = vdwg.mxu0
  %v233 = vadd.f32 %v149, %v230
  %v234 = vxor.u32 %v233, 2147483648
  %v235 = vmul.f32 %v234, 1.442695
  %v236 = vpow.pop %v235
  %v237 = vadd.f32 %v236, 1.0
  %v238 = vrcp.pop %v237
  %v239 = vmul.f32 1.0, %v238
  %v240 = vtanh.pop %v233
  %242 = vrot.lane.b32.xlu0 %v141, 32
  %v243 = vpop.permute.xlu0 %242
  %v245 = vmul.f32 %v239, %v243
  %247 = vrot.lane.b32.xlu0 %v240, 64
  %v248 = vpop.permute.xlu0 %247
  %v250 = vmul.f32 %v239, %v248
  %252 = vrot.lane.b32.xlu0 %v250, 32
  %v253 = vpop.permute.xlu0 %252
  %v255 = vadd.f32 %v245, %v253
  %v256 = vtanh.pop %v255
  %258 = vrot.lane.b32.xlu0 %v256, 64
  %v259 = vpop.permute.xlu0 %258
  %v261 = vmul.f32 %v239, %v259
  %v263 = vrot.slane %v122, 2
  %v265 = vrot.slane %v130, 2
  %v267 = vsel %vm148, %v263, %v265
  %v268 = vsel %vm151, %v261, 0.0
  %v269 = vsel %vm151, 0.0, %v261
  %271 = vrot.lane.b32.xlu0 %v268, 32
  %v272 = vpop.permute.xlu0 %271
  %275 = vrot.lane.b32.xlu0 %v269, 64
  %v276 = vpop.permute.xlu0 %275
  %v278 = vsel %vm48, %v272, %v276
  %v280 = vsel %vm159, %v278, 0
  %282 = vmatprep.subr.mxu0 0.0
  %283 = vmatpush1.msra.mxu0 %v132
  %284 = vmatprep.subr.mxu0 0.0
  %285 = vmatpush1.msra.mxu0 %v133
  %286 = vmatprep.subr.mxu0 0.0
  %287 = vmatpush1.msra.mxu0 %v134
  %288 = vmatprep.subr.mxu0 0.0
  %289 = vmatpush1.msra.mxu0 %v135
  %290 = vmatprep.subr.mxu0 0.0
  %291 = vmatpush1.msra.mxu0 %v136
  %292 = vmatprep.subr.mxu0 0.0
  %293 = vmatpush1.msra.mxu0 %v137
  %294 = vmatprep.subr.mxu0 0.0
  %295 = vmatpush1.msra.mxu0 %v138
  %296 = vmatprep.subr.mxu0 0.0
  %297 = vmatpush1.msra.mxu0 %v139
  %298 = vmatprep.subr.mxu0 0.0
  %299 = vmatpush1.msra.mxu0 0.0
  %300 = vmatprep.subr.mxu0 0.0
  %301 = vmatpush1.msra.mxu0 0.0
  %302 = vmatprep.subr.mxu0 0.0
  %303 = vmatpush1.msra.mxu0 0.0
  %304 = vmatprep.subr.mxu0 0.0
  %305 = vmatpush1.msra.mxu0 0.0
  %306 = vmatprep.subr.mxu0 0.0
  %307 = vmatpush1.msra.mxu0 0.0
  %308 = vmatprep.subr.mxu0 0.0
  %309 = vmatpush1.msra.mxu0 0.0
  %310 = vmatprep.subr.mxu0 0.0
  %311 = vmatpush1.msra.mxu0 0.0
  %312 = vmatprep.subr.mxu0 0.0
  %313 = vmatpush1.msra.mxu0 0.0
  %314 = vmatprep.subr.mxu0 0.0
  %315 = vmatpush1.msra.mxu0 0.0
  %316 = vmatprep.subr.mxu0 0.0
  %317 = vmatpush1.msra.mxu0 0.0
  %318 = vmatprep.subr.mxu0 0.0
  %319 = vmatpush1.msra.mxu0 0.0
  %320 = vmatprep.subr.mxu0 0.0
  %321 = vmatpush1.msra.mxu0 0.0
  %322 = vmatprep.subr.mxu0 0.0
  %323 = vmatpush1.msra.mxu0 0.0
  %324 = vmatprep.subr.mxu0 0.0
  %325 = vmatpush1.msra.mxu0 0.0
  %326 = vmatprep.subr.mxu0 0.0
  %327 = vmatpush1.msra.mxu0 0.0
  %328 = vmatprep.subr.mxu0 0.0
  %329 = vmatpush1.msra.mxu0 0.0
  %330 = vmatprep.subr.mxu0 0.0
  %331 = vmatpush1.msra.mxu0 0.0
  %332 = vmatprep.subr.mxu0 0.0
  %333 = vmatpush1.msra.mxu0 0.0
  %334 = vmatprep.subr.mxu0 0.0
  %335 = vmatpush1.msra.mxu0 0.0
  %336 = vmatprep.subr.mxu0 0.0
  %337 = vmatpush1.msra.mxu0 0.0
  %338 = vmatprep.subr.mxu0 0.0
  %339 = vmatpush1.msra.mxu0 0.0
  %340 = vmatprep.subr.mxu0 0.0
  %341 = vmatpush1.msra.mxu0 0.0
  %342 = vmatprep.subr.mxu0 0.0
  %343 = vmatpush1.msra.mxu0 0.0
  %344 = vmatprep.subr.mxu0 0.0
  %345 = vmatpush1.msra.mxu0 0.0
  %346 = vmatprep.mubr.f32.mxu0 0.0
  %347 = vmatmul.mubr.f32.gmra.mrb[0].mxu0 %v280
  %v348 = vpop.f32.mrb[0].mxu0
  %v349 = vadd.f32 0.0, %v348
  %v350 = vpop.f32.mrb[0].mxu0
  %351 = vdwg.mxu0
  %v352 = vadd.f32 %v267, %v349
  %v353 = vxor.u32 %v352, 2147483648
  %v354 = vmul.f32 %v353, 1.442695
  %v355 = vpow.pop %v354
  %v356 = vadd.f32 %v355, 1.0
  %v357 = vrcp.pop %v356
  %v358 = vmul.f32 1.0, %v357
  %v359 = vtanh.pop %v352
  %v360 = vmul.f32 %v358, %v255
  %362 = vrot.lane.b32.xlu0 %v359, 64
  %v363 = vpop.permute.xlu0 %362
  %v365 = vmul.f32 %v358, %v363
  %367 = vrot.lane.b32.xlu0 %v365, 32
  %v368 = vpop.permute.xlu0 %367
  %v370 = vadd.f32 %v360, %v368
  %v371 = vtanh.pop %v370
  %373 = vrot.lane.b32.xlu0 %v371, 64
  %v374 = vpop.permute.xlu0 %373
  %v376 = vmul.f32 %v358, %v374
  %v377 = vrot.slane %v122, 4
  %v379 = vsel %vm148, %v377, %v130
  %v380 = vsel %vm151, %v376, 0.0
  %v381 = vsel %vm151, 0.0, %v376
  %383 = vrot.lane.b32.xlu0 %v380, 32
  %v384 = vpop.permute.xlu0 %383
  %387 = vrot.lane.b32.xlu0 %v381, 64
  %v388 = vpop.permute.xlu0 %387
  %v390 = vsel %vm48, %v384, %v388
  %v392 = vsel %vm159, %v390, 0
  %394 = vmatprep.subr.mxu0 0.0
  %395 = vmatpush1.msra.mxu0 %v132
  %396 = vmatprep.subr.mxu0 0.0
  %397 = vmatpush1.msra.mxu0 %v133
  %398 = vmatprep.subr.mxu0 0.0
  %399 = vmatpush1.msra.mxu0 %v134
  %400 = vmatprep.subr.mxu0 0.0
  %401 = vmatpush1.msra.mxu0 %v135
  %402 = vmatprep.subr.mxu0 0.0
  %403 = vmatpush1.msra.mxu0 %v136
  %404 = vmatprep.subr.mxu0 0.0
  %405 = vmatpush1.msra.mxu0 %v137
  %406 = vmatprep.subr.mxu0 0.0
  %407 = vmatpush1.msra.mxu0 %v138
  %408 = vmatprep.subr.mxu0 0.0
  %409 = vmatpush1.msra.mxu0 %v139
  %410 = vmatprep.subr.mxu0 0.0
  %411 = vmatpush1.msra.mxu0 0.0
  %412 = vmatprep.subr.mxu0 0.0
  %413 = vmatpush1.msra.mxu0 0.0
  %414 = vmatprep.subr.mxu0 0.0
  %415 = vmatpush1.msra.mxu0 0.0
  %416 = vmatprep.subr.mxu0 0.0
  %417 = vmatpush1.msra.mxu0 0.0
  %418 = vmatprep.subr.mxu0 0.0
  %419 = vmatpush1.msra.mxu0 0.0
  %420 = vmatprep.subr.mxu0 0.0
  %421 = vmatpush1.msra.mxu0 0.0
  %422 = vmatprep.subr.mxu0 0.0
  %423 = vmatpush1.msra.mxu0 0.0
  %424 = vmatprep.subr.mxu0 0.0
  %425 = vmatpush1.msra.mxu0 0.0
  %426 = vmatprep.subr.mxu0 0.0
  %427 = vmatpush1.msra.mxu0 0.0
  %428 = vmatprep.subr.mxu0 0.0
  %429 = vmatpush1.msra.mxu0 0.0
  %430 = vmatprep.subr.mxu0 0.0
  %431 = vmatpush1.msra.mxu0 0.0
  %432 = vmatprep.subr.mxu0 0.0
  %433 = vmatpush1.msra.mxu0 0.0
  %434 = vmatprep.subr.mxu0 0.0
  %435 = vmatpush1.msra.mxu0 0.0
  %436 = vmatprep.subr.mxu0 0.0
  %437 = vmatpush1.msra.mxu0 0.0
  %438 = vmatprep.subr.mxu0 0.0
  %439 = vmatpush1.msra.mxu0 0.0
  %440 = vmatprep.subr.mxu0 0.0
  %441 = vmatpush1.msra.mxu0 0.0
  %442 = vmatprep.subr.mxu0 0.0
  %443 = vmatpush1.msra.mxu0 0.0
  %444 = vmatprep.subr.mxu0 0.0
  %445 = vmatpush1.msra.mxu0 0.0
  %446 = vmatprep.subr.mxu0 0.0
  %447 = vmatpush1.msra.mxu0 0.0
  %448 = vmatprep.subr.mxu0 0.0
  %449 = vmatpush1.msra.mxu0 0.0
  %450 = vmatprep.subr.mxu0 0.0
  %451 = vmatpush1.msra.mxu0 0.0
  %452 = vmatprep.subr.mxu0 0.0
  %453 = vmatpush1.msra.mxu0 0.0
  %454 = vmatprep.subr.mxu0 0.0
  %455 = vmatpush1.msra.mxu0 0.0
  %456 = vmatprep.subr.mxu0 0.0
  %457 = vmatpush1.msra.mxu0 0.0
  %458 = vmatprep.mubr.f32.mxu0 0.0
  %459 = vmatmul.mubr.f32.gmra.mrb[0].mxu0 %v392
  %v460 = vpop.f32.mrb[0].mxu0
  %v461 = vadd.f32 0.0, %v460
  %v462 = vpop.f32.mrb[0].mxu0
  %463 = vdwg.mxu0
  %v464 = vadd.f32 %v379, %v461
  %v465 = vxor.u32 %v464, 2147483648
  %v466 = vmul.f32 %v465, 1.442695
  %v467 = vpow.pop %v466
  %v468 = vadd.f32 %v467, 1.0
  %v469 = vrcp.pop %v468
  %v470 = vmul.f32 1.0, %v469
  %v471 = vtanh.pop %v464
  %v472 = vmul.f32 %v470, %v370
  %474 = vrot.lane.b32.xlu0 %v471, 64
  %v475 = vpop.permute.xlu0 %474
  %v477 = vmul.f32 %v470, %v475
  %479 = vrot.lane.b32.xlu0 %v477, 32
  %v480 = vpop.permute.xlu0 %479
  %v482 = vadd.f32 %v472, %v480
  %v483 = vtanh.pop %v482
  %485 = vrot.lane.b32.xlu0 %v483, 64
  %v486 = vpop.permute.xlu0 %485
  %v488 = vmul.f32 %v470, %v486
  %v489 = vrot.slane %v122, 6
  %v491 = vrot.slane %v130, 6
  %v493 = vsel %vm148, %v489, %v491
  %v494 = vsel %vm151, %v488, 0.0
  %v495 = vsel %vm151, 0.0, %v488
  %497 = vrot.lane.b32.xlu0 %v494, 32
  %v498 = vpop.permute.xlu0 %497
  %501 = vrot.lane.b32.xlu0 %v495, 64
  %v502 = vpop.permute.xlu0 %501
  %v504 = vsel %vm48, %v498, %v502
  %v506 = vsel %vm159, %v504, 0
  %508 = vmatprep.subr.mxu0 0.0
  %509 = vmatpush1.msra.mxu0 %v132
  %510 = vmatprep.subr.mxu0 0.0
  %511 = vmatpush1.msra.mxu0 %v133
  %512 = vmatprep.subr.mxu0 0.0
  %513 = vmatpush1.msra.mxu0 %v134
  %514 = vmatprep.subr.mxu0 0.0
  %515 = vmatpush1.msra.mxu0 %v135
  %516 = vmatprep.subr.mxu0 0.0
  %517 = vmatpush1.msra.mxu0 %v136
  %518 = vmatprep.subr.mxu0 0.0
  %519 = vmatpush1.msra.mxu0 %v137
  %520 = vmatprep.subr.mxu0 0.0
  %521 = vmatpush1.msra.mxu0 %v138
  %522 = vmatprep.subr.mxu0 0.0
  %523 = vmatpush1.msra.mxu0 %v139
  %524 = vmatprep.subr.mxu0 0.0
  %525 = vmatpush1.msra.mxu0 0.0
  %526 = vmatprep.subr.mxu0 0.0
  %527 = vmatpush1.msra.mxu0 0.0
  %528 = vmatprep.subr.mxu0 0.0
  %529 = vmatpush1.msra.mxu0 0.0
  %530 = vmatprep.subr.mxu0 0.0
  %531 = vmatpush1.msra.mxu0 0.0
  %532 = vmatprep.subr.mxu0 0.0
  %533 = vmatpush1.msra.mxu0 0.0
  %534 = vmatprep.subr.mxu0 0.0
  %535 = vmatpush1.msra.mxu0 0.0
  %536 = vmatprep.subr.mxu0 0.0
  %537 = vmatpush1.msra.mxu0 0.0
  %538 = vmatprep.subr.mxu0 0.0
  %539 = vmatpush1.msra.mxu0 0.0
  %540 = vmatprep.subr.mxu0 0.0
  %541 = vmatpush1.msra.mxu0 0.0
  %542 = vmatprep.subr.mxu0 0.0
  %543 = vmatpush1.msra.mxu0 0.0
  %544 = vmatprep.subr.mxu0 0.0
  %545 = vmatpush1.msra.mxu0 0.0
  %546 = vmatprep.subr.mxu0 0.0
  %547 = vmatpush1.msra.mxu0 0.0
  %548 = vmatprep.subr.mxu0 0.0
  %549 = vmatpush1.msra.mxu0 0.0
  %550 = vmatprep.subr.mxu0 0.0
  %551 = vmatpush1.msra.mxu0 0.0
  %552 = vmatprep.subr.mxu0 0.0
  %553 = vmatpush1.msra.mxu0 0.0
  %554 = vmatprep.subr.mxu0 0.0
  %555 = vmatpush1.msra.mxu0 0.0
  %556 = vmatprep.subr.mxu0 0.0
  %557 = vmatpush1.msra.mxu0 0.0
  %558 = vmatprep.subr.mxu0 0.0
  %559 = vmatpush1.msra.mxu0 0.0
  %560 = vmatprep.subr.mxu0 0.0
  %561 = vmatpush1.msra.mxu0 0.0
  %562 = vmatprep.subr.mxu0 0.0
  %563 = vmatpush1.msra.mxu0 0.0
  %564 = vmatprep.subr.mxu0 0.0
  %565 = vmatpush1.msra.mxu0 0.0
  %566 = vmatprep.subr.mxu0 0.0
  %567 = vmatpush1.msra.mxu0 0.0
  %568 = vmatprep.subr.mxu0 0.0
  %569 = vmatpush1.msra.mxu0 0.0
  %570 = vmatprep.subr.mxu0 0.0
  %571 = vmatpush1.msra.mxu0 0.0
  %572 = vmatprep.mubr.f32.mxu0 0.0
  %573 = vmatmul.mubr.f32.gmra.mrb[0].mxu0 %v506
  %v574 = vpop.f32.mrb[0].mxu0
  %v575 = vadd.f32 0.0, %v574
  %v576 = vpop.f32.mrb[0].mxu0
  %577 = vdwg.mxu0
  %v578 = vadd.f32 %v493, %v575
  %v579 = vxor.u32 %v578, 2147483648
  %v580 = vmul.f32 %v579, 1.442695
  %v581 = vpow.pop %v580
  %v582 = vadd.f32 %v581, 1.0
  %v583 = vrcp.pop %v582
  %v584 = vmul.f32 1.0, %v583
  %v585 = vtanh.pop %v578
  %v586 = vmul.f32 %v584, %v482
  %588 = vrot.lane.b32.xlu0 %v585, 64
  %v589 = vpop.permute.xlu0 %588
  %v591 = vmul.f32 %v584, %v589
  %593 = vrot.lane.b32.xlu0 %v591, 32
  %v594 = vpop.permute.xlu0 %593
  %v596 = vadd.f32 %v586, %v594
  %v597 = vtanh.pop %v596
  %599 = vrot.lane.b32.xlu0 %v597, 64
  %v600 = vpop.permute.xlu0 %599
  %v602 = vmul.f32 %v584, %v600
  %v604 = vrot.slane %v124, 4
  %v606 = vsel %vm148, %v128, %v604
  %v607 = vsel %vm151, %v602, 0.0
  %v608 = vsel %vm151, 0.0, %v602
  %610 = vrot.lane.b32.xlu0 %v607, 32
  %v611 = vpop.permute.xlu0 %610
  %614 = vrot.lane.b32.xlu0 %v608, 64
  %v615 = vpop.permute.xlu0 %614
  %v617 = vsel %vm48, %v611, %v615
  %v619 = vsel %vm159, %v617, 0
  %621 = vmatprep.subr.mxu0 0.0
  %622 = vmatpush1.msra.mxu0 %v132
  %623 = vmatprep.subr.mxu0 0.0
  %624 = vmatpush1.msra.mxu0 %v133
  %625 = vmatprep.subr.mxu0 0.0
  %626 = vmatpush1.msra.mxu0 %v134
  %627 = vmatprep.subr.mxu0 0.0
  %628 = vmatpush1.msra.mxu0 %v135
  %629 = vmatprep.subr.mxu0 0.0
  %630 = vmatpush1.msra.mxu0 %v136
  %631 = vmatprep.subr.mxu0 0.0
  %632 = vmatpush1.msra.mxu0 %v137
  %633 = vmatprep.subr.mxu0 0.0
  %634 = vmatpush1.msra.mxu0 %v138
  %635 = vmatprep.subr.mxu0 0.0
  %636 = vmatpush1.msra.mxu0 %v139
  %637 = vmatprep.subr.mxu0 0.0
  %638 = vmatpush1.msra.mxu0 0.0
  %639 = vmatprep.subr.mxu0 0.0
  %640 = vmatpush1.msra.mxu0 0.0
  %641 = vmatprep.subr.mxu0 0.0
  %642 = vmatpush1.msra.mxu0 0.0
  %643 = vmatprep.subr.mxu0 0.0
  %644 = vmatpush1.msra.mxu0 0.0
  %645 = vmatprep.subr.mxu0 0.0
  %646 = vmatpush1.msra.mxu0 0.0
  %647 = vmatprep.subr.mxu0 0.0
  %648 = vmatpush1.msra.mxu0 0.0
  %649 = vmatprep.subr.mxu0 0.0
  %650 = vmatpush1.msra.mxu0 0.0
  %651 = vmatprep.subr.mxu0 0.0
  %652 = vmatpush1.msra.mxu0 0.0
  %653 = vmatprep.subr.mxu0 0.0
  %654 = vmatpush1.msra.mxu0 0.0
  %655 = vmatprep.subr.mxu0 0.0
  %656 = vmatpush1.msra.mxu0 0.0
  %657 = vmatprep.subr.mxu0 0.0
  %658 = vmatpush1.msra.mxu0 0.0
  %659 = vmatprep.subr.mxu0 0.0
  %660 = vmatpush1.msra.mxu0 0.0
  %661 = vmatprep.subr.mxu0 0.0
  %662 = vmatpush1.msra.mxu0 0.0
  %663 = vmatprep.subr.mxu0 0.0
  %664 = vmatpush1.msra.mxu0 0.0
  %665 = vmatprep.subr.mxu0 0.0
  %666 = vmatpush1.msra.mxu0 0.0
  %667 = vmatprep.subr.mxu0 0.0
  %668 = vmatpush1.msra.mxu0 0.0
  %669 = vmatprep.subr.mxu0 0.0
  %670 = vmatpush1.msra.mxu0 0.0
  %671 = vmatprep.subr.mxu0 0.0
  %672 = vmatpush1.msra.mxu0 0.0
  %673 = vmatprep.subr.mxu0 0.0
  %674 = vmatpush1.msra.mxu0 0.0
  %675 = vmatprep.subr.mxu0 0.0
  %676 = vmatpush1.msra.mxu0 0.0
  %677 = vmatprep.subr.mxu0 0.0
  %678 = vmatpush1.msra.mxu0 0.0
  %679 = vmatprep.subr.mxu0 0.0
  %680 = vmatpush1.msra.mxu0 0.0
  %681 = vmatprep.subr.mxu0 0.0
  %682 = vmatpush1.msra.mxu0 0.0
  %683 = vmatprep.subr.mxu0 0.0
  %684 = vmatpush1.msra.mxu0 0.0
  %685 = vmatprep.mubr.f32.mxu0 0.0
  %686 = vmatmul.mubr.f32.gmra.mrb[0].mxu0 %v619
  %v687 = vpop.f32.mrb[0].mxu0
  %v688 = vadd.f32 0.0, %v687
  %v689 = vpop.f32.mrb[0].mxu0
  %690 = vdwg.mxu0
  %v691 = vadd.f32 %v606, %v688
  %v692 = vxor.u32 %v691, 2147483648
  %v693 = vmul.f32 %v692, 1.442695
  %v694 = vpow.pop %v693
  %v695 = vadd.f32 %v694, 1.0
  %v696 = vrcp.pop %v695
  %v697 = vmul.f32 1.0, %v696
  %v698 = vtanh.pop %v691
  %v699 = vmul.f32 %v697, %v596
  %701 = vrot.lane.b32.xlu0 %v698, 64
  %v702 = vpop.permute.xlu0 %701
  %v704 = vmul.f32 %v697, %v702
  %706 = vrot.lane.b32.xlu0 %v704, 32
  %v707 = vpop.permute.xlu0 %706
  %v709 = vadd.f32 %v699, %v707
  %v710 = vtanh.pop %v709
  %712 = vrot.lane.b32.xlu0 %v710, 64
  %v713 = vpop.permute.xlu0 %712
  %v715 = vmul.f32 %v697, %v713
  %v717 = vrot.slane %v128, 2
  %v719 = vrot.slane %v124, 2
  %v721 = vsel %vm148, %v717, %v719
  %v722 = vsel %vm151, %v715, 0.0
  %v723 = vsel %vm151, 0.0, %v715
  %725 = vrot.lane.b32.xlu0 %v722, 32
  %v726 = vpop.permute.xlu0 %725
  %729 = vrot.lane.b32.xlu0 %v723, 64
  %v730 = vpop.permute.xlu0 %729
  %v732 = vsel %vm48, %v726, %v730
  %v734 = vsel %vm159, %v732, 0
  %736 = vmatprep.subr.mxu0 0.0
  %737 = vmatpush1.msra.mxu0 %v132
  %738 = vmatprep.subr.mxu0 0.0
  %739 = vmatpush1.msra.mxu0 %v133
  %740 = vmatprep.subr.mxu0 0.0
  %741 = vmatpush1.msra.mxu0 %v134
  %742 = vmatprep.subr.mxu0 0.0
  %743 = vmatpush1.msra.mxu0 %v135
  %744 = vmatprep.subr.mxu0 0.0
  %745 = vmatpush1.msra.mxu0 %v136
  %746 = vmatprep.subr.mxu0 0.0
  %747 = vmatpush1.msra.mxu0 %v137
  %748 = vmatprep.subr.mxu0 0.0
  %749 = vmatpush1.msra.mxu0 %v138
  %750 = vmatprep.subr.mxu0 0.0
  %751 = vmatpush1.msra.mxu0 %v139
  %752 = vmatprep.subr.mxu0 0.0
  %753 = vmatpush1.msra.mxu0 0.0
  %754 = vmatprep.subr.mxu0 0.0
  %755 = vmatpush1.msra.mxu0 0.0
  %756 = vmatprep.subr.mxu0 0.0
  %757 = vmatpush1.msra.mxu0 0.0
  %758 = vmatprep.subr.mxu0 0.0
  %759 = vmatpush1.msra.mxu0 0.0
  %760 = vmatprep.subr.mxu0 0.0
  %761 = vmatpush1.msra.mxu0 0.0
  %762 = vmatprep.subr.mxu0 0.0
  %763 = vmatpush1.msra.mxu0 0.0
  %764 = vmatprep.subr.mxu0 0.0
  %765 = vmatpush1.msra.mxu0 0.0
  %766 = vmatprep.subr.mxu0 0.0
  %767 = vmatpush1.msra.mxu0 0.0
  %768 = vmatprep.subr.mxu0 0.0
  %769 = vmatpush1.msra.mxu0 0.0
  %770 = vmatprep.subr.mxu0 0.0
  %771 = vmatpush1.msra.mxu0 0.0
  %772 = vmatprep.subr.mxu0 0.0
  %773 = vmatpush1.msra.mxu0 0.0
  %774 = vmatprep.subr.mxu0 0.0
  %775 = vmatpush1.msra.mxu0 0.0
  %776 = vmatprep.subr.mxu0 0.0
  %777 = vmatpush1.msra.mxu0 0.0
  %778 = vmatprep.subr.mxu0 0.0
  %779 = vmatpush1.msra.mxu0 0.0
  %780 = vmatprep.subr.mxu0 0.0
  %781 = vmatpush1.msra.mxu0 0.0
  %782 = vmatprep.subr.mxu0 0.0
  %783 = vmatpush1.msra.mxu0 0.0
  %784 = vmatprep.subr.mxu0 0.0
  %785 = vmatpush1.msra.mxu0 0.0
  %786 = vmatprep.subr.mxu0 0.0
  %787 = vmatpush1.msra.mxu0 0.0
  %788 = vmatprep.subr.mxu0 0.0
  %789 = vmatpush1.msra.mxu0 0.0
  %790 = vmatprep.subr.mxu0 0.0
  %791 = vmatpush1.msra.mxu0 0.0
  %792 = vmatprep.subr.mxu0 0.0
  %793 = vmatpush1.msra.mxu0 0.0
  %794 = vmatprep.subr.mxu0 0.0
  %795 = vmatpush1.msra.mxu0 0.0
  %796 = vmatprep.subr.mxu0 0.0
  %797 = vmatpush1.msra.mxu0 0.0
  %798 = vmatprep.subr.mxu0 0.0
  %799 = vmatpush1.msra.mxu0 0.0
  %800 = vmatprep.mubr.f32.mxu0 0.0
  %801 = vmatmul.mubr.f32.gmra.mrb[0].mxu0 %v734
  %v802 = vpop.f32.mrb[0].mxu0
  %v803 = vadd.f32 0.0, %v802
  %v804 = vpop.f32.mrb[0].mxu0
  %805 = vdwg.mxu0
  %v806 = vadd.f32 %v721, %v803
  %v807 = vxor.u32 %v806, 2147483648
  %v808 = vmul.f32 %v807, 1.442695
  %v809 = vpow.pop %v808
  %v810 = vadd.f32 %v809, 1.0
  %v811 = vrcp.pop %v810
  %v812 = vmul.f32 1.0, %v811
  %v813 = vtanh.pop %v806
  %v814 = vmul.f32 %v812, %v709
  %816 = vrot.lane.b32.xlu0 %v813, 64
  %v817 = vpop.permute.xlu0 %816
  %v819 = vmul.f32 %v812, %v817
  %821 = vrot.lane.b32.xlu0 %v819, 32
  %v822 = vpop.permute.xlu0 %821
  %v824 = vadd.f32 %v814, %v822
  %v825 = vtanh.pop %v824
  %827 = vrot.lane.b32.xlu0 %v825, 64
  %v828 = vpop.permute.xlu0 %827
  %v830 = vmul.f32 %v812, %v828
  %v831 = vrot.slane %v128, 4
  %v833 = vsel %vm148, %v831, %v124
  %v834 = vsel %vm151, %v830, 0.0
  %v835 = vsel %vm151, 0.0, %v830
  %837 = vrot.lane.b32.xlu0 %v834, 32
  %v838 = vpop.permute.xlu0 %837
  %841 = vrot.lane.b32.xlu0 %v835, 64
  %v842 = vpop.permute.xlu0 %841
  %v844 = vsel %vm48, %v838, %v842
  %v846 = vsel %vm159, %v844, 0
  %848 = vmatprep.subr.mxu0 0.0
  %849 = vmatpush1.msra.mxu0 %v132
  %850 = vmatprep.subr.mxu0 0.0
  %851 = vmatpush1.msra.mxu0 %v133
  %852 = vmatprep.subr.mxu0 0.0
  %853 = vmatpush1.msra.mxu0 %v134
  %854 = vmatprep.subr.mxu0 0.0
  %855 = vmatpush1.msra.mxu0 %v135
  %856 = vmatprep.subr.mxu0 0.0
  %857 = vmatpush1.msra.mxu0 %v136
  %858 = vmatprep.subr.mxu0 0.0
  %859 = vmatpush1.msra.mxu0 %v137
  %860 = vmatprep.subr.mxu0 0.0
  %861 = vmatpush1.msra.mxu0 %v138
  %862 = vmatprep.subr.mxu0 0.0
  %863 = vmatpush1.msra.mxu0 %v139
  %864 = vmatprep.subr.mxu0 0.0
  %865 = vmatpush1.msra.mxu0 0.0
  %866 = vmatprep.subr.mxu0 0.0
  %867 = vmatpush1.msra.mxu0 0.0
  %868 = vmatprep.subr.mxu0 0.0
  %869 = vmatpush1.msra.mxu0 0.0
  %870 = vmatprep.subr.mxu0 0.0
  %871 = vmatpush1.msra.mxu0 0.0
  %872 = vmatprep.subr.mxu0 0.0
  %873 = vmatpush1.msra.mxu0 0.0
  %874 = vmatprep.subr.mxu0 0.0
  %875 = vmatpush1.msra.mxu0 0.0
  %876 = vmatprep.subr.mxu0 0.0
  %877 = vmatpush1.msra.mxu0 0.0
  %878 = vmatprep.subr.mxu0 0.0
  %879 = vmatpush1.msra.mxu0 0.0
  %880 = vmatprep.subr.mxu0 0.0
  %881 = vmatpush1.msra.mxu0 0.0
  %882 = vmatprep.subr.mxu0 0.0
  %883 = vmatpush1.msra.mxu0 0.0
  %884 = vmatprep.subr.mxu0 0.0
  %885 = vmatpush1.msra.mxu0 0.0
  %886 = vmatprep.subr.mxu0 0.0
  %887 = vmatpush1.msra.mxu0 0.0
  %888 = vmatprep.subr.mxu0 0.0
  %889 = vmatpush1.msra.mxu0 0.0
  %890 = vmatprep.subr.mxu0 0.0
  %891 = vmatpush1.msra.mxu0 0.0
  %892 = vmatprep.subr.mxu0 0.0
  %893 = vmatpush1.msra.mxu0 0.0
  %894 = vmatprep.subr.mxu0 0.0
  %895 = vmatpush1.msra.mxu0 0.0
  %896 = vmatprep.subr.mxu0 0.0
  %897 = vmatpush1.msra.mxu0 0.0
  %898 = vmatprep.subr.mxu0 0.0
  %899 = vmatpush1.msra.mxu0 0.0
  %900 = vmatprep.subr.mxu0 0.0
  %901 = vmatpush1.msra.mxu0 0.0
  %902 = vmatprep.subr.mxu0 0.0
  %903 = vmatpush1.msra.mxu0 0.0
  %904 = vmatprep.subr.mxu0 0.0
  %905 = vmatpush1.msra.mxu0 0.0
  %906 = vmatprep.subr.mxu0 0.0
  %907 = vmatpush1.msra.mxu0 0.0
  %908 = vmatprep.subr.mxu0 0.0
  %909 = vmatpush1.msra.mxu0 0.0
  %910 = vmatprep.subr.mxu0 0.0
  %911 = vmatpush1.msra.mxu0 0.0
  %912 = vmatprep.mubr.f32.mxu0 0.0
  %913 = vmatmul.mubr.f32.gmra.mrb[0].mxu0 %v846
  %v914 = vpop.f32.mrb[0].mxu0
  %v915 = vadd.f32 0.0, %v914
  %v916 = vpop.f32.mrb[0].mxu0
  %917 = vdwg.mxu0
  %v918 = vadd.f32 %v833, %v915
  %v919 = vxor.u32 %v918, 2147483648
  %v920 = vmul.f32 %v919, 1.442695
  %v921 = vpow.pop %v920
  %v922 = vadd.f32 %v921, 1.0
  %v923 = vrcp.pop %v922
  %v924 = vmul.f32 1.0, %v923
  %v925 = vtanh.pop %v918
  %v926 = vmul.f32 %v924, %v824
  %928 = vrot.lane.b32.xlu0 %v925, 64
  %v929 = vpop.permute.xlu0 %928
  %v931 = vmul.f32 %v924, %v929
  %933 = vrot.lane.b32.xlu0 %v931, 32
  %v934 = vpop.permute.xlu0 %933
  %v936 = vadd.f32 %v926, %v934
  %v937 = vtanh.pop %v936
  %939 = vrot.lane.b32.xlu0 %v937, 64
  %v940 = vpop.permute.xlu0 %939
  %v942 = vmul.f32 %v924, %v940
  %v943 = vrot.slane %v128, 6
  %v945 = vrot.slane %v124, 6
  %v947 = vsel %vm148, %v943, %v945
  %v948 = vsel %vm151, %v942, 0.0
  %v949 = vsel %vm151, 0.0, %v942
  %951 = vrot.lane.b32.xlu0 %v948, 32
  %v952 = vpop.permute.xlu0 %951
  %955 = vrot.lane.b32.xlu0 %v949, 64
  %v956 = vpop.permute.xlu0 %955
  %v958 = vsel %vm48, %v952, %v956
  %v960 = vsel %vm159, %v958, 0
  %962 = vmatprep.subr.mxu0 0.0
  %963 = vmatpush1.msra.mxu0 %v132
  %964 = vmatprep.subr.mxu0 0.0
  %965 = vmatpush1.msra.mxu0 %v133
  %966 = vmatprep.subr.mxu0 0.0
  %967 = vmatpush1.msra.mxu0 %v134
  %968 = vmatprep.subr.mxu0 0.0
  %969 = vmatpush1.msra.mxu0 %v135
  %970 = vmatprep.subr.mxu0 0.0
  %971 = vmatpush1.msra.mxu0 %v136
  %972 = vmatprep.subr.mxu0 0.0
  %973 = vmatpush1.msra.mxu0 %v137
  %974 = vmatprep.subr.mxu0 0.0
  %975 = vmatpush1.msra.mxu0 %v138
  %976 = vmatprep.subr.mxu0 0.0
  %977 = vmatpush1.msra.mxu0 %v139
  %978 = vmatprep.subr.mxu0 0.0
  %979 = vmatpush1.msra.mxu0 0.0
  %980 = vmatprep.subr.mxu0 0.0
  %981 = vmatpush1.msra.mxu0 0.0
  %982 = vmatprep.subr.mxu0 0.0
  %983 = vmatpush1.msra.mxu0 0.0
  %984 = vmatprep.subr.mxu0 0.0
  %985 = vmatpush1.msra.mxu0 0.0
  %986 = vmatprep.subr.mxu0 0.0
  %987 = vmatpush1.msra.mxu0 0.0
  %988 = vmatprep.subr.mxu0 0.0
  %989 = vmatpush1.msra.mxu0 0.0
  %990 = vmatprep.subr.mxu0 0.0
  %991 = vmatpush1.msra.mxu0 0.0
  %992 = vmatprep.subr.mxu0 0.0
  %993 = vmatpush1.msra.mxu0 0.0
  %994 = vmatprep.subr.mxu0 0.0
  %995 = vmatpush1.msra.mxu0 0.0
  %996 = vmatprep.subr.mxu0 0.0
  %997 = vmatpush1.msra.mxu0 0.0
  %998 = vmatprep.subr.mxu0 0.0
  %999 = vmatpush1.msra.mxu0 0.0
  %1000 = vmatprep.subr.mxu0 0.0
  %1001 = vmatpush1.msra.mxu0 0.0
  %1002 = vmatprep.subr.mxu0 0.0
  %1003 = vmatpush1.msra.mxu0 0.0
  %1004 = vmatprep.subr.mxu0 0.0
  %1005 = vmatpush1.msra.mxu0 0.0
  %1006 = vmatprep.subr.mxu0 0.0
  %1007 = vmatpush1.msra.mxu0 0.0
  %1008 = vmatprep.subr.mxu0 0.0
  %1009 = vmatpush1.msra.mxu0 0.0
  %1010 = vmatprep.subr.mxu0 0.0
  %1011 = vmatpush1.msra.mxu0 0.0
  %1012 = vmatprep.subr.mxu0 0.0
  %1013 = vmatpush1.msra.mxu0 0.0
  %1014 = vmatprep.subr.mxu0 0.0
  %1015 = vmatpush1.msra.mxu0 0.0
  %1016 = vmatprep.subr.mxu0 0.0
  %1017 = vmatpush1.msra.mxu0 0.0
  %1018 = vmatprep.subr.mxu0 0.0
  %1019 = vmatpush1.msra.mxu0 0.0
  %1020 = vmatprep.subr.mxu0 0.0
  %1021 = vmatpush1.msra.mxu0 0.0
  %1022 = vmatprep.subr.mxu0 0.0
  %1023 = vmatpush1.msra.mxu0 0.0
  %1024 = vmatprep.subr.mxu0 0.0
  %1025 = vmatpush1.msra.mxu0 0.0
  %1026 = vmatprep.mubr.f32.mxu0 0.0
  %1027 = vmatmul.mubr.f32.gmra.mrb[0].mxu0 %v960
  %v1028 = vpop.f32.mrb[0].mxu0
  %v1029 = vadd.f32 0.0, %v1028
  %v1030 = vpop.f32.mrb[0].mxu0
  %1031 = vdwg.mxu0
  %v1032 = vadd.f32 %v947, %v1029
  %v1033 = vxor.u32 %v1032, 2147483648
  %v1034 = vmul.f32 %v1033, 1.442695
  %v1035 = vpow.pop %v1034
  %v1036 = vadd.f32 %v1035, 1.0
  %v1037 = vrcp.pop %v1036
  %v1038 = vmul.f32 1.0, %v1037
  %v1039 = vtanh.pop %v1032
  %v1040 = vmul.f32 %v1038, %v936
  %1042 = vrot.lane.b32.xlu0 %v1039, 64
  %v1043 = vpop.permute.xlu0 %1042
  %v1045 = vmul.f32 %v1038, %v1043
  %1047 = vrot.lane.b32.xlu0 %v1045, 32
  %v1048 = vpop.permute.xlu0 %1047
  %v1050 = vadd.f32 %v1040, %v1048
  %v1051 = vtanh.pop %v1050
  %1053 = vrot.lane.b32.xlu0 %v1051, 64
  %v1054 = vpop.permute.xlu0 %1053
  %v1056 = vmul.f32 %v1038, %v1054
  %1058 = vrot.lane.b32.xlu0 %v261, 32
  %v1059 = vpop.permute.xlu0 %1058
  %v1062 = vrot.slane %v1056, 2
  %1063 = vrot.lane.b32.xlu0 %v1062, 64
  %v1064 = vpop.permute.xlu0 %1063
  %v1066 = vsel %vm48, %v1059, %v1064
  %1068 = vrot.lane.b32.xlu0 %v376, 32
  %v1069 = vpop.permute.xlu0 %1068
  %v1072 = vrot.slane %v942, 2
  %1073 = vrot.lane.b32.xlu0 %v1072, 64
  %v1074 = vpop.permute.xlu0 %1073
  %v1076 = vsel %vm48, %v1069, %v1074
  %1078 = vrot.lane.b32.xlu0 %v488, 32
  %v1079 = vpop.permute.xlu0 %1078
  %v1082 = vrot.slane %v830, 2
  %1083 = vrot.lane.b32.xlu0 %v1082, 64
  %v1084 = vpop.permute.xlu0 %1083
  %v1086 = vsel %vm48, %v1079, %v1084
  %1088 = vrot.lane.b32.xlu0 %v602, 32
  %v1089 = vpop.permute.xlu0 %1088
  %v1092 = vrot.slane %v715, 2
  %1093 = vrot.lane.b32.xlu0 %v1092, 64
  %v1094 = vpop.permute.xlu0 %1093
  %v1096 = vsel %vm48, %v1089, %v1094
  %1097 = vrot.lane.b32.xlu0 %v715, 32
  %v1098 = vpop.permute.xlu0 %1097
  %v1100 = vrot.slane %v602, 2
  %1101 = vrot.lane.b32.xlu0 %v1100, 64
  %v1102 = vpop.permute.xlu0 %1101
  %v1104 = vsel %vm48, %v1098, %v1102
  %1105 = vrot.lane.b32.xlu0 %v830, 32
  %v1106 = vpop.permute.xlu0 %1105
  %v1108 = vrot.slane %v488, 2
  %1109 = vrot.lane.b32.xlu0 %v1108, 64
  %v1110 = vpop.permute.xlu0 %1109
  %v1112 = vsel %vm48, %v1106, %v1110
  %1113 = vrot.lane.b32.xlu0 %v942, 32
  %v1114 = vpop.permute.xlu0 %1113
  %v1116 = vrot.slane %v376, 2
  %1117 = vrot.lane.b32.xlu0 %v1116, 64
  %v1118 = vpop.permute.xlu0 %1117
  %v1120 = vsel %vm48, %v1114, %v1118
  %1121 = vrot.lane.b32.xlu0 %v1056, 32
  %v1122 = vpop.permute.xlu0 %1121
  %v1124 = vrot.slane %v261, 2
  %1125 = vrot.lane.b32.xlu0 %v1124, 64
  %v1126 = vpop.permute.xlu0 %1125
  %v1128 = vsel %vm48, %v1122, %v1126
  %v1130 = vrot.slane %v1076, 6
  %v1133 = vrot.slane %v1086, 4
  %v1136 = vrot.slane %v1096, 2
  %v1139 = vrot.slane %v1112, 6
  %v1142 = vrot.slane %v1120, 4
  %v1145 = vrot.slane %v1128, 2
  %v1147 = vsel %vm148, %v1066, %v1130
  %vm1148 = vcmask 1043456
  %v1149 = vsel %vm1148, %v1147, %v1133
  %vm1150 = vcmask 1045504
  %v1151 = vsel %vm1150, %v1149, %v1136
  %v1152 = vsel %vm148, %v1104, %v1139
  %v1153 = vsel %vm1148, %v1152, %v1142
  %v1154 = vsel %vm1150, %v1153, %v1145
  %1155 = vst.msk [vmem:[%s6] sm:$0xff] %vm159, %v1151
  %1156 = vst.msk [vmem:[%s6 + $0x8] sm:$0xff] %vm159, %v1154
  %vm1157 = vcmask 257024
  %1158 = vst.msk [vmem:[%s7] sm:$0xf] %vm1157, %v1122
  %1160 = vrot.lane.b32.xlu0 %v1050, 96
  %v1161 = vpop.permute.xlu0 %1160
  %1163 = vst.msk [vmem:[%s8] sm:$0xf] %vm1157, %v1161
  // Predicated region
  $region26: #{bilstm_pr_forward.2} parent=0 // pred_check
    _
  $region27: #{bilstm_pr_forward.2} parent=0 // pred_check_branch
    %1165 = sbr.rel (0) target = $region29
  $region28: #{bilstm_pr_forward.2} parent=0 // pred_region
    _
  $region29: #{bilstm_pr_forward.2} parent=0 // pred_fallthru
    _
  // Predicated region
  $region30: #{bilstm_pr_forward.2} parent=0 // pred_check
    _
  $region31: #{bilstm_pr_forward.2} parent=0 // pred_check_branch
    %1167 = sbr.rel (0) target = $region33
  $region32: #{bilstm_pr_forward.2} parent=0 // pred_region
    _
  $region33: #{bilstm_pr_forward.2} parent=0 // pred_fallthru
    _
  // Predicated region
  $region34: #{bilstm_pr_forward.2} parent=0 // pred_check
    _
  $region35: #{bilstm_pr_forward.2} parent=0 // pred_check_branch
    %1169 = sbr.rel (0) target = $region37
  $region36: #{bilstm_pr_forward.2} parent=0 // pred_region
    _
  $region37: #{bilstm_pr_forward.2} parent=0 // pred_fallthru
    _
  // Predicated region
  $region38: #{bilstm_pr_forward.2} parent=0 // pred_check
    _
  $region39: #{bilstm_pr_forward.2} parent=0 // pred_check_branch
    %1171 = sbr.rel (0) target = $region41
  $region40: #{bilstm_pr_forward.2} parent=0 // pred_region
    _
  $region41: #{bilstm_pr_forward.2} parent=0 // pred_fallthru
    _
  // Predicated region
  $region42: #{bilstm_pr_forward.2} parent=0 // pred_check
    _
  $region43: #{bilstm_pr_forward.2} parent=0 // pred_check_branch
    %1173 = sbr.rel (0) target = $region45
  $region44: #{bilstm_pr_forward.2} parent=0 // pred_region
    _
  $region45: #{bilstm_pr_forward.2} parent=0 // pred_fallthru
    _
  // Predicated region
  $region46: #{bilstm_pr_forward.2} parent=0 // pred_check
    _
  $region47: #{bilstm_pr_forward.2} parent=0 // pred_check_branch
    %1175 = sbr.rel (0) target = $region49
  $region48: #{bilstm_pr_forward.2} parent=0 // pred_region
    _
  $region49: #{bilstm_pr_forward.2} parent=0 // pred_fallthru
    _

// kernel: bilstm_pr_forward.3
$region0: #{bilstm_pr_forward.3}
  #allocation0 [shape = 'u32[]', space=smem, size = 0x4, offset = 0x4, fixed_abs, tag = 'smem constant byte address 0x4 - core index']
  #allocation1 [shape = 'u32[144,128]{1,0:T(1,128)}', space=vmem, size = 0x12000, scoped, tag = 'internal scratch']
  %s0 = inlined_call_operand.vmem [shape: f32[16,64], index: 0, kind: input, shape index: {}]
  %s1 = inlined_call_operand.vmem [shape: f32[4,32], index: 1, kind: input, shape index: {}]
  %s2 = inlined_call_operand.vmem [shape: f32[4,32], index: 2, kind: input, shape index: {}]
  %s3 = inlined_call_operand.vmem [shape: f32[64,256], index: 3, kind: input, shape index: {}]
  %s4 = inlined_call_operand.vmem [shape: f32[64,128], index: 4, kind: input, shape index: {}]
  %s5 = inlined_call_operand.vmem [shape: f32[1,256], index: 5, kind: input, shape index: {}]
  %s6 = inlined_call_operand.vmem [shape: f32[64,128], index: 6, kind: input, shape index: {}]
  %s7 = inlined_call_operand.vmem [shape: f32[1,128], index: 7, kind: input, shape index: {}]
  %s8 = inlined_call_operand.vmem [shape: f32[16,128], index: 8, kind: output, shape index: {0}]
  %s9 = inlined_call_operand.vmem [shape: f32[4,32], index: 9, kind: output, shape index: {1}]
  %s10 = inlined_call_operand.vmem [shape: f32[4,32], index: 10, kind: output, shape index: {2}]
  %11 = xla_tuple %s8, %s9, %s10
  %s12 = sld [smem:[#allocation0]]
  $region58: #{bilstm_pr_forward.3} parent=0
    _
  %s14 = ssub.s32 1, %s12
  %s15 = scalar_select 0, %s14, %s12
  // Predicated region
  $region2: #{bilstm_pr_forward.3} parent=0 // pred_check
    _
  $region3: #{bilstm_pr_forward.3} parent=0 // pred_check_branch
    %17 = sbr.rel (0) target = $region5
  $region4: #{bilstm_pr_forward.3} parent=0 // pred_region
    _
  $region5: #{bilstm_pr_forward.3} parent=0 // pred_fallthru
    _
  // Predicated region
  $region6: #{bilstm_pr_forward.3} parent=0 // pred_check
    _
  $region7: #{bilstm_pr_forward.3} parent=0 // pred_check_branch
    %19 = sbr.rel (0) target = $region9
  $region8: #{bilstm_pr_forward.3} parent=0 // pred_region
    _
  $region9: #{bilstm_pr_forward.3} parent=0 // pred_fallthru
    _
  // Predicated region
  $region10: #{bilstm_pr_forward.3} parent=0 // pred_check
    _
  $region11: #{bilstm_pr_forward.3} parent=0 // pred_check_branch
    %21 = sbr.rel (0) target = $region13
  $region12: #{bilstm_pr_forward.3} parent=0 // pred_region
    _
  $region13: #{bilstm_pr_forward.3} parent=0 // pred_fallthru
    _
  // Predicated region
  $region14: #{bilstm_pr_forward.3} parent=0 // pred_check
    _
  $region15: #{bilstm_pr_forward.3} parent=0 // pred_check_branch
    %23 = sbr.rel (0) target = $region17
  $region16: #{bilstm_pr_forward.3} parent=0 // pred_region
    _
  $region17: #{bilstm_pr_forward.3} parent=0 // pred_fallthru
    _
  // Predicated region
  $region18: #{bilstm_pr_forward.3} parent=0 // pred_check
    _
  $region19: #{bilstm_pr_forward.3} parent=0 // pred_check_branch
    %25 = sbr.rel (0) target = $region21
  $region20: #{bilstm_pr_forward.3} parent=0 // pred_region
    _
  $region21: #{bilstm_pr_forward.3} parent=0 // pred_fallthru
    _
  // Predicated region
  $region22: #{bilstm_pr_forward.3} parent=0 // pred_check
    _
  $region23: #{bilstm_pr_forward.3} parent=0 // pred_check_branch
    %27 = sbr.rel (0) target = $region25
  $region24: #{bilstm_pr_forward.3} parent=0 // pred_region
    _
  $region25: #{bilstm_pr_forward.3} parent=0 // pred_fallthru
    _
  // Predicated region
  $region26: #{bilstm_pr_forward.3} parent=0 // pred_check
    _
  $region27: #{bilstm_pr_forward.3} parent=0 // pred_check_branch
    %29 = sbr.rel (0) target = $region29
  $region28: #{bilstm_pr_forward.3} parent=0 // pred_region
    _
  $region29: #{bilstm_pr_forward.3} parent=0 // pred_fallthru
    _
  // Predicated region
  $region30: #{bilstm_pr_forward.3} parent=0 // pred_check
    _
  $region31: #{bilstm_pr_forward.3} parent=0 // pred_check_branch
    %31 = sbr.rel (0) target = $region33
  $region32: #{bilstm_pr_forward.3} parent=0 // pred_region
    _
  $region33: #{bilstm_pr_forward.3} parent=0 // pred_fallthru
    _
  %v32 = vld [vmem:[%s0] sm:$0xff]
  %v33 = vld [vmem:[%s0 + $0x8] sm:$0xff]
  %v34 = vld [vmem:[%s3] sm:$0xff]
  %v35 = vld [vmem:[%s3 + $0x8] sm:$0xff]
  %v36 = vld [vmem:[%s3 + $0x10] sm:$0xff]
  %v37 = vld [vmem:[%s3 + $0x18] sm:$0xff]
  %v38 = vld [vmem:[%s3 + $0x20] sm:$0xff]
  %v39 = vld [vmem:[%s3 + $0x28] sm:$0xff]
  %v40 = vld [vmem:[%s3 + $0x30] sm:$0xff]
  %v41 = vld [vmem:[%s3 + $0x38] sm:$0xff]
  %v42 = vld [vmem:[%s3 + $0x40] sm:$0xff]
  %v43 = vld [vmem:[%s3 + $0x48] sm:$0xff]
  %v44 = vld [vmem:[%s3 + $0x50] sm:$0xff]
  %v45 = vld [vmem:[%s3 + $0x58] sm:$0xff]
  %v46 = vld [vmem:[%s3 + $0x60] sm:$0xff]
  %v47 = vld [vmem:[%s3 + $0x68] sm:$0xff]
  %v48 = vld [vmem:[%s3 + $0x70] sm:$0xff]
  %v49 = vld [vmem:[%s3 + $0x78] sm:$0xff]
  %v50 = vld [vmem:[%s5] sm:$0x3]
  %v52 = vlaneseq
  %v53 = vshrl.u32 %v52, 7
  %v54 = vsub.s32 0, %v53
  %v55 = vrot.slane %v50, %v54
  %v56 = vlaneseq
  %v57 = vshrl.u32 %v56, 7
  %v58 = vsub.s32 1, %v57
  %v59 = vrot.slane %v50, %v58
  %vm62 = vcmask 523264
  %v64 = vsel %vm62, %v32, 0
  %v67 = vsel %vm62, %v33, 0
  %69 = vmatprep.subr.mxu0 %v35
  %70 = vmatpush1.msra.mxu0 %v34
  %71 = vmatprep.subr.mxu0 %v37
  %72 = vmatpush1.msra.mxu0 %v36
  %73 = vmatprep.subr.mxu0 %v39
  %74 = vmatpush1.msra.mxu0 %v38
  %75 = vmatprep.subr.mxu0 %v41
  %76 = vmatpush1.msra.mxu0 %v40
  %77 = vmatprep.subr.mxu0 %v43
  %78 = vmatpush1.msra.mxu0 %v42
  %79 = vmatprep.subr.mxu0 %v45
  %80 = vmatpush1.msra.mxu0 %v44
  %81 = vmatprep.subr.mxu0 %v47
  %82 = vmatpush1.msra.mxu0 %v46
  %83 = vmatprep.subr.mxu0 %v49
  %84 = vmatpush1.msra.mxu0 %v48
  %85 = vmatprep.subr.mxu0 0.0
  %86 = vmatpush1.msra.mxu0 0.0
  %87 = vmatprep.subr.mxu0 0.0
  %88 = vmatpush1.msra.mxu0 0.0
  %89 = vmatprep.subr.mxu0 0.0
  %90 = vmatpush1.msra.mxu0 0.0
  %91 = vmatprep.subr.mxu0 0.0
  %92 = vmatpush1.msra.mxu0 0.0
  %93 = vmatprep.subr.mxu0 0.0
  %94 = vmatpush1.msra.mxu0 0.0
  %95 = vmatprep.subr.mxu0 0.0
  %96 = vmatpush1.msra.mxu0 0.0
  %97 = vmatprep.subr.mxu0 0.0
  %98 = vmatpush1.msra.mxu0 0.0
  %99 = vmatprep.subr.mxu0 0.0
  %100 = vmatpush1.msra.mxu0 0.0
  %101 = vmatprep.subr.mxu0 0.0
  %102 = vmatpush1.msra.mxu0 0.0
  %103 = vmatprep.subr.mxu0 0.0
  %104 = vmatpush1.msra.mxu0 0.0
  %105 = vmatprep.subr.mxu0 0.0
  %106 = vmatpush1.msra.mxu0 0.0
  %107 = vmatprep.subr.mxu0 0.0
  %108 = vmatpush1.msra.mxu0 0.0
  %109 = vmatprep.subr.mxu0 0.0
  %110 = vmatpush1.msra.mxu0 0.0
  %111 = vmatprep.subr.mxu0 0.0
  %112 = vmatpush1.msra.mxu0 0.0
  %113 = vmatprep.subr.mxu0 0.0
  %114 = vmatpush1.msra.mxu0 0.0
  %115 = vmatprep.subr.mxu0 0.0
  %116 = vmatpush1.msra.mxu0 0.0
  %117 = vmatprep.subr.mxu0 0.0
  %118 = vmatpush1.msra.mxu0 0.0
  %119 = vmatprep.subr.mxu0 0.0
  %120 = vmatpush1.msra.mxu0 0.0
  %121 = vmatprep.subr.mxu0 0.0
  %122 = vmatpush1.msra.mxu0 0.0
  %123 = vmatprep.subr.mxu0 0.0
  %124 = vmatpush1.msra.mxu0 0.0
  %125 = vmatprep.subr.mxu0 0.0
  %126 = vmatpush1.msra.mxu0 0.0
  %127 = vmatprep.subr.mxu0 0.0
  %128 = vmatpush1.msra.mxu0 0.0
  %129 = vmatprep.subr.mxu0 0.0
  %130 = vmatpush1.msra.mxu0 0.0
  %131 = vmatprep.subr.mxu0 0.0
  %132 = vmatpush1.msra.mxu0 0.0
  %133 = vmatprep.mubr.f32.mxu0 0.0
  %134 = vmatmul.mubr.f32.gmra.mrb[0].mxu0 %v64
  %v135 = vpop.f32.mrb[0].mxu0
  %v136 = vadd.f32 %v55, %v135
  %v137 = vpop.f32.mrb[0].mxu0
  %v138 = vadd.f32 %v59, %v137
  %139 = vmatprep.mubr.f32.mxu0 0.0
  %140 = vmatmul.mubr.f32.gmra.mrb[0].mxu0 %v67
  %v141 = vpop.f32.mrb[0].mxu0
  %v142 = vadd.f32 %v55, %v141
  %v143 = vpop.f32.mrb[0].mxu0
  %v144 = vadd.f32 %v59, %v143
  %145 = vdwg.mxu0
  %v146 = vld [vmem:[%s4] sm:$0xff]
  %v147 = vld [vmem:[%s4 + $0x8] sm:$0xff]
  %v148 = vld [vmem:[%s4 + $0x10] sm:$0xff]
  %v149 = vld [vmem:[%s4 + $0x18] sm:$0xff]
  %v150 = vld [vmem:[%s4 + $0x20] sm:$0xff]
  %v151 = vld [vmem:[%s4 + $0x28] sm:$0xff]
  %v152 = vld [vmem:[%s4 + $0x30] sm:$0xff]
  %v153 = vld [vmem:[%s4 + $0x38] sm:$0xff]
  %v154 = vld [vmem:[%s1] sm:$0xf]
  %v155 = vld [vmem:[%s2] sm:$0xf]
  %v156 = vlaneseq
  %v157 = vshrl.u32 %v156, 7
  %vm158 = vcmp.lt.s32.totalorder %v157, 2
  %v160 = vrot.slane %v144, 4
  %vm162 = vcmask 1041408
  %v163 = vsel %vm162, %v136, %v160
  %v164 = vsel %vm158, 1, 0
  %vm165 = vcmp.eq.s32.totalorder %v164, 1
  %v166 = vsel %vm165, %v154, 0.0
  %v167 = vsel %vm165, 0.0, %v154
  %169 = vrot.lane.b32.xlu0 %v167, 32
  %v170 = vpop.permute.xlu0 %169
  %vm172 = vcmask 261120
  %v173 = vsel %vm172, %v166, %v170
  %v175 = vsel %vm62, %v173, 0
  %177 = vmatprep.subr.mxu0 0.0
  %178 = vmatpush1.msra.mxu0 %v146
  %179 = vmatprep.subr.mxu0 0.0
  %180 = vmatpush1.msra.mxu0 %v147
  %181 = vmatprep.subr.mxu0 0.0
  %182 = vmatpush1.msra.mxu0 %v148
  %183 = vmatprep.subr.mxu0 0.0
  %184 = vmatpush1.msra.mxu0 %v149
  %185 = vmatprep.subr.mxu0 0.0
  %186 = vmatpush1.msra.mxu0 %v150
  %187 = vmatprep.subr.mxu0 0.0
  %188 = vmatpush1.msra.mxu0 %v151
  %189 = vmatprep.subr.mxu0 0.0
  %190 = vmatpush1.msra.mxu0 %v152
  %191 = vmatprep.subr.mxu0 0.0
  %192 = vmatpush1.msra.mxu0 %v153
  %193 = vmatprep.subr.mxu0 0.0
  %194 = vmatpush1.msra.mxu0 0.0
  %195 = vmatprep.subr.mxu0 0.0
  %196 = vmatpush1.msra.mxu0 0.0
  %197 = vmatprep.subr.mxu0 0.0
  %198 = vmatpush1.msra.mxu0 0.0
  %199 = vmatprep.subr.mxu0 0.0
  %200 = vmatpush1.msra.mxu0 0.0
  %201 = vmatprep.subr.mxu0 0.0
  %202 = vmatpush1.msra.mxu0 0.0
  %203 = vmatprep.subr.mxu0 0.0
  %204 = vmatpush1.msra.mxu0 0.0
  %205 = vmatprep.subr.mxu0 0.0
  %206 = vmatpush1.msra.mxu0 0.0
  %207 = vmatprep.subr.mxu0 0.0
  %208 = vmatpush1.msra.mxu0 0.0
  %209 = vmatprep.subr.mxu0 0.0
  %210 = vmatpush1.msra.mxu0 0.0
  %211 = vmatprep.subr.mxu0 0.0
  %212 = vmatpush1.msra.mxu0 0.0
  %213 = vmatprep.subr.mxu0 0.0
  %214 = vmatpush1.msra.mxu0 0.0
  %215 = vmatprep.subr.mxu0 0.0
  %216 = vmatpush1.msra.mxu0 0.0
  %217 = vmatprep.subr.mxu0 0.0
  %218 = vmatpush1.msra.mxu0 0.0
  %219 = vmatprep.subr.mxu0 0.0
  %220 = vmatpush1.msra.mxu0 0.0
  %221 = vmatprep.subr.mxu0 0.0
  %222 = vmatpush1.msra.mxu0 0.0
  %223 = vmatprep.subr.mxu0 0.0
  %224 = vmatpush1.msra.mxu0 0.0
  %225 = vmatprep.subr.mxu0 0.0
  %226 = vmatpush1.msra.mxu0 0.0
  %227 = vmatprep.subr.mxu0 0.0
  %228 = vmatpush1.msra.mxu0 0.0
  %229 = vmatprep.subr.mxu0 0.0
  %230 = vmatpush1.msra.mxu0 0.0
  %231 = vmatprep.subr.mxu0 0.0
  %232 = vmatpush1.msra.mxu0 0.0
  %233 = vmatprep.subr.mxu0 0.0
  %234 = vmatpush1.msra.mxu0 0.0
  %235 = vmatprep.subr.mxu0 0.0
  %236 = vmatpush1.msra.mxu0 0.0
  %237 = vmatprep.subr.mxu0 0.0
  %238 = vmatpush1.msra.mxu0 0.0
  %239 = vmatprep.subr.mxu0 0.0
  %240 = vmatpush1.msra.mxu0 0.0
  %241 = vmatprep.mubr.f32.mxu0 0.0
  %242 = vmatmul.mubr.f32.gmra.mrb[0].mxu0 %v175
  %v243 = vpop.f32.mrb[0].mxu0
  %v244 = vadd.f32 0.0, %v243
  %v245 = vpop.f32.mrb[0].mxu0
  %246 = vdwg.mxu0
  %v247 = vadd.f32 %v163, %v244
  %v248 = vxor.u32 %v247, 2147483648
  %v249 = vmul.f32 %v248, 1.442695
  %v250 = vpow.pop %v249
  %v251 = vadd.f32 %v250, 1.0
  %v252 = vrcp.pop %v251
  %v253 = vmul.f32 1.0, %v252
  %v254 = vtanh.pop %v247
  %256 = vrot.lane.b32.xlu0 %v155, 32
  %v257 = vpop.permute.xlu0 %256
  %v259 = vmul.f32 %v253, %v257
  %261 = vrot.lane.b32.xlu0 %v254, 64
  %v262 = vpop.permute.xlu0 %261
  %v264 = vmul.f32 %v253, %v262
  %266 = vrot.lane.b32.xlu0 %v264, 32
  %v267 = vpop.permute.xlu0 %266
  %v269 = vadd.f32 %v259, %v267
  %v270 = vtanh.pop %v269
  %272 = vrot.lane.b32.xlu0 %v270, 64
  %v273 = vpop.permute.xlu0 %272
  %v275 = vmul.f32 %v253, %v273
  %v277 = vrot.slane %v136, 2
  %v279 = vrot.slane %v144, 2
  %v281 = vsel %vm162, %v277, %v279
  %v282 = vsel %vm165, %v275, 0.0
  %v283 = vsel %vm165, 0.0, %v275
  %285 = vrot.lane.b32.xlu0 %v282, 32
  %v286 = vpop.permute.xlu0 %285
  %289 = vrot.lane.b32.xlu0 %v283, 64
  %v290 = vpop.permute.xlu0 %289
  %v292 = vsel %vm172, %v286, %v290
  %v294 = vsel %vm62, %v292, 0
  %296 = vmatprep.subr.mxu0 0.0
  %297 = vmatpush1.msra.mxu0 %v146
  %298 = vmatprep.subr.mxu0 0.0
  %299 = vmatpush1.msra.mxu0 %v147
  %300 = vmatprep.subr.mxu0 0.0
  %301 = vmatpush1.msra.mxu0 %v148
  %302 = vmatprep.subr.mxu0 0.0
  %303 = vmatpush1.msra.mxu0 %v149
  %304 = vmatprep.subr.mxu0 0.0
  %305 = vmatpush1.msra.mxu0 %v150
  %306 = vmatprep.subr.mxu0 0.0
  %307 = vmatpush1.msra.mxu0 %v151
  %308 = vmatprep.subr.mxu0 0.0
  %309 = vmatpush1.msra.mxu0 %v152
  %310 = vmatprep.subr.mxu0 0.0
  %311 = vmatpush1.msra.mxu0 %v153
  %312 = vmatprep.subr.mxu0 0.0
  %313 = vmatpush1.msra.mxu0 0.0
  %314 = vmatprep.subr.mxu0 0.0
  %315 = vmatpush1.msra.mxu0 0.0
  %316 = vmatprep.subr.mxu0 0.0
  %317 = vmatpush1.msra.mxu0 0.0
  %318 = vmatprep.subr.mxu0 0.0
  %319 = vmatpush1.msra.mxu0 0.0
  %320 = vmatprep.subr.mxu0 0.0
  %321 = vmatpush1.msra.mxu0 0.0
  %322 = vmatprep.subr.mxu0 0.0
  %323 = vmatpush1.msra.mxu0 0.0
  %324 = vmatprep.subr.mxu0 0.0
  %325 = vmatpush1.msra.mxu0 0.0
  %326 = vmatprep.subr.mxu0 0.0
  %327 = vmatpush1.msra.mxu0 0.0
  %328 = vmatprep.subr.mxu0 0.0
  %329 = vmatpush1.msra.mxu0 0.0
  %330 = vmatprep.subr.mxu0 0.0
  %331 = vmatpush1.msra.mxu0 0.0
  %332 = vmatprep.subr.mxu0 0.0
  %333 = vmatpush1.msra.mxu0 0.0
  %334 = vmatprep.subr.mxu0 0.0
  %335 = vmatpush1.msra.mxu0 0.0
  %336 = vmatprep.subr.mxu0 0.0
  %337 = vmatpush1.msra.mxu0 0.0
  %338 = vmatprep.subr.mxu0 0.0
  %339 = vmatpush1.msra.mxu0 0.0
  %340 = vmatprep.subr.mxu0 0.0
  %341 = vmatpush1.msra.mxu0 0.0
  %342 = vmatprep.subr.mxu0 0.0
  %343 = vmatpush1.msra.mxu0 0.0
  %344 = vmatprep.subr.mxu0 0.0
  %345 = vmatpush1.msra.mxu0 0.0
  %346 = vmatprep.subr.mxu0 0.0
  %347 = vmatpush1.msra.mxu0 0.0
  %348 = vmatprep.subr.mxu0 0.0
  %349 = vmatpush1.msra.mxu0 0.0
  %350 = vmatprep.subr.mxu0 0.0
  %351 = vmatpush1.msra.mxu0 0.0
  %352 = vmatprep.subr.mxu0 0.0
  %353 = vmatpush1.msra.mxu0 0.0
  %354 = vmatprep.subr.mxu0 0.0
  %355 = vmatpush1.msra.mxu0 0.0
  %356 = vmatprep.subr.mxu0 0.0
  %357 = vmatpush1.msra.mxu0 0.0
  %358 = vmatprep.subr.mxu0 0.0
  %359 = vmatpush1.msra.mxu0 0.0
  %360 = vmatprep.mubr.f32.mxu0 0.0
  %361 = vmatmul.mubr.f32.gmra.mrb[0].mxu0 %v294
  %v362 = vpop.f32.mrb[0].mxu0
  %v363 = vadd.f32 0.0, %v362
  %v364 = vpop.f32.mrb[0].mxu0
  %365 = vdwg.mxu0
  %v366 = vadd.f32 %v281, %v363
  %v367 = vxor.u32 %v366, 2147483648
  %v368 = vmul.f32 %v367, 1.442695
  %v369 = vpow.pop %v368
  %v370 = vadd.f32 %v369, 1.0
  %v371 = vrcp.pop %v370
  %v372 = vmul.f32 1.0, %v371
  %v373 = vtanh.pop %v366
  %v374 = vmul.f32 %v372, %v269
  %376 = vrot.lane.b32.xlu0 %v373, 64
  %v377 = vpop.permute.xlu0 %376
  %v379 = vmul.f32 %v372, %v377
  %381 = vrot.lane.b32.xlu0 %v379, 32
  %v382 = vpop.permute.xlu0 %381
  %v384 = vadd.f32 %v374, %v382
  %v385 = vtanh.pop %v384
  %387 = vrot.lane.b32.xlu0 %v385, 64
  %v388 = vpop.permute.xlu0 %387
  %v390 = vmul.f32 %v372, %v388
  %v391 = vrot.slane %v136, 4
  %v393 = vsel %vm162, %v391, %v144
  %v394 = vsel %vm165, %v390, 0.0
  %v395 = vsel %vm165, 0.0, %v390
  %397 = vrot.lane.b32.xlu0 %v394, 32
  %v398 = vpop.permute.xlu0 %397
  %401 = vrot.lane.b32.xlu0 %v395, 64
  %v402 = vpop.permute.xlu0 %401
  %v404 = vsel %vm172, %v398, %v402
  %v406 = vsel %vm62, %v404, 0
  %408 = vmatprep.subr.mxu0 0.0
  %409 = vmatpush1.msra.mxu0 %v146
  %410 = vmatprep.subr.mxu0 0.0
  %411 = vmatpush1.msra.mxu0 %v147
  %412 = vmatprep.subr.mxu0 0.0
  %413 = vmatpush1.msra.mxu0 %v148
  %414 = vmatprep.subr.mxu0 0.0
  %415 = vmatpush1.msra.mxu0 %v149
  %416 = vmatprep.subr.mxu0 0.0
  %417 = vmatpush1.msra.mxu0 %v150
  %418 = vmatprep.subr.mxu0 0.0
  %419 = vmatpush1.msra.mxu0 %v151
  %420 = vmatprep.subr.mxu0 0.0
  %421 = vmatpush1.msra.mxu0 %v152
  %422 = vmatprep.subr.mxu0 0.0
  %423 = vmatpush1.msra.mxu0 %v153
  %424 = vmatprep.subr.mxu0 0.0
  %425 = vmatpush1.msra.mxu0 0.0
  %426 = vmatprep.subr.mxu0 0.0
  %427 = vmatpush1.msra.mxu0 0.0
  %428 = vmatprep.subr.mxu0 0.0
  %429 = vmatpush1.msra.mxu0 0.0
  %430 = vmatprep.subr.mxu0 0.0
  %431 = vmatpush1.msra.mxu0 0.0
  %432 = vmatprep.subr.mxu0 0.0
  %433 = vmatpush1.msra.mxu0 0.0
  %434 = vmatprep.subr.mxu0 0.0
  %435 = vmatpush1.msra.mxu0 0.0
  %436 = vmatprep.subr.mxu0 0.0
  %437 = vmatpush1.msra.mxu0 0.0
  %438 = vmatprep.subr.mxu0 0.0
  %439 = vmatpush1.msra.mxu0 0.0
  %440 = vmatprep.subr.mxu0 0.0
  %441 = vmatpush1.msra.mxu0 0.0
  %442 = vmatprep.subr.mxu0 0.0
  %443 = vmatpush1.msra.mxu0 0.0
  %444 = vmatprep.subr.mxu0 0.0
  %445 = vmatpush1.msra.mxu0 0.0
  %446 = vmatprep.subr.mxu0 0.0
  %447 = vmatpush1.msra.mxu0 0.0
  %448 = vmatprep.subr.mxu0 0.0
  %449 = vmatpush1.msra.mxu0 0.0
  %450 = vmatprep.subr.mxu0 0.0
  %451 = vmatpush1.msra.mxu0 0.0
  %452 = vmatprep.subr.mxu0 0.0
  %453 = vmatpush1.msra.mxu0 0.0
  %454 = vmatprep.subr.mxu0 0.0
  %455 = vmatpush1.msra.mxu0 0.0
  %456 = vmatprep.subr.mxu0 0.0
  %457 = vmatpush1.msra.mxu0 0.0
  %458 = vmatprep.subr.mxu0 0.0
  %459 = vmatpush1.msra.mxu0 0.0
  %460 = vmatprep.subr.mxu0 0.0
  %461 = vmatpush1.msra.mxu0 0.0
  %462 = vmatprep.subr.mxu0 0.0
  %463 = vmatpush1.msra.mxu0 0.0
  %464 = vmatprep.subr.mxu0 0.0
  %465 = vmatpush1.msra.mxu0 0.0
  %466 = vmatprep.subr.mxu0 0.0
  %467 = vmatpush1.msra.mxu0 0.0
  %468 = vmatprep.subr.mxu0 0.0
  %469 = vmatpush1.msra.mxu0 0.0
  %470 = vmatprep.subr.mxu0 0.0
  %471 = vmatpush1.msra.mxu0 0.0
  %472 = vmatprep.mubr.f32.mxu0 0.0
  %473 = vmatmul.mubr.f32.gmra.mrb[0].mxu0 %v406
  %v474 = vpop.f32.mrb[0].mxu0
  %v475 = vadd.f32 0.0, %v474
  %v476 = vpop.f32.mrb[0].mxu0
  %477 = vdwg.mxu0
  %v478 = vadd.f32 %v393, %v475
  %v479 = vxor.u32 %v478, 2147483648
  %v480 = vmul.f32 %v479, 1.442695
  %v481 = vpow.pop %v480
  %v482 = vadd.f32 %v481, 1.0
  %v483 = vrcp.pop %v482
  %v484 = vmul.f32 1.0, %v483
  %v485 = vtanh.pop %v478
  %v486 = vmul.f32 %v484, %v384
  %488 = vrot.lane.b32.xlu0 %v485, 64
  %v489 = vpop.permute.xlu0 %488
  %v491 = vmul.f32 %v484, %v489
  %493 = vrot.lane.b32.xlu0 %v491, 32
  %v494 = vpop.permute.xlu0 %493
  %v496 = vadd.f32 %v486, %v494
  %v497 = vtanh.pop %v496
  %499 = vrot.lane.b32.xlu0 %v497, 64
  %v500 = vpop.permute.xlu0 %499
  %v502 = vmul.f32 %v484, %v500
  %v503 = vrot.slane %v136, 6
  %v505 = vrot.slane %v144, 6
  %v507 = vsel %vm162, %v503, %v505
  %v508 = vsel %vm165, %v502, 0.0
  %v509 = vsel %vm165, 0.0, %v502
  %511 = vrot.lane.b32.xlu0 %v508, 32
  %v512 = vpop.permute.xlu0 %511
  %515 = vrot.lane.b32.xlu0 %v509, 64
  %v516 = vpop.permute.xlu0 %515
  %v518 = vsel %vm172, %v512, %v516
  %v520 = vsel %vm62, %v518, 0
  %522 = vmatprep.subr.mxu0 0.0
  %523 = vmatpush1.msra.mxu0 %v146
  %524 = vmatprep.subr.mxu0 0.0
  %525 = vmatpush1.msra.mxu0 %v147
  %526 = vmatprep.subr.mxu0 0.0
  %527 = vmatpush1.msra.mxu0 %v148
  %528 = vmatprep.subr.mxu0 0.0
  %529 = vmatpush1.msra.mxu0 %v149
  %530 = vmatprep.subr.mxu0 0.0
  %531 = vmatpush1.msra.mxu0 %v150
  %532 = vmatprep.subr.mxu0 0.0
  %533 = vmatpush1.msra.mxu0 %v151
  %534 = vmatprep.subr.mxu0 0.0
  %535 = vmatpush1.msra.mxu0 %v152
  %536 = vmatprep.subr.mxu0 0.0
  %537 = vmatpush1.msra.mxu0 %v153
  %538 = vmatprep.subr.mxu0 0.0
  %539 = vmatpush1.msra.mxu0 0.0
  %540 = vmatprep.subr.mxu0 0.0
  %541 = vmatpush1.msra.mxu0 0.0
  %542 = vmatprep.subr.mxu0 0.0
  %543 = vmatpush1.msra.mxu0 0.0
  %544 = vmatprep.subr.mxu0 0.0
  %545 = vmatpush1.msra.mxu0 0.0
  %546 = vmatprep.subr.mxu0 0.0
  %547 = vmatpush1.msra.mxu0 0.0
  %548 = vmatprep.subr.mxu0 0.0
  %549 = vmatpush1.msra.mxu0 0.0
  %550 = vmatprep.subr.mxu0 0.0
  %551 = vmatpush1.msra.mxu0 0.0
  %552 = vmatprep.subr.mxu0 0.0
  %553 = vmatpush1.msra.mxu0 0.0
  %554 = vmatprep.subr.mxu0 0.0
  %555 = vmatpush1.msra.mxu0 0.0
  %556 = vmatprep.subr.mxu0 0.0
  %557 = vmatpush1.msra.mxu0 0.0
  %558 = vmatprep.subr.mxu0 0.0
  %559 = vmatpush1.msra.mxu0 0.0
  %560 = vmatprep.subr.mxu0 0.0
  %561 = vmatpush1.msra.mxu0 0.0
  %562 = vmatprep.subr.mxu0 0.0
  %563 = vmatpush1.msra.mxu0 0.0
  %564 = vmatprep.subr.mxu0 0.0
  %565 = vmatpush1.msra.mxu0 0.0
  %566 = vmatprep.subr.mxu0 0.0
  %567 = vmatpush1.msra.mxu0 0.0
  %568 = vmatprep.subr.mxu0 0.0
  %569 = vmatpush1.msra.mxu0 0.0
  %570 = vmatprep.subr.mxu0 0.0
  %571 = vmatpush1.msra.mxu0 0.0
  %572 = vmatprep.subr.mxu0 0.0
  %573 = vmatpush1.msra.mxu0 0.0
  %574 = vmatprep.subr.mxu0 0.0
  %575 = vmatpush1.msra.mxu0 0.0
  %576 = vmatprep.subr.mxu0 0.0
  %577 = vmatpush1.msra.mxu0 0.0
  %578 = vmatprep.subr.mxu0 0.0
  %579 = vmatpush1.msra.mxu0 0.0
  %580 = vmatprep.subr.mxu0 0.0
  %581 = vmatpush1.msra.mxu0 0.0
  %582 = vmatprep.subr.mxu0 0.0
  %583 = vmatpush1.msra.mxu0 0.0
  %584 = vmatprep.subr.mxu0 0.0
  %585 = vmatpush1.msra.mxu0 0.0
  %586 = vmatprep.mubr.f32.mxu0 0.0
  %587 = vmatmul.mubr.f32.gmra.mrb[0].mxu0 %v520
  %v588 = vpop.f32.mrb[0].mxu0
  %v589 = vadd.f32 0.0, %v588
  %v590 = vpop.f32.mrb[0].mxu0
  %591 = vdwg.mxu0
  %v592 = vadd.f32 %v507, %v589
  %v593 = vxor.u32 %v592, 2147483648
  %v594 = vmul.f32 %v593, 1.442695
  %v595 = vpow.pop %v594
  %v596 = vadd.f32 %v595, 1.0
  %v597 = vrcp.pop %v596
  %v598 = vmul.f32 1.0, %v597
  %v599 = vtanh.pop %v592
  %v600 = vmul.f32 %v598, %v496
  %602 = vrot.lane.b32.xlu0 %v599, 64
  %v603 = vpop.permute.xlu0 %602
  %v605 = vmul.f32 %v598, %v603
  %607 = vrot.lane.b32.xlu0 %v605, 32
  %v608 = vpop.permute.xlu0 %607
  %v610 = vadd.f32 %v600, %v608
  %v611 = vtanh.pop %v610
  %613 = vrot.lane.b32.xlu0 %v611, 64
  %v614 = vpop.permute.xlu0 %613
  %v616 = vmul.f32 %v598, %v614
  %v618 = vrot.slane %v138, 4
  %v620 = vsel %vm162, %v142, %v618
  %v621 = vsel %vm165, %v616, 0.0
  %v622 = vsel %vm165, 0.0, %v616
  %624 = vrot.lane.b32.xlu0 %v621, 32
  %v625 = vpop.permute.xlu0 %624
  %628 = vrot.lane.b32.xlu0 %v622, 64
  %v629 = vpop.permute.xlu0 %628
  %v631 = vsel %vm172, %v625, %v629
  %v633 = vsel %vm62, %v631, 0
  %635 = vmatprep.subr.mxu0 0.0
  %636 = vmatpush1.msra.mxu0 %v146
  %637 = vmatprep.subr.mxu0 0.0
  %638 = vmatpush1.msra.mxu0 %v147
  %639 = vmatprep.subr.mxu0 0.0
  %640 = vmatpush1.msra.mxu0 %v148
  %641 = vmatprep.subr.mxu0 0.0
  %642 = vmatpush1.msra.mxu0 %v149
  %643 = vmatprep.subr.mxu0 0.0
  %644 = vmatpush1.msra.mxu0 %v150
  %645 = vmatprep.subr.mxu0 0.0
  %646 = vmatpush1.msra.mxu0 %v151
  %647 = vmatprep.subr.mxu0 0.0
  %648 = vmatpush1.msra.mxu0 %v152
  %649 = vmatprep.subr.mxu0 0.0
  %650 = vmatpush1.msra.mxu0 %v153
  %651 = vmatprep.subr.mxu0 0.0
  %652 = vmatpush1.msra.mxu0 0.0
  %653 = vmatprep.subr.mxu0 0.0
  %654 = vmatpush1.msra.mxu0 0.0
  %655 = vmatprep.subr.mxu0 0.0
  %656 = vmatpush1.msra.mxu0 0.0
  %657 = vmatprep.subr.mxu0 0.0
  %658 = vmatpush1.msra.mxu0 0.0
  %659 = vmatprep.subr.mxu0 0.0
  %660 = vmatpush1.msra.mxu0 0.0
  %661 = vmatprep.subr.mxu0 0.0
  %662 = vmatpush1.msra.mxu0 0.0
  %663 = vmatprep.subr.mxu0 0.0
  %664 = vmatpush1.msra.mxu0 0.0
  %665 = vmatprep.subr.mxu0 0.0
  %666 = vmatpush1.msra.mxu0 0.0
  %667 = vmatprep.subr.mxu0 0.0
  %668 = vmatpush1.msra.mxu0 0.0
  %669 = vmatprep.subr.mxu0 0.0
  %670 = vmatpush1.msra.mxu0 0.0
  %671 = vmatprep.subr.mxu0 0.0
  %672 = vmatpush1.msra.mxu0 0.0
  %673 = vmatprep.subr.mxu0 0.0
  %674 = vmatpush1.msra.mxu0 0.0
  %675 = vmatprep.subr.mxu0 0.0
  %676 = vmatpush1.msra.mxu0 0.0
  %677 = vmatprep.subr.mxu0 0.0
  %678 = vmatpush1.msra.mxu0 0.0
  %679 = vmatprep.subr.mxu0 0.0
  %680 = vmatpush1.msra.mxu0 0.0
  %681 = vmatprep.subr.mxu0 0.0
  %682 = vmatpush1.msra.mxu0 0.0
  %683 = vmatprep.subr.mxu0 0.0
  %684 = vmatpush1.msra.mxu0 0.0
  %685 = vmatprep.subr.mxu0 0.0
  %686 = vmatpush1.msra.mxu0 0.0
  %687 = vmatprep.subr.mxu0 0.0
  %688 = vmatpush1.msra.mxu0 0.0
  %689 = vmatprep.subr.mxu0 0.0
  %690 = vmatpush1.msra.mxu0 0.0
  %691 = vmatprep.subr.mxu0 0.0
  %692 = vmatpush1.msra.mxu0 0.0
  %693 = vmatprep.subr.mxu0 0.0
  %694 = vmatpush1.msra.mxu0 0.0
  %695 = vmatprep.subr.mxu0 0.0
  %696 = vmatpush1.msra.mxu0 0.0
  %697 = vmatprep.subr.mxu0 0.0
  %698 = vmatpush1.msra.mxu0 0.0
  %699 = vmatprep.mubr.f32.mxu0 0.0
  %700 = vmatmul.mubr.f32.gmra.mrb[0].mxu0 %v633
  %v701 = vpop.f32.mrb[0].mxu0
  %v702 = vadd.f32 0.0, %v701
  %v703 = vpop.f32.mrb[0].mxu0
  %704 = vdwg.mxu0
  %v705 = vadd.f32 %v620, %v702
  %v706 = vxor.u32 %v705, 2147483648
  %v707 = vmul.f32 %v706, 1.442695
  %v708 = vpow.pop %v707
  %v709 = vadd.f32 %v708, 1.0
  %v710 = vrcp.pop %v709
  %v711 = vmul.f32 1.0, %v710
  %v712 = vtanh.pop %v705
  %v713 = vmul.f32 %v711, %v610
  %715 = vrot.lane.b32.xlu0 %v712, 64
  %v716 = vpop.permute.xlu0 %715
  %v718 = vmul.f32 %v711, %v716
  %720 = vrot.lane.b32.xlu0 %v718, 32
  %v721 = vpop.permute.xlu0 %720
  %v723 = vadd.f32 %v713, %v721
  %v724 = vtanh.pop %v723
  %726 = vrot.lane.b32.xlu0 %v724, 64
  %v727 = vpop.permute.xlu0 %726
  %v729 = vmul.f32 %v711, %v727
  %v731 = vrot.slane %v142, 2
  %v733 = vrot.slane %v138, 2
  %v735 = vsel %vm162, %v731, %v733
  %v736 = vsel %vm165, %v729, 0.0
  %v737 = vsel %vm165, 0.0, %v729
  %739 = vrot.lane.b32.xlu0 %v736, 32
  %v740 = vpop.permute.xlu0 %739
  %743 = vrot.lane.b32.xlu0 %v737, 64
  %v744 = vpop.permute.xlu0 %743
  %v746 = vsel %vm172, %v740, %v744
  %v748 = vsel %vm62, %v746, 0
  %750 = vmatprep.subr.mxu0 0.0
  %751 = vmatpush1.msra.mxu0 %v146
  %752 = vmatprep.subr.mxu0 0.0
  %753 = vmatpush1.msra.mxu0 %v147
  %754 = vmatprep.subr.mxu0 0.0
  %755 = vmatpush1.msra.mxu0 %v148
  %756 = vmatprep.subr.mxu0 0.0
  %757 = vmatpush1.msra.mxu0 %v149
  %758 = vmatprep.subr.mxu0 0.0
  %759 = vmatpush1.msra.mxu0 %v150
  %760 = vmatprep.subr.mxu0 0.0
  %761 = vmatpush1.msra.mxu0 %v151
  %762 = vmatprep.subr.mxu0 0.0
  %763 = vmatpush1.msra.mxu0 %v152
  %764 = vmatprep.subr.mxu0 0.0
  %765 = vmatpush1.msra.mxu0 %v153
  %766 = vmatprep.subr.mxu0 0.0
  %767 = vmatpush1.msra.mxu0 0.0
  %768 = vmatprep.subr.mxu0 0.0
  %769 = vmatpush1.msra.mxu0 0.0
  %770 = vmatprep.subr.mxu0 0.0
  %771 = vmatpush1.msra.mxu0 0.0
  %772 = vmatprep.subr.mxu0 0.0
  %773 = vmatpush1.msra.mxu0 0.0
  %774 = vmatprep.subr.mxu0 0.0
  %775 = vmatpush1.msra.mxu0 0.0
  %776 = vmatprep.subr.mxu0 0.0
  %777 = vmatpush1.msra.mxu0 0.0
  %778 = vmatprep.subr.mxu0 0.0
  %779 = vmatpush1.msra.mxu0 0.0
  %780 = vmatprep.subr.mxu0 0.0
  %781 = vmatpush1.msra.mxu0 0.0
  %782 = vmatprep.subr.mxu0 0.0
  %783 = vmatpush1.msra.mxu0 0.0
  %784 = vmatprep.subr.mxu0 0.0
  %785 = vmatpush1.msra.mxu0 0.0
  %786 = vmatprep.subr.mxu0 0.0
  %787 = vmatpush1.msra.mxu0 0.0
  %788 = vmatprep.subr.mxu0 0.0
  %789 = vmatpush1.msra.mxu0 0.0
  %790 = vmatprep.subr.mxu0 0.0
  %791 = vmatpush1.msra.mxu0 0.0
  %792 = vmatprep.subr.mxu0 0.0
  %793 = vmatpush1.msra.mxu0 0.0
  %794 = vmatprep.subr.mxu0 0.0
  %795 = vmatpush1.msra.mxu0 0.0
  %796 = vmatprep.subr.mxu0 0.0
  %797 = vmatpush1.msra.mxu0 0.0
  %798 = vmatprep.subr.mxu0 0.0
  %799 = vmatpush1.msra.mxu0 0.0
  %800 = vmatprep.subr.mxu0 0.0
  %801 = vmatpush1.msra.mxu0 0.0
  %802 = vmatprep.subr.mxu0 0.0
  %803 = vmatpush1.msra.mxu0 0.0
  %804 = vmatprep.subr.mxu0 0.0
  %805 = vmatpush1.msra.mxu0 0.0
  %806 = vmatprep.subr.mxu0 0.0
  %807 = vmatpush1.msra.mxu0 0.0
  %808 = vmatprep.subr.mxu0 0.0
  %809 = vmatpush1.msra.mxu0 0.0
  %810 = vmatprep.subr.mxu0 0.0
  %811 = vmatpush1.msra.mxu0 0.0
  %812 = vmatprep.subr.mxu0 0.0
  %813 = vmatpush1.msra.mxu0 0.0
  %814 = vmatprep.mubr.f32.mxu0 0.0
  %815 = vmatmul.mubr.f32.gmra.mrb[0].mxu0 %v748
  %v816 = vpop.f32.mrb[0].mxu0
  %v817 = vadd.f32 0.0, %v816
  %v818 = vpop.f32.mrb[0].mxu0
  %819 = vdwg.mxu0
  %v820 = vadd.f32 %v735, %v817
  %v821 = vxor.u32 %v820, 2147483648
  %v822 = vmul.f32 %v821, 1.442695
  %v823 = vpow.pop %v822
  %v824 = vadd.f32 %v823, 1.0
  %v825 = vrcp.pop %v824
  %v826 = vmul.f32 1.0, %v825
  %v827 = vtanh.pop %v820
  %v828 = vmul.f32 %v826, %v723
  %830 = vrot.lane.b32.xlu0 %v827, 64
  %v831 = vpop.permute.xlu0 %830
  %v833 = vmul.f32 %v826, %v831
  %835 = vrot.lane.b32.xlu0 %v833, 32
  %v836 = vpop.permute.xlu0 %835
  %v838 = vadd.f32 %v828, %v836
  %v839 = vtanh.pop %v838
  %841 = vrot.lane.b32.xlu0 %v839, 64
  %v842 = vpop.permute.xlu0 %841
  %v844 = vmul.f32 %v826, %v842
  %v845 = vrot.slane %v142, 4
  %v847 = vsel %vm162, %v845, %v138
  %v848 = vsel %vm165, %v844, 0.0
  %v849 = vsel %vm165, 0.0, %v844
  %851 = vrot.lane.b32.xlu0 %v848, 32
  %v852 = vpop.permute.xlu0 %851
  %855 = vrot.lane.b32.xlu0 %v849, 64
  %v856 = vpop.permute.xlu0 %855
  %v858 = vsel %vm172, %v852, %v856
  %v860 = vsel %vm62, %v858, 0
  %862 = vmatprep.subr.mxu0 0.0
  %863 = vmatpush1.msra.mxu0 %v146
  %864 = vmatprep.subr.mxu0 0.0
  %865 = vmatpush1.msra.mxu0 %v147
  %866 = vmatprep.subr.mxu0 0.0
  %867 = vmatpush1.msra.mxu0 %v148
  %868 = vmatprep.subr.mxu0 0.0
  %869 = vmatpush1.msra.mxu0 %v149
  %870 = vmatprep.subr.mxu0 0.0
  %871 = vmatpush1.msra.mxu0 %v150
  %872 = vmatprep.subr.mxu0 0.0
  %873 = vmatpush1.msra.mxu0 %v151
  %874 = vmatprep.subr.mxu0 0.0
  %875 = vmatpush1.msra.mxu0 %v152
  %876 = vmatprep.subr.mxu0 0.0
  %877 = vmatpush1.msra.mxu0 %v153
  %878 = vmatprep.subr.mxu0 0.0
  %879 = vmatpush1.msra.mxu0 0.0
  %880 = vmatprep.subr.mxu0 0.0
  %881 = vmatpush1.msra.mxu0 0.0
  %882 = vmatprep.subr.mxu0 0.0
  %883 = vmatpush1.msra.mxu0 0.0
  %884 = vmatprep.subr.mxu0 0.0
  %885 = vmatpush1.msra.mxu0 0.0
  %886 = vmatprep.subr.mxu0 0.0
  %887 = vmatpush1.msra.mxu0 0.0
  %888 = vmatprep.subr.mxu0 0.0
  %889 = vmatpush1.msra.mxu0 0.0
  %890 = vmatprep.subr.mxu0 0.0
  %891 = vmatpush1.msra.mxu0 0.0
  %892 = vmatprep.subr.mxu0 0.0
  %893 = vmatpush1.msra.mxu0 0.0
  %894 = vmatprep.subr.mxu0 0.0
  %895 = vmatpush1.msra.mxu0 0.0
  %896 = vmatprep.subr.mxu0 0.0
  %897 = vmatpush1.msra.mxu0 0.0
  %898 = vmatprep.subr.mxu0 0.0
  %899 = vmatpush1.msra.mxu0 0.0
  %900 = vmatprep.subr.mxu0 0.0
  %901 = vmatpush1.msra.mxu0 0.0
  %902 = vmatprep.subr.mxu0 0.0
  %903 = vmatpush1.msra.mxu0 0.0
  %904 = vmatprep.subr.mxu0 0.0
  %905 = vmatpush1.msra.mxu0 0.0
  %906 = vmatprep.subr.mxu0 0.0
  %907 = vmatpush1.msra.mxu0 0.0
  %908 = vmatprep.subr.mxu0 0.0
  %909 = vmatpush1.msra.mxu0 0.0
  %910 = vmatprep.subr.mxu0 0.0
  %911 = vmatpush1.msra.mxu0 0.0
  %912 = vmatprep.subr.mxu0 0.0
  %913 = vmatpush1.msra.mxu0 0.0
  %914 = vmatprep.subr.mxu0 0.0
  %915 = vmatpush1.msra.mxu0 0.0
  %916 = vmatprep.subr.mxu0 0.0
  %917 = vmatpush1.msra.mxu0 0.0
  %918 = vmatprep.subr.mxu0 0.0
  %919 = vmatpush1.msra.mxu0 0.0
  %920 = vmatprep.subr.mxu0 0.0
  %921 = vmatpush1.msra.mxu0 0.0
  %922 = vmatprep.subr.mxu0 0.0
  %923 = vmatpush1.msra.mxu0 0.0
  %924 = vmatprep.subr.mxu0 0.0
  %925 = vmatpush1.msra.mxu0 0.0
  %926 = vmatprep.mubr.f32.mxu0 0.0
  %927 = vmatmul.mubr.f32.gmra.mrb[0].mxu0 %v860
  %v928 = vpop.f32.mrb[0].mxu0
  %v929 = vadd.f32 0.0, %v928
  %v930 = vpop.f32.mrb[0].mxu0
  %931 = vdwg.mxu0
  %v932 = vadd.f32 %v847, %v929
  %v933 = vxor.u32 %v932, 2147483648
  %v934 = vmul.f32 %v933, 1.442695
  %v935 = vpow.pop %v934
  %v936 = vadd.f32 %v935, 1.0
  %v937 = vrcp.pop %v936
  %v938 = vmul.f32 1.0, %v937
  %v939 = vtanh.pop %v932
  %v940 = vmul.f32 %v938, %v838
  %942 = vrot.lane.b32.xlu0 %v939, 64
  %v943 = vpop.permute.xlu0 %942
  %v945 = vmul.f32 %v938, %v943
  %947 = vrot.lane.b32.xlu0 %v945, 32
  %v948 = vpop.permute.xlu0 %947
  %v950 = vadd.f32 %v940, %v948
  %v951 = vtanh.pop %v950
  %953 = vrot.lane.b32.xlu0 %v951, 64
  %v954 = vpop.permute.xlu0 %953
  %v956 = vmul.f32 %v938, %v954
  %v957 = vrot.slane %v142, 6
  %v959 = vrot.slane %v138, 6
  %v961 = vsel %vm162, %v957, %v959
  %v962 = vsel %vm165, %v956, 0.0
  %v963 = vsel %vm165, 0.0, %v956
  %965 = vrot.lane.b32.xlu0 %v962, 32
  %v966 = vpop.permute.xlu0 %965
  %969 = vrot.lane.b32.xlu0 %v963, 64
  %v970 = vpop.permute.xlu0 %969
  %v972 = vsel %vm172, %v966, %v970
  %v974 = vsel %vm62, %v972, 0
  %976 = vmatprep.subr.mxu0 0.0
  %977 = vmatpush1.msra.mxu0 %v146
  %978 = vmatprep.subr.mxu0 0.0
  %979 = vmatpush1.msra.mxu0 %v147
  %980 = vmatprep.subr.mxu0 0.0
  %981 = vmatpush1.msra.mxu0 %v148
  %982 = vmatprep.subr.mxu0 0.0
  %983 = vmatpush1.msra.mxu0 %v149
  %984 = vmatprep.subr.mxu0 0.0
  %985 = vmatpush1.msra.mxu0 %v150
  %986 = vmatprep.subr.mxu0 0.0
  %987 = vmatpush1.msra.mxu0 %v151
  %988 = vmatprep.subr.mxu0 0.0
  %989 = vmatpush1.msra.mxu0 %v152
  %990 = vmatprep.subr.mxu0 0.0
  %991 = vmatpush1.msra.mxu0 %v153
  %992 = vmatprep.subr.mxu0 0.0
  %993 = vmatpush1.msra.mxu0 0.0
  %994 = vmatprep.subr.mxu0 0.0
  %995 = vmatpush1.msra.mxu0 0.0
  %996 = vmatprep.subr.mxu0 0.0
  %997 = vmatpush1.msra.mxu0 0.0
  %998 = vmatprep.subr.mxu0 0.0
  %999 = vmatpush1.msra.mxu0 0.0
  %1000 = vmatprep.subr.mxu0 0.0
  %1001 = vmatpush1.msra.mxu0 0.0
  %1002 = vmatprep.subr.mxu0 0.0
  %1003 = vmatpush1.msra.mxu0 0.0
  %1004 = vmatprep.subr.mxu0 0.0
  %1005 = vmatpush1.msra.mxu0 0.0
  %1006 = vmatprep.subr.mxu0 0.0
  %1007 = vmatpush1.msra.mxu0 0.0
  %1008 = vmatprep.subr.mxu0 0.0
  %1009 = vmatpush1.msra.mxu0 0.0
  %1010 = vmatprep.subr.mxu0 0.0
  %1011 = vmatpush1.msra.mxu0 0.0
  %1012 = vmatprep.subr.mxu0 0.0
  %1013 = vmatpush1.msra.mxu0 0.0
  %1014 = vmatprep.subr.mxu0 0.0
  %1015 = vmatpush1.msra.mxu0 0.0
  %1016 = vmatprep.subr.mxu0 0.0
  %1017 = vmatpush1.msra.mxu0 0.0
  %1018 = vmatprep.subr.mxu0 0.0
  %1019 = vmatpush1.msra.mxu0 0.0
  %1020 = vmatprep.subr.mxu0 0.0
  %1021 = vmatpush1.msra.mxu0 0.0
  %1022 = vmatprep.subr.mxu0 0.0
  %1023 = vmatpush1.msra.mxu0 0.0
  %1024 = vmatprep.subr.mxu0 0.0
  %1025 = vmatpush1.msra.mxu0 0.0
  %1026 = vmatprep.subr.mxu0 0.0
  %1027 = vmatpush1.msra.mxu0 0.0
  %1028 = vmatprep.subr.mxu0 0.0
  %1029 = vmatpush1.msra.mxu0 0.0
  %1030 = vmatprep.subr.mxu0 0.0
  %1031 = vmatpush1.msra.mxu0 0.0
  %1032 = vmatprep.subr.mxu0 0.0
  %1033 = vmatpush1.msra.mxu0 0.0
  %1034 = vmatprep.subr.mxu0 0.0
  %1035 = vmatpush1.msra.mxu0 0.0
  %1036 = vmatprep.subr.mxu0 0.0
  %1037 = vmatpush1.msra.mxu0 0.0
  %1038 = vmatprep.subr.mxu0 0.0
  %1039 = vmatpush1.msra.mxu0 0.0
  %1040 = vmatprep.mubr.f32.mxu0 0.0
  %1041 = vmatmul.mubr.f32.gmra.mrb[0].mxu0 %v974
  %v1042 = vpop.f32.mrb[0].mxu0
  %v1043 = vadd.f32 0.0, %v1042
  %v1044 = vpop.f32.mrb[0].mxu0
  %1045 = vdwg.mxu0
  %v1046 = vadd.f32 %v961, %v1043
  %v1047 = vxor.u32 %v1046, 2147483648
  %v1048 = vmul.f32 %v1047, 1.442695
  %v1049 = vpow.pop %v1048
  %v1050 = vadd.f32 %v1049, 1.0
  %v1051 = vrcp.pop %v1050
  %v1052 = vmul.f32 1.0, %v1051
  %v1053 = vtanh.pop %v1046
  %v1054 = vmul.f32 %v1052, %v950
  %1056 = vrot.lane.b32.xlu0 %v1053, 64
  %v1057 = vpop.permute.xlu0 %1056
  %v1059 = vmul.f32 %v1052, %v1057
  %1061 = vrot.lane.b32.xlu0 %v1059, 32
  %v1062 = vpop.permute.xlu0 %1061
  %v1064 = vadd.f32 %v1054, %v1062
  %v1065 = vtanh.pop %v1064
  %1067 = vrot.lane.b32.xlu0 %v1065, 64
  %v1068 = vpop.permute.xlu0 %1067
  %v1070 = vmul.f32 %v1052, %v1068
  %1072 = vrot.lane.b32.xlu0 %v275, 32
  %v1073 = vpop.permute.xlu0 %1072
  %v1076 = vrot.slane %v1070, 2
  %1077 = vrot.lane.b32.xlu0 %v1076, 64
  %v1078 = vpop.permute.xlu0 %1077
  %v1080 = vsel %vm172, %v1073, %v1078
  %1082 = vrot.lane.b32.xlu0 %v390, 32
  %v1083 = vpop.permute.xlu0 %1082
  %v1086 = vrot.slane %v956, 2
  %1087 = vrot.lane.b32.xlu0 %v1086, 64
  %v1088 = vpop.permute.xlu0 %1087
  %v1090 = vsel %vm172, %v1083, %v1088
  %1092 = vrot.lane.b32.xlu0 %v502, 32
  %v1093 = vpop.permute.xlu0 %1092
  %v1096 = vrot.slane %v844, 2
  %1097 = vrot.lane.b32.xlu0 %v1096, 64
  %v1098 = vpop.permute.xlu0 %1097
  %v1100 = vsel %vm172, %v1093, %v1098
  %1102 = vrot.lane.b32.xlu0 %v616, 32
  %v1103 = vpop.permute.xlu0 %1102
  %v1106 = vrot.slane %v729, 2
  %1107 = vrot.lane.b32.xlu0 %v1106, 64
  %v1108 = vpop.permute.xlu0 %1107
  %v1110 = vsel %vm172, %v1103, %v1108
  %1111 = vrot.lane.b32.xlu0 %v729, 32
  %v1112 = vpop.permute.xlu0 %1111
  %v1114 = vrot.slane %v616, 2
  %1115 = vrot.lane.b32.xlu0 %v1114, 64
  %v1116 = vpop.permute.xlu0 %1115
  %v1118 = vsel %vm172, %v1112, %v1116
  %1119 = vrot.lane.b32.xlu0 %v844, 32
  %v1120 = vpop.permute.xlu0 %1119
  %v1122 = vrot.slane %v502, 2
  %1123 = vrot.lane.b32.xlu0 %v1122, 64
  %v1124 = vpop.permute.xlu0 %1123
  %v1126 = vsel %vm172, %v1120, %v1124
  %1127 = vrot.lane.b32.xlu0 %v956, 32
  %v1128 = vpop.permute.xlu0 %1127
  %v1130 = vrot.slane %v390, 2
  %1131 = vrot.lane.b32.xlu0 %v1130, 64
  %v1132 = vpop.permute.xlu0 %1131
  %v1134 = vsel %vm172, %v1128, %v1132
  %1135 = vrot.lane.b32.xlu0 %v1070, 32
  %v1136 = vpop.permute.xlu0 %1135
  %v1138 = vrot.slane %v275, 2
  %1139 = vrot.lane.b32.xlu0 %v1138, 64
  %v1140 = vpop.permute.xlu0 %1139
  %v1142 = vsel %vm172, %v1136, %v1140
  %v1144 = vrot.slane %v1090, 6
  %v1147 = vrot.slane %v1100, 4
  %v1150 = vrot.slane %v1110, 2
  %v1153 = vrot.slane %v1126, 6
  %v1156 = vrot.slane %v1134, 4
  %v1159 = vrot.slane %v1142, 2
  %v1161 = vsel %vm162, %v1080, %v1144
  %vm1162 = vcmask 1043456
  %v1163 = vsel %vm1162, %v1161, %v1147
  %vm1164 = vcmask 1045504
  %v1165 = vsel %vm1164, %v1163, %v1150
  %v1166 = vsel %vm162, %v1118, %v1153
  %v1167 = vsel %vm1162, %v1166, %v1156
  %v1168 = vsel %vm1164, %v1167, %v1159
  %v1169 = vld [vmem:[%s6] sm:$0xff]
  %v1170 = vld [vmem:[%s6 + $0x8] sm:$0xff]
  %v1171 = vld [vmem:[%s6 + $0x10] sm:$0xff]
  %v1172 = vld [vmem:[%s6 + $0x18] sm:$0xff]
  %v1173 = vld [vmem:[%s6 + $0x20] sm:$0xff]
  %v1174 = vld [vmem:[%s6 + $0x28] sm:$0xff]
  %v1175 = vld [vmem:[%s6 + $0x30] sm:$0xff]
  %v1176 = vld [vmem:[%s6 + $0x38] sm:$0xff]
  %v1177 = vld [vmem:[%s7] sm:$0x1]
  %v1179 = vlaneseq
  %v1180 = vshrl.u32 %v1179, 7
  %v1181 = vsub.s32 0, %v1180
  %v1182 = vrot.slane %v1177, %v1181
  %v1185 = vsel %vm62, %v1165, 0
  %v1188 = vsel %vm62, %v1168, 0
  %1190 = vmatprep.subr.mxu0 0.0
  %1191 = vmatpush1.msra.mxu0 %v1169
  %1192 = vmatprep.subr.mxu0 0.0
  %1193 = vmatpush1.msra.mxu0 %v1170
  %1194 = vmatprep.subr.mxu0 0.0
  %1195 = vmatpush1.msra.mxu0 %v1171
  %1196 = vmatprep.subr.mxu0 0.0
  %1197 = vmatpush1.msra.mxu0 %v1172
  %1198 = vmatprep.subr.mxu0 0.0
  %1199 = vmatpush1.msra.mxu0 %v1173
  %1200 = vmatprep.subr.mxu0 0.0
  %1201 = vmatpush1.msra.mxu0 %v1174
  %1202 = vmatprep.subr.mxu0 0.0
  %1203 = vmatpush1.msra.mxu0 %v1175
  %1204 = vmatprep.subr.mxu0 0.0
  %1205 = vmatpush1.msra.mxu0 %v1176
  %1206 = vmatprep.subr.mxu0 0.0
  %1207 = vmatpush1.msra.mxu0 0.0
  %1208 = vmatprep.subr.mxu0 0.0
  %1209 = vmatpush1.msra.mxu0 0.0
  %1210 = vmatprep.subr.mxu0 0.0
  %1211 = vmatpush1.msra.mxu0 0.0
  %1212 = vmatprep.subr.mxu0 0.0
  %1213 = vmatpush1.msra.mxu0 0.0
  %1214 = vmatprep.subr.mxu0 0.0
  %1215 = vmatpush1.msra.mxu0 0.0
  %1216 = vmatprep.subr.mxu0 0.0
  %1217 = vmatpush1.msra.mxu0 0.0
  %1218 = vmatprep.subr.mxu0 0.0
  %1219 = vmatpush1.msra.mxu0 0.0
  %1220 = vmatprep.subr.mxu0 0.0
  %1221 = vmatpush1.msra.mxu0 0.0
  %1222 = vmatprep.subr.mxu0 0.0
  %1223 = vmatpush1.msra.mxu0 0.0
  %1224 = vmatprep.subr.mxu0 0.0
  %1225 = vmatpush1.msra.mxu0 0.0
  %1226 = vmatprep.subr.mxu0 0.0
  %1227 = vmatpush1.msra.mxu0 0.0
  %1228 = vmatprep.subr.mxu0 0.0
  %1229 = vmatpush1.msra.mxu0 0.0
  %1230 = vmatprep.subr.mxu0 0.0
  %1231 = vmatpush1.msra.mxu0 0.0
  %1232 = vmatprep.subr.mxu0 0.0
  %1233 = vmatpush1.msra.mxu0 0.0
  %1234 = vmatprep.subr.mxu0 0.0
  %1235 = vmatpush1.msra.mxu0 0.0
  %1236 = vmatprep.subr.mxu0 0.0
  %1237 = vmatpush1.msra.mxu0 0.0
  %1238 = vmatprep.subr.mxu0 0.0
  %1239 = vmatpush1.msra.mxu0 0.0
  %1240 = vmatprep.subr.mxu0 0.0
  %1241 = vmatpush1.msra.mxu0 0.0
  %1242 = vmatprep.subr.mxu0 0.0
  %1243 = vmatpush1.msra.mxu0 0.0
  %1244 = vmatprep.subr.mxu0 0.0
  %1245 = vmatpush1.msra.mxu0 0.0
  %1246 = vmatprep.subr.mxu0 0.0
  %1247 = vmatpush1.msra.mxu0 0.0
  %1248 = vmatprep.subr.mxu0 0.0
  %1249 = vmatpush1.msra.mxu0 0.0
  %1250 = vmatprep.subr.mxu0 0.0
  %1251 = vmatpush1.msra.mxu0 0.0
  %1252 = vmatprep.subr.mxu0 0.0
  %1253 = vmatpush1.msra.mxu0 0.0
  %1254 = vmatprep.mubr.f32.mxu0 0.0
  %1255 = vmatmul.mubr.f32.gmra.mrb[0].mxu0 %v1185
  %v1256 = vpop.f32.mrb[0].mxu0
  %v1257 = vadd.f32 %v1182, %v1256
  %v1258 = vpop.f32.mrb[0].mxu0
  %1259 = vmatprep.mubr.f32.mxu0 0.0
  %1260 = vmatmul.mubr.f32.gmra.mrb[0].mxu0 %v1188
  %v1261 = vpop.f32.mrb[0].mxu0
  %v1262 = vadd.f32 %v1182, %v1261
  %v1263 = vpop.f32.mrb[0].mxu0
  %1264 = vdwg.mxu0
  %1265 = vst [vmem:[%s8] sm:$0xff] %v1257
  %1266 = vst [vmem:[%s8 + $0x8] sm:$0xff] %v1262
  %vm1267 = vcmask 257024
  %1268 = vst.msk [vmem:[%s9] sm:$0xf] %vm1267, %v1136
  %1270 = vrot.lane.b32.xlu0 %v1064, 96
  %v1271 = vpop.permute.xlu0 %1270
  %1273 = vst.msk [vmem:[%s10] sm:$0xf] %vm1267, %v1271
  // Predicated region
  $region34: #{bilstm_pr_forward.3} parent=0 // pred_check
    _
  $region35: #{bilstm_pr_forward.3} parent=0 // pred_check_branch
    %1275 = sbr.rel (0) target = $region37
  $region36: #{bilstm_pr_forward.3} parent=0 // pred_region
    _
  $region37: #{bilstm_pr_forward.3} parent=0 // pred_fallthru
    _
  // Predicated region
  $region38: #{bilstm_pr_forward.3} parent=0 // pred_check
    _
  $region39: #{bilstm_pr_forward.3} parent=0 // pred_check_branch
    %1277 = sbr.rel (0) target = $region41
  $region40: #{bilstm_pr_forward.3} parent=0 // pred_region
    _
  $region41: #{bilstm_pr_forward.3} parent=0 // pred_fallthru
    _
  // Predicated region
  $region42: #{bilstm_pr_forward.3} parent=0 // pred_check
    _
  $region43: #{bilstm_pr_forward.3} parent=0 // pred_check_branch
    %1279 = sbr.rel (0) target = $region45
  $region44: #{bilstm_pr_forward.3} parent=0 // pred_region
    _
  $region45: #{bilstm_pr_forward.3} parent=0 // pred_fallthru
    _
  // Predicated region
  $region46: #{bilstm_pr_forward.3} parent=0 // pred_check
    _
  $region47: #{bilstm_pr_forward.3} parent=0 // pred_check_branch
    %1281 = sbr.rel (0) target = $region49
  $region48: #{bilstm_pr_forward.3} parent=0 // pred_region
    _
  $region49: #{bilstm_pr_forward.3} parent=0 // pred_fallthru
    _
  // Predicated region
  $region50: #{bilstm_pr_forward.3} parent=0 // pred_check
    _
  $region51: #{bilstm_pr_forward.3} parent=0 // pred_check_branch
    %1283 = sbr.rel (0) target = $region53
  $region52: #{bilstm_pr_forward.3} parent=0 // pred_region
    _
  $region53: #{bilstm_pr_forward.3} parent=0 // pred_fallthru
    _
  // Predicated region
  $region54: #{bilstm_pr_forward.3} parent=0 // pred_check
    _
  $region55: #{bilstm_pr_forward.3} parent=0 // pred_check_branch
    %1285 = sbr.rel (0) target = $region57
  $region56: #{bilstm_pr_forward.3} parent=0 // pred_region
    _
  $region57: #{bilstm_pr_forward.3} parent=0 // pred_fallthru
    _

</llo_original>
